<compile_context>
chip_gen: v7x
topology: tpu7x:2x2x1
jax: 0.10.0
libtpu: 0.0.40
codegen_flags: <defaults>
</compile_context>

<pallas_src>
import jax
import jax.numpy as jnp
from jax import lax
from jax.experimental import pallas as pl
from jax.experimental.pallas import tpu as pltpu


def _make_cnn_kernel(conv_channels, kernel_size, lengths, output_dim):
    n_layers = len(conv_channels)
    K = kernel_size

    def kernel(*refs):
        x_ref = refs[0]                              # (L0, B_TILE) VMEM (lead dim squeezed)
        conv_refs = refs[1:1 + 2 * n_layers]         # flat SMEM weights / biases
        wout_ref = refs[1 + 2 * n_layers]            # (OD_pad, C_last) VMEM, pre-scaled 1/L
        bout_ref = refs[2 + 2 * n_layers]            # (OD_pad, 1) VMEM
        out_ref = refs[3 + 2 * n_layers]             # (OD_pad, B_TILE) VMEM

        bt = out_ref.shape[1]                        # B_TILE (static)
        act = [x_ref[...].astype(jnp.float32)]       # in_ch = 1, batch on lanes

        for li in range(n_layers):
            w_ref = conv_refs[2 * li]                # (out_ch*in_ch*K,) SMEM
            b_ref = conv_refs[2 * li + 1]            # (out_ch,) SMEM
            in_ch = len(act)
            out_ch = conv_channels[li]
            L_in, L_out = lengths[li], lengths[li + 1]
            Lc = max(L_in, L_out)
            use_roll = (Lc % 8 == 0)                 # sublane-aligned XLU rotate path
            row = (lax.broadcasted_iota(jnp.int32, (Lc, bt), 0) if use_roll else None)

            # Bias-initialized accumulators, one per output channel.
            accs = [jnp.full((L_out, bt), b_ref[co], jnp.float32)
                    for co in range(out_ch)]

            for ci in range(in_ch):
                a = act[ci]

                # Hoisted shifted taps, computed ONCE per (layer, input channel)
                # and reused for every output channel:
                #   taps[k][j] = x_zero_padded[j + k]   (conv padding = 1)
                taps = []
                if use_roll:
                    a_c = a if Lc == L_in else jnp.concatenate(
                        [a, jnp.zeros((Lc - L_in, bt), jnp.float32)], axis=0)
                    for k in range(K):
                        s = k - 1
                        if s == 0:
                            v = a_c
                        else:
                            v = pltpu.roll(a_c, shift=(-s) % Lc, axis=0)   # XLU rotate
                            v = jnp.where((row + s >= 0) & (row + s < L_in), v, 0.0)
                        taps.append(v if Lc == L_out else v[:L_out])
                else:
                    zrow = jnp.zeros((1, bt), jnp.float32)
                    padded = jnp.concatenate([zrow, a, zrow], axis=0)      # (L_in+2, bt)
                    for k in range(K):
                        taps.append(padded[k:k + L_out])

                for co in range(out_ch):
                    base = (co * in_ch + ci) * K
                    r = accs[co]
                    for k in range(K):
                        # SMEM scalar broadcast * full-vreg VPU FMA
                        r = r + w_ref[base + k] * taps[k]
                    accs[co] = r

            act = [jnp.maximum(r, 0.0) for r in accs]
            # TODO(synk): nn.Dropout(p > 0) not implemented (module default p = 0).

        # Sum-pool over the length (sublane) axis; the 1/L mean scale is folded
        # into wout in the wrapper.
        pooled = jnp.concatenate(
            [jnp.sum(a, axis=0, keepdims=True) for a in act], axis=0)      # (C_last, bt)

        # Final Linear on the (otherwise idle) MXU: (OD_pad, C) @ (C, bt).
        out = jnp.dot(wout_ref[...], pooled,
                      preferred_element_type=jnp.float32) + bout_ref[...]
        out_ref[...] = out.astype(out_ref.dtype)

    return kernel


def cnn_forward_pallas(x, params, *, conv_channels, kernel_size, output_dim):
    B, L0 = x.shape
    n_layers = len(conv_channels)
    assert kernel_size >= 1
    # PyTorch module hard-codes padding=1, stride=1.
    lengths = [L0]
    for _ in range(n_layers):
        lengths.append(lengths[-1] + 2 - kernel_size + 1)
    assert all(l > 0 for l in lengths)
    c_last = conv_channels[-1]

    # Lane-dense batch tile (see header comment).
    B_TILE = 128 if B <= 1024 else 256
    grid_b = (B + B_TILE - 1) // B_TILE
    Bp = grid_b * B_TILE

    # Blocked, contiguous-per-step input: (grid_b, L0, B_TILE), batch on lanes.
    # TODO(synk): for very large B ensure this transform fuses with x's producer
    # (or read (B_TILE, L0) blocks + in-kernel transpose) to avoid an extra HBM pass.
    xt = x.astype(jnp.float32)
    if Bp != B:
        xt = jnp.pad(xt, ((0, Bp - B), (0, 0)))
    xb = xt.reshape(grid_b, B_TILE, L0).transpose(0, 2, 1)

    # Output-layer weights: fold the mean-pool 1/L scale in, pad rows to a
    # multiple of 8 sublanes for an aligned MXU dot / aligned output store.
    OD_pad = ((output_dim + 7) // 8) * 8
    wout_scaled = (params["wout"].astype(jnp.float32) / float(lengths[-1]))
    wout_scaled = jnp.pad(wout_scaled, ((0, OD_pad - output_dim), (0, 0)))
    bout = jnp.pad(params["bout"].astype(jnp.float32),
                   (0, OD_pad - output_dim)).reshape(OD_pad, 1)

    kernel = _make_cnn_kernel(tuple(conv_channels), kernel_size,
                              tuple(lengths), output_dim)

    smem_spec = pl.BlockSpec(memory_space=pltpu.MemorySpace.SMEM)

    inputs = [xb]
    in_specs = [pl.BlockSpec((None, L0, B_TILE), lambda b: (b, 0, 0))]
    for (w, bias) in params["conv"]:
        # w: (out_ch, in_ch, K) -> flat row-major; bias: (out_ch,)
        inputs += [w.reshape(-1).astype(jnp.float32), bias.astype(jnp.float32)]
        in_specs += [smem_spec, smem_spec]
    inputs += [wout_scaled, bout]
    in_specs += [pl.BlockSpec((OD_pad, c_last), lambda b: (0, 0)),
                 pl.BlockSpec((OD_pad, 1), lambda b: (0, 0))]

    out = pl.pallas_call(
        kernel,
        out_shape=jax.ShapeDtypeStruct((OD_pad, Bp), jnp.float32),
        grid_spec=pltpu.PrefetchScalarGridSpec(
            num_scalar_prefetch=0,
            grid=(grid_b,),
            in_specs=in_specs,
            out_specs=pl.BlockSpec((OD_pad, B_TILE), lambda b: (0, b)),
        ),
        compiler_params=pltpu.CompilerParams(
            dimension_semantics=("parallel",)),
    )(*inputs)
    return out[:output_dim, :B].T                    # (B, output_dim)


def reference_forward(x, params):
    """Pure-JAX reference matching the PyTorch forward."""
    a = x[:, None, :]                                # (B, 1, L)
    for (w, bias) in params["conv"]:
        a = lax.conv_general_dilated(
            a, w, window_strides=(1,), padding=[(1, 1)],
            dimension_numbers=("NCW", "OIW", "NCW"))
        a = jnp.maximum(a + bias[None, :, None], 0.0)
    pooled = a.mean(axis=-1)                         # (B, C_last)
    return pooled @ params["wout"].T + params["bout"]


if __name__ == "__main__":
    B = 2
    input_dim = 16
    conv_channels = [8, 8]
    n_layers = 2
    kernel_size = 3
    output_dim = 4

    key = jax.random.PRNGKey(0)
    params = {"conv": []}
    in_ch = 1
    for out_ch in conv_channels:
        key, kw, kb = jax.random.split(key, 3)
        w = 0.2 * jax.random.normal(kw, (out_ch, in_ch, kernel_size), jnp.float32)
        bias = 0.1 * jax.random.normal(kb, (out_ch,), jnp.float32)
        params["conv"].append((w, bias))
        in_ch = out_ch
    # output layer: nn.init.constant_(weight, -0.1), nn.init.constant_(bias, -0.1)
    params["wout"] = jnp.full((output_dim, conv_channels[-1]), -0.1, jnp.float32)
    params["bout"] = jnp.full((output_dim,), -0.1, jnp.float32)

    key, kx = jax.random.split(key)
    x = jax.random.normal(kx, (B, input_dim), jnp.float32)

    out = cnn_forward_pallas(x, params, conv_channels=conv_channels,
                             kernel_size=kernel_size, output_dim=output_dim)
    out = jax.block_until_ready(out)

    ref = reference_forward(x, params)
    assert out.shape == (B, output_dim)
    assert jnp.allclose(out, ref, rtol=1e-4, atol=1e-4), (out, ref)
    print("KERNEL_OK")
</pallas_src>

<mosaic_0001>
module attributes {stable_mosaic.version = 11 : i64} {
  func.func @kernel(%arg0: i32, %arg1: memref<1x16x128xf32, #tpu.memory_space<vmem>>, %arg2: memref<24xf32, #tpu.memory_space<smem>>, %arg3: memref<8xf32, #tpu.memory_space<smem>>, %arg4: memref<192xf32, #tpu.memory_space<smem>>, %arg5: memref<8xf32, #tpu.memory_space<smem>>, %arg6: memref<8x8xf32, #tpu.memory_space<vmem>>, %arg7: memref<8x1xf32, #tpu.memory_space<vmem>>, %arg8: memref<8x128xf32, #tpu.memory_space<vmem>>) attributes {dimension_semantics = [#tpu.dimension_semantics<parallel>], iteration_bounds = array<i64: 1>, scalar_prefetch = 0 : i64, scratch_operands = 0 : i64, tpu.core_type = #tpu.core_type<tc>, window_params = [{transform_indices = @transform_0, window_bounds = array<i64: 1, 16, 128>}, {transform_indices = @transform_1, window_bounds = array<i64: 24>}, {transform_indices = @transform_2, window_bounds = array<i64: 8>}, {transform_indices = @transform_3, window_bounds = array<i64: 192>}, {transform_indices = @transform_4, window_bounds = array<i64: 8>}, {pipeline_mode = #tpu.pipeline_mode<synchronous>, transform_indices = @transform_5, window_bounds = array<i64: 8, 8>}, {pipeline_mode = #tpu.pipeline_mode<synchronous>, transform_indices = @transform_6, window_bounds = array<i64: 8, 1>}, {transform_indices = @transform_7, window_bounds = array<i64: 8, 128>}]} {
    %c0 = arith.constant 0 : index
    %c0_0 = arith.constant 0 : index
    %c0_1 = arith.constant 0 : index
    %0 = vector.load %arg1[%c0, %c0_0, %c0_1] : memref<1x16x128xf32, #tpu.memory_space<vmem>>, vector<1x16x128xf32>
    %1 = vector.shape_cast %0 : vector<1x16x128xf32> to vector<16x128xf32>
    %2 = tpu.iota {dimensions = array<i32: 0>} : vector<16x128xi32>
    %c0_2 = arith.constant 0 : index
    %3 = memref.load %arg3[%c0_2] : memref<8xf32, #tpu.memory_space<smem>>
    %4 = vector.broadcast %3 : f32 to vector<16x128xf32>
    %c1 = arith.constant 1 : index
    %5 = memref.load %arg3[%c1] : memref<8xf32, #tpu.memory_space<smem>>
    %6 = vector.broadcast %5 : f32 to vector<16x128xf32>
    %c2 = arith.constant 2 : index
    %7 = memref.load %arg3[%c2] : memref<8xf32, #tpu.memory_space<smem>>
    %8 = vector.broadcast %7 : f32 to vector<16x128xf32>
    %c3 = arith.constant 3 : index
    %9 = memref.load %arg3[%c3] : memref<8xf32, #tpu.memory_space<smem>>
    %10 = vector.broadcast %9 : f32 to vector<16x128xf32>
    %c4 = arith.constant 4 : index
    %11 = memref.load %arg3[%c4] : memref<8xf32, #tpu.memory_space<smem>>
    %12 = vector.broadcast %11 : f32 to vector<16x128xf32>
    %c5 = arith.constant 5 : index
    %13 = memref.load %arg3[%c5] : memref<8xf32, #tpu.memory_space<smem>>
    %14 = vector.broadcast %13 : f32 to vector<16x128xf32>
    %c6 = arith.constant 6 : index
    %15 = memref.load %arg3[%c6] : memref<8xf32, #tpu.memory_space<smem>>
    %16 = vector.broadcast %15 : f32 to vector<16x128xf32>
    %c7 = arith.constant 7 : index
    %17 = memref.load %arg3[%c7] : memref<8xf32, #tpu.memory_space<smem>>
    %18 = vector.broadcast %17 : f32 to vector<16x128xf32>
    %c1_i32 = arith.constant 1 : i32
    %19 = tpu.dynamic_rotate %1 by %c1_i32 dim 0 : vector<16x128xf32>, i32 -> vector<16x128xf32>
    %c-1_i32 = arith.constant -1 : i32
    %20 = vector.broadcast %c-1_i32 : i32 to vector<16x128xi32>
    %21 = arith.addi %2, %20 : vector<16x128xi32>
    %c0_i32 = arith.constant 0 : i32
    %22 = vector.broadcast %c0_i32 : i32 to vector<16x128xi32>
    %23 = arith.cmpi sge, %21, %22 : vector<16x128xi32>
    %c-1_i32_3 = arith.constant -1 : i32
    %24 = vector.broadcast %c-1_i32_3 : i32 to vector<16x128xi32>
    %25 = arith.addi %2, %24 : vector<16x128xi32>
    %c16_i32 = arith.constant 16 : i32
    %26 = vector.broadcast %c16_i32 : i32 to vector<16x128xi32>
    %27 = arith.cmpi slt, %25, %26 : vector<16x128xi32>
    %28 = arith.andi %23, %27 : vector<16x128xi1>
    %cst = arith.constant 0.000000e+00 : f32
    %29 = vector.broadcast %cst : f32 to vector<16x128xf32>
    %30 = arith.select %28, %19, %29 : vector<16x128xi1>, vector<16x128xf32>
    %c15_i32 = arith.constant 15 : i32
    %31 = tpu.dynamic_rotate %1 by %c15_i32 dim 0 : vector<16x128xf32>, i32 -> vector<16x128xf32>
    %c1_i32_4 = arith.constant 1 : i32
    %32 = vector.broadcast %c1_i32_4 : i32 to vector<16x128xi32>
    %33 = arith.addi %2, %32 : vector<16x128xi32>
    %c0_i32_5 = arith.constant 0 : i32
    %34 = vector.broadcast %c0_i32_5 : i32 to vector<16x128xi32>
    %35 = arith.cmpi sge, %33, %34 : vector<16x128xi32>
    %c1_i32_6 = arith.constant 1 : i32
    %36 = vector.broadcast %c1_i32_6 : i32 to vector<16x128xi32>
    %37 = arith.addi %2, %36 : vector<16x128xi32>
    %c16_i32_7 = arith.constant 16 : i32
    %38 = vector.broadcast %c16_i32_7 : i32 to vector<16x128xi32>
    %39 = arith.cmpi slt, %37, %38 : vector<16x128xi32>
    %40 = arith.andi %35, %39 : vector<16x128xi1>
    %cst_8 = arith.constant 0.000000e+00 : f32
    %41 = vector.broadcast %cst_8 : f32 to vector<16x128xf32>
    %42 = arith.select %40, %31, %41 : vector<16x128xi1>, vector<16x128xf32>
    %c0_9 = arith.constant 0 : index
    %43 = memref.load %arg2[%c0_9] : memref<24xf32, #tpu.memory_space<smem>>
    %44 = vector.broadcast %43 : f32 to vector<16x128xf32>
    %45 = arith.mulf %44, %30 : vector<16x128xf32>
    %46 = arith.addf %4, %45 : vector<16x128xf32>
    %c1_10 = arith.constant 1 : index
    %47 = memref.load %arg2[%c1_10] : memref<24xf32, #tpu.memory_space<smem>>
    %48 = vector.broadcast %47 : f32 to vector<16x128xf32>
    %49 = arith.mulf %48, %1 : vector<16x128xf32>
    %50 = arith.addf %46, %49 : vector<16x128xf32>
    %c2_11 = arith.constant 2 : index
    %51 = memref.load %arg2[%c2_11] : memref<24xf32, #tpu.memory_space<smem>>
    %52 = vector.broadcast %51 : f32 to vector<16x128xf32>
    %53 = arith.mulf %52, %42 : vector<16x128xf32>
    %54 = arith.addf %50, %53 : vector<16x128xf32>
    %c3_12 = arith.constant 3 : index
    %55 = memref.load %arg2[%c3_12] : memref<24xf32, #tpu.memory_space<smem>>
    %56 = vector.broadcast %55 : f32 to vector<16x128xf32>
    %57 = arith.mulf %56, %30 : vector<16x128xf32>
    %58 = arith.addf %6, %57 : vector<16x128xf32>
    %c4_13 = arith.constant 4 : index
    %59 = memref.load %arg2[%c4_13] : memref<24xf32, #tpu.memory_space<smem>>
    %60 = vector.broadcast %59 : f32 to vector<16x128xf32>
    %61 = arith.mulf %60, %1 : vector<16x128xf32>
    %62 = arith.addf %58, %61 : vector<16x128xf32>
    %c5_14 = arith.constant 5 : index
    %63 = memref.load %arg2[%c5_14] : memref<24xf32, #tpu.memory_space<smem>>
    %64 = vector.broadcast %63 : f32 to vector<16x128xf32>
    %65 = arith.mulf %64, %42 : vector<16x128xf32>
    %66 = arith.addf %62, %65 : vector<16x128xf32>
    %c6_15 = arith.constant 6 : index
    %67 = memref.load %arg2[%c6_15] : memref<24xf32, #tpu.memory_space<smem>>
    %68 = vector.broadcast %67 : f32 to vector<16x128xf32>
    %69 = arith.mulf %68, %30 : vector<16x128xf32>
    %70 = arith.addf %8, %69 : vector<16x128xf32>
    %c7_16 = arith.constant 7 : index
    %71 = memref.load %arg2[%c7_16] : memref<24xf32, #tpu.memory_space<smem>>
    %72 = vector.broadcast %71 : f32 to vector<16x128xf32>
    %73 = arith.mulf %72, %1 : vector<16x128xf32>
    %74 = arith.addf %70, %73 : vector<16x128xf32>
    %c8 = arith.constant 8 : index
    %75 = memref.load %arg2[%c8] : memref<24xf32, #tpu.memory_space<smem>>
    %76 = vector.broadcast %75 : f32 to vector<16x128xf32>
    %77 = arith.mulf %76, %42 : vector<16x128xf32>
    %78 = arith.addf %74, %77 : vector<16x128xf32>
    %c9 = arith.constant 9 : index
    %79 = memref.load %arg2[%c9] : memref<24xf32, #tpu.memory_space<smem>>
    %80 = vector.broadcast %79 : f32 to vector<16x128xf32>
    %81 = arith.mulf %80, %30 : vector<16x128xf32>
    %82 = arith.addf %10, %81 : vector<16x128xf32>
    %c10 = arith.constant 10 : index
    %83 = memref.load %arg2[%c10] : memref<24xf32, #tpu.memory_space<smem>>
    %84 = vector.broadcast %83 : f32 to vector<16x128xf32>
    %85 = arith.mulf %84, %1 : vector<16x128xf32>
    %86 = arith.addf %82, %85 : vector<16x128xf32>
    %c11 = arith.constant 11 : index
    %87 = memref.load %arg2[%c11] : memref<24xf32, #tpu.memory_space<smem>>
    %88 = vector.broadcast %87 : f32 to vector<16x128xf32>
    %89 = arith.mulf %88, %42 : vector<16x128xf32>
    %90 = arith.addf %86, %89 : vector<16x128xf32>
    %c12 = arith.constant 12 : index
    %91 = memref.load %arg2[%c12] : memref<24xf32, #tpu.memory_space<smem>>
    %92 = vector.broadcast %91 : f32 to vector<16x128xf32>
    %93 = arith.mulf %92, %30 : vector<16x128xf32>
    %94 = arith.addf %12, %93 : vector<16x128xf32>
    %c13 = arith.constant 13 : index
    %95 = memref.load %arg2[%c13] : memref<24xf32, #tpu.memory_space<smem>>
    %96 = vector.broadcast %95 : f32 to vector<16x128xf32>
    %97 = arith.mulf %96, %1 : vector<16x128xf32>
    %98 = arith.addf %94, %97 : vector<16x128xf32>
    %c14 = arith.constant 14 : index
    %99 = memref.load %arg2[%c14] : memref<24xf32, #tpu.memory_space<smem>>
    %100 = vector.broadcast %99 : f32 to vector<16x128xf32>
    %101 = arith.mulf %100, %42 : vector<16x128xf32>
    %102 = arith.addf %98, %101 : vector<16x128xf32>
    %c15 = arith.constant 15 : index
    %103 = memref.load %arg2[%c15] : memref<24xf32, #tpu.memory_space<smem>>
    %104 = vector.broadcast %103 : f32 to vector<16x128xf32>
    %105 = arith.mulf %104, %30 : vector<16x128xf32>
    %106 = arith.addf %14, %105 : vector<16x128xf32>
    %c16 = arith.constant 16 : index
    %107 = memref.load %arg2[%c16] : memref<24xf32, #tpu.memory_space<smem>>
    %108 = vector.broadcast %107 : f32 to vector<16x128xf32>
    %109 = arith.mulf %108, %1 : vector<16x128xf32>
    %110 = arith.addf %106, %109 : vector<16x128xf32>
    %c17 = arith.constant 17 : index
    %111 = memref.load %arg2[%c17] : memref<24xf32, #tpu.memory_space<smem>>
    %112 = vector.broadcast %111 : f32 to vector<16x128xf32>
    %113 = arith.mulf %112, %42 : vector<16x128xf32>
    %114 = arith.addf %110, %113 : vector<16x128xf32>
    %c18 = arith.constant 18 : index
    %115 = memref.load %arg2[%c18] : memref<24xf32, #tpu.memory_space<smem>>
    %116 = vector.broadcast %115 : f32 to vector<16x128xf32>
    %117 = arith.mulf %116, %30 : vector<16x128xf32>
    %118 = arith.addf %16, %117 : vector<16x128xf32>
    %c19 = arith.constant 19 : index
    %119 = memref.load %arg2[%c19] : memref<24xf32, #tpu.memory_space<smem>>
    %120 = vector.broadcast %119 : f32 to vector<16x128xf32>
    %121 = arith.mulf %120, %1 : vector<16x128xf32>
    %122 = arith.addf %118, %121 : vector<16x128xf32>
    %c20 = arith.constant 20 : index
    %123 = memref.load %arg2[%c20] : memref<24xf32, #tpu.memory_space<smem>>
    %124 = vector.broadcast %123 : f32 to vector<16x128xf32>
    %125 = arith.mulf %124, %42 : vector<16x128xf32>
    %126 = arith.addf %122, %125 : vector<16x128xf32>
    %c21 = arith.constant 21 : index
    %127 = memref.load %arg2[%c21] : memref<24xf32, #tpu.memory_space<smem>>
    %128 = vector.broadcast %127 : f32 to vector<16x128xf32>
    %129 = arith.mulf %128, %30 : vector<16x128xf32>
    %130 = arith.addf %18, %129 : vector<16x128xf32>
    %c22 = arith.constant 22 : index
    %131 = memref.load %arg2[%c22] : memref<24xf32, #tpu.memory_space<smem>>
    %132 = vector.broadcast %131 : f32 to vector<16x128xf32>
    %133 = arith.mulf %132, %1 : vector<16x128xf32>
    %134 = arith.addf %130, %133 : vector<16x128xf32>
    %c23 = arith.constant 23 : index
    %135 = memref.load %arg2[%c23] : memref<24xf32, #tpu.memory_space<smem>>
    %136 = vector.broadcast %135 : f32 to vector<16x128xf32>
    %137 = arith.mulf %136, %42 : vector<16x128xf32>
    %138 = arith.addf %134, %137 : vector<16x128xf32>
    %cst_17 = arith.constant 0.000000e+00 : f32
    %139 = vector.broadcast %cst_17 : f32 to vector<16x128xf32>
    %140 = arith.maximumf %54, %139 : vector<16x128xf32>
    %cst_18 = arith.constant 0.000000e+00 : f32
    %141 = vector.broadcast %cst_18 : f32 to vector<16x128xf32>
    %142 = arith.maximumf %66, %141 : vector<16x128xf32>
    %cst_19 = arith.constant 0.000000e+00 : f32
    %143 = vector.broadcast %cst_19 : f32 to vector<16x128xf32>
    %144 = arith.maximumf %78, %143 : vector<16x128xf32>
    %cst_20 = arith.constant 0.000000e+00 : f32
    %145 = vector.broadcast %cst_20 : f32 to vector<16x128xf32>
    %146 = arith.maximumf %90, %145 : vector<16x128xf32>
    %cst_21 = arith.constant 0.000000e+00 : f32
    %147 = vector.broadcast %cst_21 : f32 to vector<16x128xf32>
    %148 = arith.maximumf %102, %147 : vector<16x128xf32>
    %cst_22 = arith.constant 0.000000e+00 : f32
    %149 = vector.broadcast %cst_22 : f32 to vector<16x128xf32>
    %150 = arith.maximumf %114, %149 : vector<16x128xf32>
    %cst_23 = arith.constant 0.000000e+00 : f32
    %151 = vector.broadcast %cst_23 : f32 to vector<16x128xf32>
    %152 = arith.maximumf %126, %151 : vector<16x128xf32>
    %cst_24 = arith.constant 0.000000e+00 : f32
    %153 = vector.broadcast %cst_24 : f32 to vector<16x128xf32>
    %154 = arith.maximumf %138, %153 : vector<16x128xf32>
    %155 = tpu.iota {dimensions = array<i32: 0>} : vector<16x128xi32>
    %c0_25 = arith.constant 0 : index
    %156 = memref.load %arg5[%c0_25] : memref<8xf32, #tpu.memory_space<smem>>
    %157 = vector.broadcast %156 : f32 to vector<16x128xf32>
    %c1_26 = arith.constant 1 : index
    %158 = memref.load %arg5[%c1_26] : memref<8xf32, #tpu.memory_space<smem>>
    %159 = vector.broadcast %158 : f32 to vector<16x128xf32>
    %c2_27 = arith.constant 2 : index
    %160 = memref.load %arg5[%c2_27] : memref<8xf32, #tpu.memory_space<smem>>
    %161 = vector.broadcast %160 : f32 to vector<16x128xf32>
    %c3_28 = arith.constant 3 : index
    %162 = memref.load %arg5[%c3_28] : memref<8xf32, #tpu.memory_space<smem>>
    %163 = vector.broadcast %162 : f32 to vector<16x128xf32>
    %c4_29 = arith.constant 4 : index
    %164 = memref.load %arg5[%c4_29] : memref<8xf32, #tpu.memory_space<smem>>
    %165 = vector.broadcast %164 : f32 to vector<16x128xf32>
    %c5_30 = arith.constant 5 : index
    %166 = memref.load %arg5[%c5_30] : memref<8xf32, #tpu.memory_space<smem>>
    %167 = vector.broadcast %166 : f32 to vector<16x128xf32>
    %c6_31 = arith.constant 6 : index
    %168 = memref.load %arg5[%c6_31] : memref<8xf32, #tpu.memory_space<smem>>
    %169 = vector.broadcast %168 : f32 to vector<16x128xf32>
    %c7_32 = arith.constant 7 : index
    %170 = memref.load %arg5[%c7_32] : memref<8xf32, #tpu.memory_space<smem>>
    %171 = vector.broadcast %170 : f32 to vector<16x128xf32>
    %c1_i32_33 = arith.constant 1 : i32
    %172 = tpu.dynamic_rotate %140 by %c1_i32_33 dim 0 : vector<16x128xf32>, i32 -> vector<16x128xf32>
    %c-1_i32_34 = arith.constant -1 : i32
    %173 = vector.broadcast %c-1_i32_34 : i32 to vector<16x128xi32>
    %174 = arith.addi %155, %173 : vector<16x128xi32>
    %c0_i32_35 = arith.constant 0 : i32
    %175 = vector.broadcast %c0_i32_35 : i32 to vector<16x128xi32>
    %176 = arith.cmpi sge, %174, %175 : vector<16x128xi32>
    %c-1_i32_36 = arith.constant -1 : i32
    %177 = vector.broadcast %c-1_i32_36 : i32 to vector<16x128xi32>
    %178 = arith.addi %155, %177 : vector<16x128xi32>
    %c16_i32_37 = arith.constant 16 : i32
    %179 = vector.broadcast %c16_i32_37 : i32 to vector<16x128xi32>
    %180 = arith.cmpi slt, %178, %179 : vector<16x128xi32>
    %181 = arith.andi %176, %180 : vector<16x128xi1>
    %cst_38 = arith.constant 0.000000e+00 : f32
    %182 = vector.broadcast %cst_38 : f32 to vector<16x128xf32>
    %183 = arith.select %181, %172, %182 : vector<16x128xi1>, vector<16x128xf32>
    %c15_i32_39 = arith.constant 15 : i32
    %184 = tpu.dynamic_rotate %140 by %c15_i32_39 dim 0 : vector<16x128xf32>, i32 -> vector<16x128xf32>
    %c1_i32_40 = arith.constant 1 : i32
    %185 = vector.broadcast %c1_i32_40 : i32 to vector<16x128xi32>
    %186 = arith.addi %155, %185 : vector<16x128xi32>
    %c0_i32_41 = arith.constant 0 : i32
    %187 = vector.broadcast %c0_i32_41 : i32 to vector<16x128xi32>
    %188 = arith.cmpi sge, %186, %187 : vector<16x128xi32>
    %c1_i32_42 = arith.constant 1 : i32
    %189 = vector.broadcast %c1_i32_42 : i32 to vector<16x128xi32>
    %190 = arith.addi %155, %189 : vector<16x128xi32>
    %c16_i32_43 = arith.constant 16 : i32
    %191 = vector.broadcast %c16_i32_43 : i32 to vector<16x128xi32>
    %192 = arith.cmpi slt, %190, %191 : vector<16x128xi32>
    %193 = arith.andi %188, %192 : vector<16x128xi1>
    %cst_44 = arith.constant 0.000000e+00 : f32
    %194 = vector.broadcast %cst_44 : f32 to vector<16x128xf32>
    %195 = arith.select %193, %184, %194 : vector<16x128xi1>, vector<16x128xf32>
    %c0_45 = arith.constant 0 : index
    %196 = memref.load %arg4[%c0_45] : memref<192xf32, #tpu.memory_space<smem>>
    %197 = vector.broadcast %196 : f32 to vector<16x128xf32>
    %198 = arith.mulf %197, %183 : vector<16x128xf32>
    %199 = arith.addf %157, %198 : vector<16x128xf32>
    %c1_46 = arith.constant 1 : index
    %200 = memref.load %arg4[%c1_46] : memref<192xf32, #tpu.memory_space<smem>>
    %201 = vector.broadcast %200 : f32 to vector<16x128xf32>
    %202 = arith.mulf %201, %140 : vector<16x128xf32>
    %203 = arith.addf %199, %202 : vector<16x128xf32>
    %c2_47 = arith.constant 2 : index
    %204 = memref.load %arg4[%c2_47] : memref<192xf32, #tpu.memory_space<smem>>
    %205 = vector.broadcast %204 : f32 to vector<16x128xf32>
    %206 = arith.mulf %205, %195 : vector<16x128xf32>
    %207 = arith.addf %203, %206 : vector<16x128xf32>
    %c24 = arith.constant 24 : index
    %208 = memref.load %arg4[%c24] : memref<192xf32, #tpu.memory_space<smem>>
    %209 = vector.broadcast %208 : f32 to vector<16x128xf32>
    %210 = arith.mulf %209, %183 : vector<16x128xf32>
    %211 = arith.addf %159, %210 : vector<16x128xf32>
    %c25 = arith.constant 25 : index
    %212 = memref.load %arg4[%c25] : memref<192xf32, #tpu.memory_space<smem>>
    %213 = vector.broadcast %212 : f32 to vector<16x128xf32>
    %214 = arith.mulf %213, %140 : vector<16x128xf32>
    %215 = arith.addf %211, %214 : vector<16x128xf32>
    %c26 = arith.constant 26 : index
    %216 = memref.load %arg4[%c26] : memref<192xf32, #tpu.memory_space<smem>>
    %217 = vector.broadcast %216 : f32 to vector<16x128xf32>
    %218 = arith.mulf %217, %195 : vector<16x128xf32>
    %219 = arith.addf %215, %218 : vector<16x128xf32>
    %c48 = arith.constant 48 : index
    %220 = memref.load %arg4[%c48] : memref<192xf32, #tpu.memory_space<smem>>
    %221 = vector.broadcast %220 : f32 to vector<16x128xf32>
    %222 = arith.mulf %221, %183 : vector<16x128xf32>
    %223 = arith.addf %161, %222 : vector<16x128xf32>
    %c49 = arith.constant 49 : index
    %224 = memref.load %arg4[%c49] : memref<192xf32, #tpu.memory_space<smem>>
    %225 = vector.broadcast %224 : f32 to vector<16x128xf32>
    %226 = arith.mulf %225, %140 : vector<16x128xf32>
    %227 = arith.addf %223, %226 : vector<16x128xf32>
    %c50 = arith.constant 50 : index
    %228 = memref.load %arg4[%c50] : memref<192xf32, #tpu.memory_space<smem>>
    %229 = vector.broadcast %228 : f32 to vector<16x128xf32>
    %230 = arith.mulf %229, %195 : vector<16x128xf32>
    %231 = arith.addf %227, %230 : vector<16x128xf32>
    %c72 = arith.constant 72 : index
    %232 = memref.load %arg4[%c72] : memref<192xf32, #tpu.memory_space<smem>>
    %233 = vector.broadcast %232 : f32 to vector<16x128xf32>
    %234 = arith.mulf %233, %183 : vector<16x128xf32>
    %235 = arith.addf %163, %234 : vector<16x128xf32>
    %c73 = arith.constant 73 : index
    %236 = memref.load %arg4[%c73] : memref<192xf32, #tpu.memory_space<smem>>
    %237 = vector.broadcast %236 : f32 to vector<16x128xf32>
    %238 = arith.mulf %237, %140 : vector<16x128xf32>
    %239 = arith.addf %235, %238 : vector<16x128xf32>
    %c74 = arith.constant 74 : index
    %240 = memref.load %arg4[%c74] : memref<192xf32, #tpu.memory_space<smem>>
    %241 = vector.broadcast %240 : f32 to vector<16x128xf32>
    %242 = arith.mulf %241, %195 : vector<16x128xf32>
    %243 = arith.addf %239, %242 : vector<16x128xf32>
    %c96 = arith.constant 96 : index
    %244 = memref.load %arg4[%c96] : memref<192xf32, #tpu.memory_space<smem>>
    %245 = vector.broadcast %244 : f32 to vector<16x128xf32>
    %246 = arith.mulf %245, %183 : vector<16x128xf32>
    %247 = arith.addf %165, %246 : vector<16x128xf32>
    %c97 = arith.constant 97 : index
    %248 = memref.load %arg4[%c97] : memref<192xf32, #tpu.memory_space<smem>>
    %249 = vector.broadcast %248 : f32 to vector<16x128xf32>
    %250 = arith.mulf %249, %140 : vector<16x128xf32>
    %251 = arith.addf %247, %250 : vector<16x128xf32>
    %c98 = arith.constant 98 : index
    %252 = memref.load %arg4[%c98] : memref<192xf32, #tpu.memory_space<smem>>
    %253 = vector.broadcast %252 : f32 to vector<16x128xf32>
    %254 = arith.mulf %253, %195 : vector<16x128xf32>
    %255 = arith.addf %251, %254 : vector<16x128xf32>
    %c120 = arith.constant 120 : index
    %256 = memref.load %arg4[%c120] : memref<192xf32, #tpu.memory_space<smem>>
    %257 = vector.broadcast %256 : f32 to vector<16x128xf32>
    %258 = arith.mulf %257, %183 : vector<16x128xf32>
    %259 = arith.addf %167, %258 : vector<16x128xf32>
    %c121 = arith.constant 121 : index
    %260 = memref.load %arg4[%c121] : memref<192xf32, #tpu.memory_space<smem>>
    %261 = vector.broadcast %260 : f32 to vector<16x128xf32>
    %262 = arith.mulf %261, %140 : vector<16x128xf32>
    %263 = arith.addf %259, %262 : vector<16x128xf32>
    %c122 = arith.constant 122 : index
    %264 = memref.load %arg4[%c122] : memref<192xf32, #tpu.memory_space<smem>>
    %265 = vector.broadcast %264 : f32 to vector<16x128xf32>
    %266 = arith.mulf %265, %195 : vector<16x128xf32>
    %267 = arith.addf %263, %266 : vector<16x128xf32>
    %c144 = arith.constant 144 : index
    %268 = memref.load %arg4[%c144] : memref<192xf32, #tpu.memory_space<smem>>
    %269 = vector.broadcast %268 : f32 to vector<16x128xf32>
    %270 = arith.mulf %269, %183 : vector<16x128xf32>
    %271 = arith.addf %169, %270 : vector<16x128xf32>
    %c145 = arith.constant 145 : index
    %272 = memref.load %arg4[%c145] : memref<192xf32, #tpu.memory_space<smem>>
    %273 = vector.broadcast %272 : f32 to vector<16x128xf32>
    %274 = arith.mulf %273, %140 : vector<16x128xf32>
    %275 = arith.addf %271, %274 : vector<16x128xf32>
    %c146 = arith.constant 146 : index
    %276 = memref.load %arg4[%c146] : memref<192xf32, #tpu.memory_space<smem>>
    %277 = vector.broadcast %276 : f32 to vector<16x128xf32>
    %278 = arith.mulf %277, %195 : vector<16x128xf32>
    %279 = arith.addf %275, %278 : vector<16x128xf32>
    %c168 = arith.constant 168 : index
    %280 = memref.load %arg4[%c168] : memref<192xf32, #tpu.memory_space<smem>>
    %281 = vector.broadcast %280 : f32 to vector<16x128xf32>
    %282 = arith.mulf %281, %183 : vector<16x128xf32>
    %283 = arith.addf %171, %282 : vector<16x128xf32>
    %c169 = arith.constant 169 : index
    %284 = memref.load %arg4[%c169] : memref<192xf32, #tpu.memory_space<smem>>
    %285 = vector.broadcast %284 : f32 to vector<16x128xf32>
    %286 = arith.mulf %285, %140 : vector<16x128xf32>
    %287 = arith.addf %283, %286 : vector<16x128xf32>
    %c170 = arith.constant 170 : index
    %288 = memref.load %arg4[%c170] : memref<192xf32, #tpu.memory_space<smem>>
    %289 = vector.broadcast %288 : f32 to vector<16x128xf32>
    %290 = arith.mulf %289, %195 : vector<16x128xf32>
    %291 = arith.addf %287, %290 : vector<16x128xf32>
    %c1_i32_48 = arith.constant 1 : i32
    %292 = tpu.dynamic_rotate %142 by %c1_i32_48 dim 0 : vector<16x128xf32>, i32 -> vector<16x128xf32>
    %c-1_i32_49 = arith.constant -1 : i32
    %293 = vector.broadcast %c-1_i32_49 : i32 to vector<16x128xi32>
    %294 = arith.addi %155, %293 : vector<16x128xi32>
    %c0_i32_50 = arith.constant 0 : i32
    %295 = vector.broadcast %c0_i32_50 : i32 to vector<16x128xi32>
    %296 = arith.cmpi sge, %294, %295 : vector<16x128xi32>
    %c-1_i32_51 = arith.constant -1 : i32
    %297 = vector.broadcast %c-1_i32_51 : i32 to vector<16x128xi32>
    %298 = arith.addi %155, %297 : vector<16x128xi32>
    %c16_i32_52 = arith.constant 16 : i32
    %299 = vector.broadcast %c16_i32_52 : i32 to vector<16x128xi32>
    %300 = arith.cmpi slt, %298, %299 : vector<16x128xi32>
    %301 = arith.andi %296, %300 : vector<16x128xi1>
    %cst_53 = arith.constant 0.000000e+00 : f32
    %302 = vector.broadcast %cst_53 : f32 to vector<16x128xf32>
    %303 = arith.select %301, %292, %302 : vector<16x128xi1>, vector<16x128xf32>
    %c15_i32_54 = arith.constant 15 : i32
    %304 = tpu.dynamic_rotate %142 by %c15_i32_54 dim 0 : vector<16x128xf32>, i32 -> vector<16x128xf32>
    %c1_i32_55 = arith.constant 1 : i32
    %305 = vector.broadcast %c1_i32_55 : i32 to vector<16x128xi32>
    %306 = arith.addi %155, %305 : vector<16x128xi32>
    %c0_i32_56 = arith.constant 0 : i32
    %307 = vector.broadcast %c0_i32_56 : i32 to vector<16x128xi32>
    %308 = arith.cmpi sge, %306, %307 : vector<16x128xi32>
    %c1_i32_57 = arith.constant 1 : i32
    %309 = vector.broadcast %c1_i32_57 : i32 to vector<16x128xi32>
    %310 = arith.addi %155, %309 : vector<16x128xi32>
    %c16_i32_58 = arith.constant 16 : i32
    %311 = vector.broadcast %c16_i32_58 : i32 to vector<16x128xi32>
    %312 = arith.cmpi slt, %310, %311 : vector<16x128xi32>
    %313 = arith.andi %308, %312 : vector<16x128xi1>
    %cst_59 = arith.constant 0.000000e+00 : f32
    %314 = vector.broadcast %cst_59 : f32 to vector<16x128xf32>
    %315 = arith.select %313, %304, %314 : vector<16x128xi1>, vector<16x128xf32>
    %c3_60 = arith.constant 3 : index
    %316 = memref.load %arg4[%c3_60] : memref<192xf32, #tpu.memory_space<smem>>
    %317 = vector.broadcast %316 : f32 to vector<16x128xf32>
    %318 = arith.mulf %317, %303 : vector<16x128xf32>
    %319 = arith.addf %207, %318 : vector<16x128xf32>
    %c4_61 = arith.constant 4 : index
    %320 = memref.load %arg4[%c4_61] : memref<192xf32, #tpu.memory_space<smem>>
    %321 = vector.broadcast %320 : f32 to vector<16x128xf32>
    %322 = arith.mulf %321, %142 : vector<16x128xf32>
    %323 = arith.addf %319, %322 : vector<16x128xf32>
    %c5_62 = arith.constant 5 : index
    %324 = memref.load %arg4[%c5_62] : memref<192xf32, #tpu.memory_space<smem>>
    %325 = vector.broadcast %324 : f32 to vector<16x128xf32>
    %326 = arith.mulf %325, %315 : vector<16x128xf32>
    %327 = arith.addf %323, %326 : vector<16x128xf32>
    %c27 = arith.constant 27 : index
    %328 = memref.load %arg4[%c27] : memref<192xf32, #tpu.memory_space<smem>>
    %329 = vector.broadcast %328 : f32 to vector<16x128xf32>
    %330 = arith.mulf %329, %303 : vector<16x128xf32>
    %331 = arith.addf %219, %330 : vector<16x128xf32>
    %c28 = arith.constant 28 : index
    %332 = memref.load %arg4[%c28] : memref<192xf32, #tpu.memory_space<smem>>
    %333 = vector.broadcast %332 : f32 to vector<16x128xf32>
    %334 = arith.mulf %333, %142 : vector<16x128xf32>
    %335 = arith.addf %331, %334 : vector<16x128xf32>
    %c29 = arith.constant 29 : index
    %336 = memref.load %arg4[%c29] : memref<192xf32, #tpu.memory_space<smem>>
    %337 = vector.broadcast %336 : f32 to vector<16x128xf32>
    %338 = arith.mulf %337, %315 : vector<16x128xf32>
    %339 = arith.addf %335, %338 : vector<16x128xf32>
    %c51 = arith.constant 51 : index
    %340 = memref.load %arg4[%c51] : memref<192xf32, #tpu.memory_space<smem>>
    %341 = vector.broadcast %340 : f32 to vector<16x128xf32>
    %342 = arith.mulf %341, %303 : vector<16x128xf32>
    %343 = arith.addf %231, %342 : vector<16x128xf32>
    %c52 = arith.constant 52 : index
    %344 = memref.load %arg4[%c52] : memref<192xf32, #tpu.memory_space<smem>>
    %345 = vector.broadcast %344 : f32 to vector<16x128xf32>
    %346 = arith.mulf %345, %142 : vector<16x128xf32>
    %347 = arith.addf %343, %346 : vector<16x128xf32>
    %c53 = arith.constant 53 : index
    %348 = memref.load %arg4[%c53] : memref<192xf32, #tpu.memory_space<smem>>
    %349 = vector.broadcast %348 : f32 to vector<16x128xf32>
    %350 = arith.mulf %349, %315 : vector<16x128xf32>
    %351 = arith.addf %347, %350 : vector<16x128xf32>
    %c75 = arith.constant 75 : index
    %352 = memref.load %arg4[%c75] : memref<192xf32, #tpu.memory_space<smem>>
    %353 = vector.broadcast %352 : f32 to vector<16x128xf32>
    %354 = arith.mulf %353, %303 : vector<16x128xf32>
    %355 = arith.addf %243, %354 : vector<16x128xf32>
    %c76 = arith.constant 76 : index
    %356 = memref.load %arg4[%c76] : memref<192xf32, #tpu.memory_space<smem>>
    %357 = vector.broadcast %356 : f32 to vector<16x128xf32>
    %358 = arith.mulf %357, %142 : vector<16x128xf32>
    %359 = arith.addf %355, %358 : vector<16x128xf32>
    %c77 = arith.constant 77 : index
    %360 = memref.load %arg4[%c77] : memref<192xf32, #tpu.memory_space<smem>>
    %361 = vector.broadcast %360 : f32 to vector<16x128xf32>
    %362 = arith.mulf %361, %315 : vector<16x128xf32>
    %363 = arith.addf %359, %362 : vector<16x128xf32>
    %c99 = arith.constant 99 : index
    %364 = memref.load %arg4[%c99] : memref<192xf32, #tpu.memory_space<smem>>
    %365 = vector.broadcast %364 : f32 to vector<16x128xf32>
    %366 = arith.mulf %365, %303 : vector<16x128xf32>
    %367 = arith.addf %255, %366 : vector<16x128xf32>
    %c100 = arith.constant 100 : index
    %368 = memref.load %arg4[%c100] : memref<192xf32, #tpu.memory_space<smem>>
    %369 = vector.broadcast %368 : f32 to vector<16x128xf32>
    %370 = arith.mulf %369, %142 : vector<16x128xf32>
    %371 = arith.addf %367, %370 : vector<16x128xf32>
    %c101 = arith.constant 101 : index
    %372 = memref.load %arg4[%c101] : memref<192xf32, #tpu.memory_space<smem>>
    %373 = vector.broadcast %372 : f32 to vector<16x128xf32>
    %374 = arith.mulf %373, %315 : vector<16x128xf32>
    %375 = arith.addf %371, %374 : vector<16x128xf32>
    %c123 = arith.constant 123 : index
    %376 = memref.load %arg4[%c123] : memref<192xf32, #tpu.memory_space<smem>>
    %377 = vector.broadcast %376 : f32 to vector<16x128xf32>
    %378 = arith.mulf %377, %303 : vector<16x128xf32>
    %379 = arith.addf %267, %378 : vector<16x128xf32>
    %c124 = arith.constant 124 : index
    %380 = memref.load %arg4[%c124] : memref<192xf32, #tpu.memory_space<smem>>
    %381 = vector.broadcast %380 : f32 to vector<16x128xf32>
    %382 = arith.mulf %381, %142 : vector<16x128xf32>
    %383 = arith.addf %379, %382 : vector<16x128xf32>
    %c125 = arith.constant 125 : index
    %384 = memref.load %arg4[%c125] : memref<192xf32, #tpu.memory_space<smem>>
    %385 = vector.broadcast %384 : f32 to vector<16x128xf32>
    %386 = arith.mulf %385, %315 : vector<16x128xf32>
    %387 = arith.addf %383, %386 : vector<16x128xf32>
    %c147 = arith.constant 147 : index
    %388 = memref.load %arg4[%c147] : memref<192xf32, #tpu.memory_space<smem>>
    %389 = vector.broadcast %388 : f32 to vector<16x128xf32>
    %390 = arith.mulf %389, %303 : vector<16x128xf32>
    %391 = arith.addf %279, %390 : vector<16x128xf32>
    %c148 = arith.constant 148 : index
    %392 = memref.load %arg4[%c148] : memref<192xf32, #tpu.memory_space<smem>>
    %393 = vector.broadcast %392 : f32 to vector<16x128xf32>
    %394 = arith.mulf %393, %142 : vector<16x128xf32>
    %395 = arith.addf %391, %394 : vector<16x128xf32>
    %c149 = arith.constant 149 : index
    %396 = memref.load %arg4[%c149] : memref<192xf32, #tpu.memory_space<smem>>
    %397 = vector.broadcast %396 : f32 to vector<16x128xf32>
    %398 = arith.mulf %397, %315 : vector<16x128xf32>
    %399 = arith.addf %395, %398 : vector<16x128xf32>
    %c171 = arith.constant 171 : index
    %400 = memref.load %arg4[%c171] : memref<192xf32, #tpu.memory_space<smem>>
    %401 = vector.broadcast %400 : f32 to vector<16x128xf32>
    %402 = arith.mulf %401, %303 : vector<16x128xf32>
    %403 = arith.addf %291, %402 : vector<16x128xf32>
    %c172 = arith.constant 172 : index
    %404 = memref.load %arg4[%c172] : memref<192xf32, #tpu.memory_space<smem>>
    %405 = vector.broadcast %404 : f32 to vector<16x128xf32>
    %406 = arith.mulf %405, %142 : vector<16x128xf32>
    %407 = arith.addf %403, %406 : vector<16x128xf32>
    %c173 = arith.constant 173 : index
    %408 = memref.load %arg4[%c173] : memref<192xf32, #tpu.memory_space<smem>>
    %409 = vector.broadcast %408 : f32 to vector<16x128xf32>
    %410 = arith.mulf %409, %315 : vector<16x128xf32>
    %411 = arith.addf %407, %410 : vector<16x128xf32>
    %c1_i32_63 = arith.constant 1 : i32
    %412 = tpu.dynamic_rotate %144 by %c1_i32_63 dim 0 : vector<16x128xf32>, i32 -> vector<16x128xf32>
    %c-1_i32_64 = arith.constant -1 : i32
    %413 = vector.broadcast %c-1_i32_64 : i32 to vector<16x128xi32>
    %414 = arith.addi %155, %413 : vector<16x128xi32>
    %c0_i32_65 = arith.constant 0 : i32
    %415 = vector.broadcast %c0_i32_65 : i32 to vector<16x128xi32>
    %416 = arith.cmpi sge, %414, %415 : vector<16x128xi32>
    %c-1_i32_66 = arith.constant -1 : i32
    %417 = vector.broadcast %c-1_i32_66 : i32 to vector<16x128xi32>
    %418 = arith.addi %155, %417 : vector<16x128xi32>
    %c16_i32_67 = arith.constant 16 : i32
    %419 = vector.broadcast %c16_i32_67 : i32 to vector<16x128xi32>
    %420 = arith.cmpi slt, %418, %419 : vector<16x128xi32>
    %421 = arith.andi %416, %420 : vector<16x128xi1>
    %cst_68 = arith.constant 0.000000e+00 : f32
    %422 = vector.broadcast %cst_68 : f32 to vector<16x128xf32>
    %423 = arith.select %421, %412, %422 : vector<16x128xi1>, vector<16x128xf32>
    %c15_i32_69 = arith.constant 15 : i32
    %424 = tpu.dynamic_rotate %144 by %c15_i32_69 dim 0 : vector<16x128xf32>, i32 -> vector<16x128xf32>
    %c1_i32_70 = arith.constant 1 : i32
    %425 = vector.broadcast %c1_i32_70 : i32 to vector<16x128xi32>
    %426 = arith.addi %155, %425 : vector<16x128xi32>
    %c0_i32_71 = arith.constant 0 : i32
    %427 = vector.broadcast %c0_i32_71 : i32 to vector<16x128xi32>
    %428 = arith.cmpi sge, %426, %427 : vector<16x128xi32>
    %c1_i32_72 = arith.constant 1 : i32
    %429 = vector.broadcast %c1_i32_72 : i32 to vector<16x128xi32>
    %430 = arith.addi %155, %429 : vector<16x128xi32>
    %c16_i32_73 = arith.constant 16 : i32
    %431 = vector.broadcast %c16_i32_73 : i32 to vector<16x128xi32>
    %432 = arith.cmpi slt, %430, %431 : vector<16x128xi32>
    %433 = arith.andi %428, %432 : vector<16x128xi1>
    %cst_74 = arith.constant 0.000000e+00 : f32
    %434 = vector.broadcast %cst_74 : f32 to vector<16x128xf32>
    %435 = arith.select %433, %424, %434 : vector<16x128xi1>, vector<16x128xf32>
    %c6_75 = arith.constant 6 : index
    %436 = memref.load %arg4[%c6_75] : memref<192xf32, #tpu.memory_space<smem>>
    %437 = vector.broadcast %436 : f32 to vector<16x128xf32>
    %438 = arith.mulf %437, %423 : vector<16x128xf32>
    %439 = arith.addf %327, %438 : vector<16x128xf32>
    %c7_76 = arith.constant 7 : index
    %440 = memref.load %arg4[%c7_76] : memref<192xf32, #tpu.memory_space<smem>>
    %441 = vector.broadcast %440 : f32 to vector<16x128xf32>
    %442 = arith.mulf %441, %144 : vector<16x128xf32>
    %443 = arith.addf %439, %442 : vector<16x128xf32>
    %c8_77 = arith.constant 8 : index
    %444 = memref.load %arg4[%c8_77] : memref<192xf32, #tpu.memory_space<smem>>
    %445 = vector.broadcast %444 : f32 to vector<16x128xf32>
    %446 = arith.mulf %445, %435 : vector<16x128xf32>
    %447 = arith.addf %443, %446 : vector<16x128xf32>
    %c30 = arith.constant 30 : index
    %448 = memref.load %arg4[%c30] : memref<192xf32, #tpu.memory_space<smem>>
    %449 = vector.broadcast %448 : f32 to vector<16x128xf32>
    %450 = arith.mulf %449, %423 : vector<16x128xf32>
    %451 = arith.addf %339, %450 : vector<16x128xf32>
    %c31 = arith.constant 31 : index
    %452 = memref.load %arg4[%c31] : memref<192xf32, #tpu.memory_space<smem>>
    %453 = vector.broadcast %452 : f32 to vector<16x128xf32>
    %454 = arith.mulf %453, %144 : vector<16x128xf32>
    %455 = arith.addf %451, %454 : vector<16x128xf32>
    %c32 = arith.constant 32 : index
    %456 = memref.load %arg4[%c32] : memref<192xf32, #tpu.memory_space<smem>>
    %457 = vector.broadcast %456 : f32 to vector<16x128xf32>
    %458 = arith.mulf %457, %435 : vector<16x128xf32>
    %459 = arith.addf %455, %458 : vector<16x128xf32>
    %c54 = arith.constant 54 : index
    %460 = memref.load %arg4[%c54] : memref<192xf32, #tpu.memory_space<smem>>
    %461 = vector.broadcast %460 : f32 to vector<16x128xf32>
    %462 = arith.mulf %461, %423 : vector<16x128xf32>
    %463 = arith.addf %351, %462 : vector<16x128xf32>
    %c55 = arith.constant 55 : index
    %464 = memref.load %arg4[%c55] : memref<192xf32, #tpu.memory_space<smem>>
    %465 = vector.broadcast %464 : f32 to vector<16x128xf32>
    %466 = arith.mulf %465, %144 : vector<16x128xf32>
    %467 = arith.addf %463, %466 : vector<16x128xf32>
    %c56 = arith.constant 56 : index
    %468 = memref.load %arg4[%c56] : memref<192xf32, #tpu.memory_space<smem>>
    %469 = vector.broadcast %468 : f32 to vector<16x128xf32>
    %470 = arith.mulf %469, %435 : vector<16x128xf32>
    %471 = arith.addf %467, %470 : vector<16x128xf32>
    %c78 = arith.constant 78 : index
    %472 = memref.load %arg4[%c78] : memref<192xf32, #tpu.memory_space<smem>>
    %473 = vector.broadcast %472 : f32 to vector<16x128xf32>
    %474 = arith.mulf %473, %423 : vector<16x128xf32>
    %475 = arith.addf %363, %474 : vector<16x128xf32>
    %c79 = arith.constant 79 : index
    %476 = memref.load %arg4[%c79] : memref<192xf32, #tpu.memory_space<smem>>
    %477 = vector.broadcast %476 : f32 to vector<16x128xf32>
    %478 = arith.mulf %477, %144 : vector<16x128xf32>
    %479 = arith.addf %475, %478 : vector<16x128xf32>
    %c80 = arith.constant 80 : index
    %480 = memref.load %arg4[%c80] : memref<192xf32, #tpu.memory_space<smem>>
    %481 = vector.broadcast %480 : f32 to vector<16x128xf32>
    %482 = arith.mulf %481, %435 : vector<16x128xf32>
    %483 = arith.addf %479, %482 : vector<16x128xf32>
    %c102 = arith.constant 102 : index
    %484 = memref.load %arg4[%c102] : memref<192xf32, #tpu.memory_space<smem>>
    %485 = vector.broadcast %484 : f32 to vector<16x128xf32>
    %486 = arith.mulf %485, %423 : vector<16x128xf32>
    %487 = arith.addf %375, %486 : vector<16x128xf32>
    %c103 = arith.constant 103 : index
    %488 = memref.load %arg4[%c103] : memref<192xf32, #tpu.memory_space<smem>>
    %489 = vector.broadcast %488 : f32 to vector<16x128xf32>
    %490 = arith.mulf %489, %144 : vector<16x128xf32>
    %491 = arith.addf %487, %490 : vector<16x128xf32>
    %c104 = arith.constant 104 : index
    %492 = memref.load %arg4[%c104] : memref<192xf32, #tpu.memory_space<smem>>
    %493 = vector.broadcast %492 : f32 to vector<16x128xf32>
    %494 = arith.mulf %493, %435 : vector<16x128xf32>
    %495 = arith.addf %491, %494 : vector<16x128xf32>
    %c126 = arith.constant 126 : index
    %496 = memref.load %arg4[%c126] : memref<192xf32, #tpu.memory_space<smem>>
    %497 = vector.broadcast %496 : f32 to vector<16x128xf32>
    %498 = arith.mulf %497, %423 : vector<16x128xf32>
    %499 = arith.addf %387, %498 : vector<16x128xf32>
    %c127 = arith.constant 127 : index
    %500 = memref.load %arg4[%c127] : memref<192xf32, #tpu.memory_space<smem>>
    %501 = vector.broadcast %500 : f32 to vector<16x128xf32>
    %502 = arith.mulf %501, %144 : vector<16x128xf32>
    %503 = arith.addf %499, %502 : vector<16x128xf32>
    %c128 = arith.constant 128 : index
    %504 = memref.load %arg4[%c128] : memref<192xf32, #tpu.memory_space<smem>>
    %505 = vector.broadcast %504 : f32 to vector<16x128xf32>
    %506 = arith.mulf %505, %435 : vector<16x128xf32>
    %507 = arith.addf %503, %506 : vector<16x128xf32>
    %c150 = arith.constant 150 : index
    %508 = memref.load %arg4[%c150] : memref<192xf32, #tpu.memory_space<smem>>
    %509 = vector.broadcast %508 : f32 to vector<16x128xf32>
    %510 = arith.mulf %509, %423 : vector<16x128xf32>
    %511 = arith.addf %399, %510 : vector<16x128xf32>
    %c151 = arith.constant 151 : index
    %512 = memref.load %arg4[%c151] : memref<192xf32, #tpu.memory_space<smem>>
    %513 = vector.broadcast %512 : f32 to vector<16x128xf32>
    %514 = arith.mulf %513, %144 : vector<16x128xf32>
    %515 = arith.addf %511, %514 : vector<16x128xf32>
    %c152 = arith.constant 152 : index
    %516 = memref.load %arg4[%c152] : memref<192xf32, #tpu.memory_space<smem>>
    %517 = vector.broadcast %516 : f32 to vector<16x128xf32>
    %518 = arith.mulf %517, %435 : vector<16x128xf32>
    %519 = arith.addf %515, %518 : vector<16x128xf32>
    %c174 = arith.constant 174 : index
    %520 = memref.load %arg4[%c174] : memref<192xf32, #tpu.memory_space<smem>>
    %521 = vector.broadcast %520 : f32 to vector<16x128xf32>
    %522 = arith.mulf %521, %423 : vector<16x128xf32>
    %523 = arith.addf %411, %522 : vector<16x128xf32>
    %c175 = arith.constant 175 : index
    %524 = memref.load %arg4[%c175] : memref<192xf32, #tpu.memory_space<smem>>
    %525 = vector.broadcast %524 : f32 to vector<16x128xf32>
    %526 = arith.mulf %525, %144 : vector<16x128xf32>
    %527 = arith.addf %523, %526 : vector<16x128xf32>
    %c176 = arith.constant 176 : index
    %528 = memref.load %arg4[%c176] : memref<192xf32, #tpu.memory_space<smem>>
    %529 = vector.broadcast %528 : f32 to vector<16x128xf32>
    %530 = arith.mulf %529, %435 : vector<16x128xf32>
    %531 = arith.addf %527, %530 : vector<16x128xf32>
    %c1_i32_78 = arith.constant 1 : i32
    %532 = tpu.dynamic_rotate %146 by %c1_i32_78 dim 0 : vector<16x128xf32>, i32 -> vector<16x128xf32>
    %c-1_i32_79 = arith.constant -1 : i32
    %533 = vector.broadcast %c-1_i32_79 : i32 to vector<16x128xi32>
    %534 = arith.addi %155, %533 : vector<16x128xi32>
    %c0_i32_80 = arith.constant 0 : i32
    %535 = vector.broadcast %c0_i32_80 : i32 to vector<16x128xi32>
    %536 = arith.cmpi sge, %534, %535 : vector<16x128xi32>
    %c-1_i32_81 = arith.constant -1 : i32
    %537 = vector.broadcast %c-1_i32_81 : i32 to vector<16x128xi32>
    %538 = arith.addi %155, %537 : vector<16x128xi32>
    %c16_i32_82 = arith.constant 16 : i32
    %539 = vector.broadcast %c16_i32_82 : i32 to vector<16x128xi32>
    %540 = arith.cmpi slt, %538, %539 : vector<16x128xi32>
    %541 = arith.andi %536, %540 : vector<16x128xi1>
    %cst_83 = arith.constant 0.000000e+00 : f32
    %542 = vector.broadcast %cst_83 : f32 to vector<16x128xf32>
    %543 = arith.select %541, %532, %542 : vector<16x128xi1>, vector<16x128xf32>
    %c15_i32_84 = arith.constant 15 : i32
    %544 = tpu.dynamic_rotate %146 by %c15_i32_84 dim 0 : vector<16x128xf32>, i32 -> vector<16x128xf32>
    %c1_i32_85 = arith.constant 1 : i32
    %545 = vector.broadcast %c1_i32_85 : i32 to vector<16x128xi32>
    %546 = arith.addi %155, %545 : vector<16x128xi32>
    %c0_i32_86 = arith.constant 0 : i32
    %547 = vector.broadcast %c0_i32_86 : i32 to vector<16x128xi32>
    %548 = arith.cmpi sge, %546, %547 : vector<16x128xi32>
    %c1_i32_87 = arith.constant 1 : i32
    %549 = vector.broadcast %c1_i32_87 : i32 to vector<16x128xi32>
    %550 = arith.addi %155, %549 : vector<16x128xi32>
    %c16_i32_88 = arith.constant 16 : i32
    %551 = vector.broadcast %c16_i32_88 : i32 to vector<16x128xi32>
    %552 = arith.cmpi slt, %550, %551 : vector<16x128xi32>
    %553 = arith.andi %548, %552 : vector<16x128xi1>
    %cst_89 = arith.constant 0.000000e+00 : f32
    %554 = vector.broadcast %cst_89 : f32 to vector<16x128xf32>
    %555 = arith.select %553, %544, %554 : vector<16x128xi1>, vector<16x128xf32>
    %c9_90 = arith.constant 9 : index
    %556 = memref.load %arg4[%c9_90] : memref<192xf32, #tpu.memory_space<smem>>
    %557 = vector.broadcast %556 : f32 to vector<16x128xf32>
    %558 = arith.mulf %557, %543 : vector<16x128xf32>
    %559 = arith.addf %447, %558 : vector<16x128xf32>
    %c10_91 = arith.constant 10 : index
    %560 = memref.load %arg4[%c10_91] : memref<192xf32, #tpu.memory_space<smem>>
    %561 = vector.broadcast %560 : f32 to vector<16x128xf32>
    %562 = arith.mulf %561, %146 : vector<16x128xf32>
    %563 = arith.addf %559, %562 : vector<16x128xf32>
    %c11_92 = arith.constant 11 : index
    %564 = memref.load %arg4[%c11_92] : memref<192xf32, #tpu.memory_space<smem>>
    %565 = vector.broadcast %564 : f32 to vector<16x128xf32>
    %566 = arith.mulf %565, %555 : vector<16x128xf32>
    %567 = arith.addf %563, %566 : vector<16x128xf32>
    %c33 = arith.constant 33 : index
    %568 = memref.load %arg4[%c33] : memref<192xf32, #tpu.memory_space<smem>>
    %569 = vector.broadcast %568 : f32 to vector<16x128xf32>
    %570 = arith.mulf %569, %543 : vector<16x128xf32>
    %571 = arith.addf %459, %570 : vector<16x128xf32>
    %c34 = arith.constant 34 : index
    %572 = memref.load %arg4[%c34] : memref<192xf32, #tpu.memory_space<smem>>
    %573 = vector.broadcast %572 : f32 to vector<16x128xf32>
    %574 = arith.mulf %573, %146 : vector<16x128xf32>
    %575 = arith.addf %571, %574 : vector<16x128xf32>
    %c35 = arith.constant 35 : index
    %576 = memref.load %arg4[%c35] : memref<192xf32, #tpu.memory_space<smem>>
    %577 = vector.broadcast %576 : f32 to vector<16x128xf32>
    %578 = arith.mulf %577, %555 : vector<16x128xf32>
    %579 = arith.addf %575, %578 : vector<16x128xf32>
    %c57 = arith.constant 57 : index
    %580 = memref.load %arg4[%c57] : memref<192xf32, #tpu.memory_space<smem>>
    %581 = vector.broadcast %580 : f32 to vector<16x128xf32>
    %582 = arith.mulf %581, %543 : vector<16x128xf32>
    %583 = arith.addf %471, %582 : vector<16x128xf32>
    %c58 = arith.constant 58 : index
    %584 = memref.load %arg4[%c58] : memref<192xf32, #tpu.memory_space<smem>>
    %585 = vector.broadcast %584 : f32 to vector<16x128xf32>
    %586 = arith.mulf %585, %146 : vector<16x128xf32>
    %587 = arith.addf %583, %586 : vector<16x128xf32>
    %c59 = arith.constant 59 : index
    %588 = memref.load %arg4[%c59] : memref<192xf32, #tpu.memory_space<smem>>
    %589 = vector.broadcast %588 : f32 to vector<16x128xf32>
    %590 = arith.mulf %589, %555 : vector<16x128xf32>
    %591 = arith.addf %587, %590 : vector<16x128xf32>
    %c81 = arith.constant 81 : index
    %592 = memref.load %arg4[%c81] : memref<192xf32, #tpu.memory_space<smem>>
    %593 = vector.broadcast %592 : f32 to vector<16x128xf32>
    %594 = arith.mulf %593, %543 : vector<16x128xf32>
    %595 = arith.addf %483, %594 : vector<16x128xf32>
    %c82 = arith.constant 82 : index
    %596 = memref.load %arg4[%c82] : memref<192xf32, #tpu.memory_space<smem>>
    %597 = vector.broadcast %596 : f32 to vector<16x128xf32>
    %598 = arith.mulf %597, %146 : vector<16x128xf32>
    %599 = arith.addf %595, %598 : vector<16x128xf32>
    %c83 = arith.constant 83 : index
    %600 = memref.load %arg4[%c83] : memref<192xf32, #tpu.memory_space<smem>>
    %601 = vector.broadcast %600 : f32 to vector<16x128xf32>
    %602 = arith.mulf %601, %555 : vector<16x128xf32>
    %603 = arith.addf %599, %602 : vector<16x128xf32>
    %c105 = arith.constant 105 : index
    %604 = memref.load %arg4[%c105] : memref<192xf32, #tpu.memory_space<smem>>
    %605 = vector.broadcast %604 : f32 to vector<16x128xf32>
    %606 = arith.mulf %605, %543 : vector<16x128xf32>
    %607 = arith.addf %495, %606 : vector<16x128xf32>
    %c106 = arith.constant 106 : index
    %608 = memref.load %arg4[%c106] : memref<192xf32, #tpu.memory_space<smem>>
    %609 = vector.broadcast %608 : f32 to vector<16x128xf32>
    %610 = arith.mulf %609, %146 : vector<16x128xf32>
    %611 = arith.addf %607, %610 : vector<16x128xf32>
    %c107 = arith.constant 107 : index
    %612 = memref.load %arg4[%c107] : memref<192xf32, #tpu.memory_space<smem>>
    %613 = vector.broadcast %612 : f32 to vector<16x128xf32>
    %614 = arith.mulf %613, %555 : vector<16x128xf32>
    %615 = arith.addf %611, %614 : vector<16x128xf32>
    %c129 = arith.constant 129 : index
    %616 = memref.load %arg4[%c129] : memref<192xf32, #tpu.memory_space<smem>>
    %617 = vector.broadcast %616 : f32 to vector<16x128xf32>
    %618 = arith.mulf %617, %543 : vector<16x128xf32>
    %619 = arith.addf %507, %618 : vector<16x128xf32>
    %c130 = arith.constant 130 : index
    %620 = memref.load %arg4[%c130] : memref<192xf32, #tpu.memory_space<smem>>
    %621 = vector.broadcast %620 : f32 to vector<16x128xf32>
    %622 = arith.mulf %621, %146 : vector<16x128xf32>
    %623 = arith.addf %619, %622 : vector<16x128xf32>
    %c131 = arith.constant 131 : index
    %624 = memref.load %arg4[%c131] : memref<192xf32, #tpu.memory_space<smem>>
    %625 = vector.broadcast %624 : f32 to vector<16x128xf32>
    %626 = arith.mulf %625, %555 : vector<16x128xf32>
    %627 = arith.addf %623, %626 : vector<16x128xf32>
    %c153 = arith.constant 153 : index
    %628 = memref.load %arg4[%c153] : memref<192xf32, #tpu.memory_space<smem>>
    %629 = vector.broadcast %628 : f32 to vector<16x128xf32>
    %630 = arith.mulf %629, %543 : vector<16x128xf32>
    %631 = arith.addf %519, %630 : vector<16x128xf32>
    %c154 = arith.constant 154 : index
    %632 = memref.load %arg4[%c154] : memref<192xf32, #tpu.memory_space<smem>>
    %633 = vector.broadcast %632 : f32 to vector<16x128xf32>
    %634 = arith.mulf %633, %146 : vector<16x128xf32>
    %635 = arith.addf %631, %634 : vector<16x128xf32>
    %c155 = arith.constant 155 : index
    %636 = memref.load %arg4[%c155] : memref<192xf32, #tpu.memory_space<smem>>
    %637 = vector.broadcast %636 : f32 to vector<16x128xf32>
    %638 = arith.mulf %637, %555 : vector<16x128xf32>
    %639 = arith.addf %635, %638 : vector<16x128xf32>
    %c177 = arith.constant 177 : index
    %640 = memref.load %arg4[%c177] : memref<192xf32, #tpu.memory_space<smem>>
    %641 = vector.broadcast %640 : f32 to vector<16x128xf32>
    %642 = arith.mulf %641, %543 : vector<16x128xf32>
    %643 = arith.addf %531, %642 : vector<16x128xf32>
    %c178 = arith.constant 178 : index
    %644 = memref.load %arg4[%c178] : memref<192xf32, #tpu.memory_space<smem>>
    %645 = vector.broadcast %644 : f32 to vector<16x128xf32>
    %646 = arith.mulf %645, %146 : vector<16x128xf32>
    %647 = arith.addf %643, %646 : vector<16x128xf32>
    %c179 = arith.constant 179 : index
    %648 = memref.load %arg4[%c179] : memref<192xf32, #tpu.memory_space<smem>>
    %649 = vector.broadcast %648 : f32 to vector<16x128xf32>
    %650 = arith.mulf %649, %555 : vector<16x128xf32>
    %651 = arith.addf %647, %650 : vector<16x128xf32>
    %c1_i32_93 = arith.constant 1 : i32
    %652 = tpu.dynamic_rotate %148 by %c1_i32_93 dim 0 : vector<16x128xf32>, i32 -> vector<16x128xf32>
    %c-1_i32_94 = arith.constant -1 : i32
    %653 = vector.broadcast %c-1_i32_94 : i32 to vector<16x128xi32>
    %654 = arith.addi %155, %653 : vector<16x128xi32>
    %c0_i32_95 = arith.constant 0 : i32
    %655 = vector.broadcast %c0_i32_95 : i32 to vector<16x128xi32>
    %656 = arith.cmpi sge, %654, %655 : vector<16x128xi32>
    %c-1_i32_96 = arith.constant -1 : i32
    %657 = vector.broadcast %c-1_i32_96 : i32 to vector<16x128xi32>
    %658 = arith.addi %155, %657 : vector<16x128xi32>
    %c16_i32_97 = arith.constant 16 : i32
    %659 = vector.broadcast %c16_i32_97 : i32 to vector<16x128xi32>
    %660 = arith.cmpi slt, %658, %659 : vector<16x128xi32>
    %661 = arith.andi %656, %660 : vector<16x128xi1>
    %cst_98 = arith.constant 0.000000e+00 : f32
    %662 = vector.broadcast %cst_98 : f32 to vector<16x128xf32>
    %663 = arith.select %661, %652, %662 : vector<16x128xi1>, vector<16x128xf32>
    %c15_i32_99 = arith.constant 15 : i32
    %664 = tpu.dynamic_rotate %148 by %c15_i32_99 dim 0 : vector<16x128xf32>, i32 -> vector<16x128xf32>
    %c1_i32_100 = arith.constant 1 : i32
    %665 = vector.broadcast %c1_i32_100 : i32 to vector<16x128xi32>
    %666 = arith.addi %155, %665 : vector<16x128xi32>
    %c0_i32_101 = arith.constant 0 : i32
    %667 = vector.broadcast %c0_i32_101 : i32 to vector<16x128xi32>
    %668 = arith.cmpi sge, %666, %667 : vector<16x128xi32>
    %c1_i32_102 = arith.constant 1 : i32
    %669 = vector.broadcast %c1_i32_102 : i32 to vector<16x128xi32>
    %670 = arith.addi %155, %669 : vector<16x128xi32>
    %c16_i32_103 = arith.constant 16 : i32
    %671 = vector.broadcast %c16_i32_103 : i32 to vector<16x128xi32>
    %672 = arith.cmpi slt, %670, %671 : vector<16x128xi32>
    %673 = arith.andi %668, %672 : vector<16x128xi1>
    %cst_104 = arith.constant 0.000000e+00 : f32
    %674 = vector.broadcast %cst_104 : f32 to vector<16x128xf32>
    %675 = arith.select %673, %664, %674 : vector<16x128xi1>, vector<16x128xf32>
    %c12_105 = arith.constant 12 : index
    %676 = memref.load %arg4[%c12_105] : memref<192xf32, #tpu.memory_space<smem>>
    %677 = vector.broadcast %676 : f32 to vector<16x128xf32>
    %678 = arith.mulf %677, %663 : vector<16x128xf32>
    %679 = arith.addf %567, %678 : vector<16x128xf32>
    %c13_106 = arith.constant 13 : index
    %680 = memref.load %arg4[%c13_106] : memref<192xf32, #tpu.memory_space<smem>>
    %681 = vector.broadcast %680 : f32 to vector<16x128xf32>
    %682 = arith.mulf %681, %148 : vector<16x128xf32>
    %683 = arith.addf %679, %682 : vector<16x128xf32>
    %c14_107 = arith.constant 14 : index
    %684 = memref.load %arg4[%c14_107] : memref<192xf32, #tpu.memory_space<smem>>
    %685 = vector.broadcast %684 : f32 to vector<16x128xf32>
    %686 = arith.mulf %685, %675 : vector<16x128xf32>
    %687 = arith.addf %683, %686 : vector<16x128xf32>
    %c36 = arith.constant 36 : index
    %688 = memref.load %arg4[%c36] : memref<192xf32, #tpu.memory_space<smem>>
    %689 = vector.broadcast %688 : f32 to vector<16x128xf32>
    %690 = arith.mulf %689, %663 : vector<16x128xf32>
    %691 = arith.addf %579, %690 : vector<16x128xf32>
    %c37 = arith.constant 37 : index
    %692 = memref.load %arg4[%c37] : memref<192xf32, #tpu.memory_space<smem>>
    %693 = vector.broadcast %692 : f32 to vector<16x128xf32>
    %694 = arith.mulf %693, %148 : vector<16x128xf32>
    %695 = arith.addf %691, %694 : vector<16x128xf32>
    %c38 = arith.constant 38 : index
    %696 = memref.load %arg4[%c38] : memref<192xf32, #tpu.memory_space<smem>>
    %697 = vector.broadcast %696 : f32 to vector<16x128xf32>
    %698 = arith.mulf %697, %675 : vector<16x128xf32>
    %699 = arith.addf %695, %698 : vector<16x128xf32>
    %c60 = arith.constant 60 : index
    %700 = memref.load %arg4[%c60] : memref<192xf32, #tpu.memory_space<smem>>
    %701 = vector.broadcast %700 : f32 to vector<16x128xf32>
    %702 = arith.mulf %701, %663 : vector<16x128xf32>
    %703 = arith.addf %591, %702 : vector<16x128xf32>
    %c61 = arith.constant 61 : index
    %704 = memref.load %arg4[%c61] : memref<192xf32, #tpu.memory_space<smem>>
    %705 = vector.broadcast %704 : f32 to vector<16x128xf32>
    %706 = arith.mulf %705, %148 : vector<16x128xf32>
    %707 = arith.addf %703, %706 : vector<16x128xf32>
    %c62 = arith.constant 62 : index
    %708 = memref.load %arg4[%c62] : memref<192xf32, #tpu.memory_space<smem>>
    %709 = vector.broadcast %708 : f32 to vector<16x128xf32>
    %710 = arith.mulf %709, %675 : vector<16x128xf32>
    %711 = arith.addf %707, %710 : vector<16x128xf32>
    %c84 = arith.constant 84 : index
    %712 = memref.load %arg4[%c84] : memref<192xf32, #tpu.memory_space<smem>>
    %713 = vector.broadcast %712 : f32 to vector<16x128xf32>
    %714 = arith.mulf %713, %663 : vector<16x128xf32>
    %715 = arith.addf %603, %714 : vector<16x128xf32>
    %c85 = arith.constant 85 : index
    %716 = memref.load %arg4[%c85] : memref<192xf32, #tpu.memory_space<smem>>
    %717 = vector.broadcast %716 : f32 to vector<16x128xf32>
    %718 = arith.mulf %717, %148 : vector<16x128xf32>
    %719 = arith.addf %715, %718 : vector<16x128xf32>
    %c86 = arith.constant 86 : index
    %720 = memref.load %arg4[%c86] : memref<192xf32, #tpu.memory_space<smem>>
    %721 = vector.broadcast %720 : f32 to vector<16x128xf32>
    %722 = arith.mulf %721, %675 : vector<16x128xf32>
    %723 = arith.addf %719, %722 : vector<16x128xf32>
    %c108 = arith.constant 108 : index
    %724 = memref.load %arg4[%c108] : memref<192xf32, #tpu.memory_space<smem>>
    %725 = vector.broadcast %724 : f32 to vector<16x128xf32>
    %726 = arith.mulf %725, %663 : vector<16x128xf32>
    %727 = arith.addf %615, %726 : vector<16x128xf32>
    %c109 = arith.constant 109 : index
    %728 = memref.load %arg4[%c109] : memref<192xf32, #tpu.memory_space<smem>>
    %729 = vector.broadcast %728 : f32 to vector<16x128xf32>
    %730 = arith.mulf %729, %148 : vector<16x128xf32>
    %731 = arith.addf %727, %730 : vector<16x128xf32>
    %c110 = arith.constant 110 : index
    %732 = memref.load %arg4[%c110] : memref<192xf32, #tpu.memory_space<smem>>
    %733 = vector.broadcast %732 : f32 to vector<16x128xf32>
    %734 = arith.mulf %733, %675 : vector<16x128xf32>
    %735 = arith.addf %731, %734 : vector<16x128xf32>
    %c132 = arith.constant 132 : index
    %736 = memref.load %arg4[%c132] : memref<192xf32, #tpu.memory_space<smem>>
    %737 = vector.broadcast %736 : f32 to vector<16x128xf32>
    %738 = arith.mulf %737, %663 : vector<16x128xf32>
    %739 = arith.addf %627, %738 : vector<16x128xf32>
    %c133 = arith.constant 133 : index
    %740 = memref.load %arg4[%c133] : memref<192xf32, #tpu.memory_space<smem>>
    %741 = vector.broadcast %740 : f32 to vector<16x128xf32>
    %742 = arith.mulf %741, %148 : vector<16x128xf32>
    %743 = arith.addf %739, %742 : vector<16x128xf32>
    %c134 = arith.constant 134 : index
    %744 = memref.load %arg4[%c134] : memref<192xf32, #tpu.memory_space<smem>>
    %745 = vector.broadcast %744 : f32 to vector<16x128xf32>
    %746 = arith.mulf %745, %675 : vector<16x128xf32>
    %747 = arith.addf %743, %746 : vector<16x128xf32>
    %c156 = arith.constant 156 : index
    %748 = memref.load %arg4[%c156] : memref<192xf32, #tpu.memory_space<smem>>
    %749 = vector.broadcast %748 : f32 to vector<16x128xf32>
    %750 = arith.mulf %749, %663 : vector<16x128xf32>
    %751 = arith.addf %639, %750 : vector<16x128xf32>
    %c157 = arith.constant 157 : index
    %752 = memref.load %arg4[%c157] : memref<192xf32, #tpu.memory_space<smem>>
    %753 = vector.broadcast %752 : f32 to vector<16x128xf32>
    %754 = arith.mulf %753, %148 : vector<16x128xf32>
    %755 = arith.addf %751, %754 : vector<16x128xf32>
    %c158 = arith.constant 158 : index
    %756 = memref.load %arg4[%c158] : memref<192xf32, #tpu.memory_space<smem>>
    %757 = vector.broadcast %756 : f32 to vector<16x128xf32>
    %758 = arith.mulf %757, %675 : vector<16x128xf32>
    %759 = arith.addf %755, %758 : vector<16x128xf32>
    %c180 = arith.constant 180 : index
    %760 = memref.load %arg4[%c180] : memref<192xf32, #tpu.memory_space<smem>>
    %761 = vector.broadcast %760 : f32 to vector<16x128xf32>
    %762 = arith.mulf %761, %663 : vector<16x128xf32>
    %763 = arith.addf %651, %762 : vector<16x128xf32>
    %c181 = arith.constant 181 : index
    %764 = memref.load %arg4[%c181] : memref<192xf32, #tpu.memory_space<smem>>
    %765 = vector.broadcast %764 : f32 to vector<16x128xf32>
    %766 = arith.mulf %765, %148 : vector<16x128xf32>
    %767 = arith.addf %763, %766 : vector<16x128xf32>
    %c182 = arith.constant 182 : index
    %768 = memref.load %arg4[%c182] : memref<192xf32, #tpu.memory_space<smem>>
    %769 = vector.broadcast %768 : f32 to vector<16x128xf32>
    %770 = arith.mulf %769, %675 : vector<16x128xf32>
    %771 = arith.addf %767, %770 : vector<16x128xf32>
    %c1_i32_108 = arith.constant 1 : i32
    %772 = tpu.dynamic_rotate %150 by %c1_i32_108 dim 0 : vector<16x128xf32>, i32 -> vector<16x128xf32>
    %c-1_i32_109 = arith.constant -1 : i32
    %773 = vector.broadcast %c-1_i32_109 : i32 to vector<16x128xi32>
    %774 = arith.addi %155, %773 : vector<16x128xi32>
    %c0_i32_110 = arith.constant 0 : i32
    %775 = vector.broadcast %c0_i32_110 : i32 to vector<16x128xi32>
    %776 = arith.cmpi sge, %774, %775 : vector<16x128xi32>
    %c-1_i32_111 = arith.constant -1 : i32
    %777 = vector.broadcast %c-1_i32_111 : i32 to vector<16x128xi32>
    %778 = arith.addi %155, %777 : vector<16x128xi32>
    %c16_i32_112 = arith.constant 16 : i32
    %779 = vector.broadcast %c16_i32_112 : i32 to vector<16x128xi32>
    %780 = arith.cmpi slt, %778, %779 : vector<16x128xi32>
    %781 = arith.andi %776, %780 : vector<16x128xi1>
    %cst_113 = arith.constant 0.000000e+00 : f32
    %782 = vector.broadcast %cst_113 : f32 to vector<16x128xf32>
    %783 = arith.select %781, %772, %782 : vector<16x128xi1>, vector<16x128xf32>
    %c15_i32_114 = arith.constant 15 : i32
    %784 = tpu.dynamic_rotate %150 by %c15_i32_114 dim 0 : vector<16x128xf32>, i32 -> vector<16x128xf32>
    %c1_i32_115 = arith.constant 1 : i32
    %785 = vector.broadcast %c1_i32_115 : i32 to vector<16x128xi32>
    %786 = arith.addi %155, %785 : vector<16x128xi32>
    %c0_i32_116 = arith.constant 0 : i32
    %787 = vector.broadcast %c0_i32_116 : i32 to vector<16x128xi32>
    %788 = arith.cmpi sge, %786, %787 : vector<16x128xi32>
    %c1_i32_117 = arith.constant 1 : i32
    %789 = vector.broadcast %c1_i32_117 : i32 to vector<16x128xi32>
    %790 = arith.addi %155, %789 : vector<16x128xi32>
    %c16_i32_118 = arith.constant 16 : i32
    %791 = vector.broadcast %c16_i32_118 : i32 to vector<16x128xi32>
    %792 = arith.cmpi slt, %790, %791 : vector<16x128xi32>
    %793 = arith.andi %788, %792 : vector<16x128xi1>
    %cst_119 = arith.constant 0.000000e+00 : f32
    %794 = vector.broadcast %cst_119 : f32 to vector<16x128xf32>
    %795 = arith.select %793, %784, %794 : vector<16x128xi1>, vector<16x128xf32>
    %c15_120 = arith.constant 15 : index
    %796 = memref.load %arg4[%c15_120] : memref<192xf32, #tpu.memory_space<smem>>
    %797 = vector.broadcast %796 : f32 to vector<16x128xf32>
    %798 = arith.mulf %797, %783 : vector<16x128xf32>
    %799 = arith.addf %687, %798 : vector<16x128xf32>
    %c16_121 = arith.constant 16 : index
    %800 = memref.load %arg4[%c16_121] : memref<192xf32, #tpu.memory_space<smem>>
    %801 = vector.broadcast %800 : f32 to vector<16x128xf32>
    %802 = arith.mulf %801, %150 : vector<16x128xf32>
    %803 = arith.addf %799, %802 : vector<16x128xf32>
    %c17_122 = arith.constant 17 : index
    %804 = memref.load %arg4[%c17_122] : memref<192xf32, #tpu.memory_space<smem>>
    %805 = vector.broadcast %804 : f32 to vector<16x128xf32>
    %806 = arith.mulf %805, %795 : vector<16x128xf32>
    %807 = arith.addf %803, %806 : vector<16x128xf32>
    %c39 = arith.constant 39 : index
    %808 = memref.load %arg4[%c39] : memref<192xf32, #tpu.memory_space<smem>>
    %809 = vector.broadcast %808 : f32 to vector<16x128xf32>
    %810 = arith.mulf %809, %783 : vector<16x128xf32>
    %811 = arith.addf %699, %810 : vector<16x128xf32>
    %c40 = arith.constant 40 : index
    %812 = memref.load %arg4[%c40] : memref<192xf32, #tpu.memory_space<smem>>
    %813 = vector.broadcast %812 : f32 to vector<16x128xf32>
    %814 = arith.mulf %813, %150 : vector<16x128xf32>
    %815 = arith.addf %811, %814 : vector<16x128xf32>
    %c41 = arith.constant 41 : index
    %816 = memref.load %arg4[%c41] : memref<192xf32, #tpu.memory_space<smem>>
    %817 = vector.broadcast %816 : f32 to vector<16x128xf32>
    %818 = arith.mulf %817, %795 : vector<16x128xf32>
    %819 = arith.addf %815, %818 : vector<16x128xf32>
    %c63 = arith.constant 63 : index
    %820 = memref.load %arg4[%c63] : memref<192xf32, #tpu.memory_space<smem>>
    %821 = vector.broadcast %820 : f32 to vector<16x128xf32>
    %822 = arith.mulf %821, %783 : vector<16x128xf32>
    %823 = arith.addf %711, %822 : vector<16x128xf32>
    %c64 = arith.constant 64 : index
    %824 = memref.load %arg4[%c64] : memref<192xf32, #tpu.memory_space<smem>>
    %825 = vector.broadcast %824 : f32 to vector<16x128xf32>
    %826 = arith.mulf %825, %150 : vector<16x128xf32>
    %827 = arith.addf %823, %826 : vector<16x128xf32>
    %c65 = arith.constant 65 : index
    %828 = memref.load %arg4[%c65] : memref<192xf32, #tpu.memory_space<smem>>
    %829 = vector.broadcast %828 : f32 to vector<16x128xf32>
    %830 = arith.mulf %829, %795 : vector<16x128xf32>
    %831 = arith.addf %827, %830 : vector<16x128xf32>
    %c87 = arith.constant 87 : index
    %832 = memref.load %arg4[%c87] : memref<192xf32, #tpu.memory_space<smem>>
    %833 = vector.broadcast %832 : f32 to vector<16x128xf32>
    %834 = arith.mulf %833, %783 : vector<16x128xf32>
    %835 = arith.addf %723, %834 : vector<16x128xf32>
    %c88 = arith.constant 88 : index
    %836 = memref.load %arg4[%c88] : memref<192xf32, #tpu.memory_space<smem>>
    %837 = vector.broadcast %836 : f32 to vector<16x128xf32>
    %838 = arith.mulf %837, %150 : vector<16x128xf32>
    %839 = arith.addf %835, %838 : vector<16x128xf32>
    %c89 = arith.constant 89 : index
    %840 = memref.load %arg4[%c89] : memref<192xf32, #tpu.memory_space<smem>>
    %841 = vector.broadcast %840 : f32 to vector<16x128xf32>
    %842 = arith.mulf %841, %795 : vector<16x128xf32>
    %843 = arith.addf %839, %842 : vector<16x128xf32>
    %c111 = arith.constant 111 : index
    %844 = memref.load %arg4[%c111] : memref<192xf32, #tpu.memory_space<smem>>
    %845 = vector.broadcast %844 : f32 to vector<16x128xf32>
    %846 = arith.mulf %845, %783 : vector<16x128xf32>
    %847 = arith.addf %735, %846 : vector<16x128xf32>
    %c112 = arith.constant 112 : index
    %848 = memref.load %arg4[%c112] : memref<192xf32, #tpu.memory_space<smem>>
    %849 = vector.broadcast %848 : f32 to vector<16x128xf32>
    %850 = arith.mulf %849, %150 : vector<16x128xf32>
    %851 = arith.addf %847, %850 : vector<16x128xf32>
    %c113 = arith.constant 113 : index
    %852 = memref.load %arg4[%c113] : memref<192xf32, #tpu.memory_space<smem>>
    %853 = vector.broadcast %852 : f32 to vector<16x128xf32>
    %854 = arith.mulf %853, %795 : vector<16x128xf32>
    %855 = arith.addf %851, %854 : vector<16x128xf32>
    %c135 = arith.constant 135 : index
    %856 = memref.load %arg4[%c135] : memref<192xf32, #tpu.memory_space<smem>>
    %857 = vector.broadcast %856 : f32 to vector<16x128xf32>
    %858 = arith.mulf %857, %783 : vector<16x128xf32>
    %859 = arith.addf %747, %858 : vector<16x128xf32>
    %c136 = arith.constant 136 : index
    %860 = memref.load %arg4[%c136] : memref<192xf32, #tpu.memory_space<smem>>
    %861 = vector.broadcast %860 : f32 to vector<16x128xf32>
    %862 = arith.mulf %861, %150 : vector<16x128xf32>
    %863 = arith.addf %859, %862 : vector<16x128xf32>
    %c137 = arith.constant 137 : index
    %864 = memref.load %arg4[%c137] : memref<192xf32, #tpu.memory_space<smem>>
    %865 = vector.broadcast %864 : f32 to vector<16x128xf32>
    %866 = arith.mulf %865, %795 : vector<16x128xf32>
    %867 = arith.addf %863, %866 : vector<16x128xf32>
    %c159 = arith.constant 159 : index
    %868 = memref.load %arg4[%c159] : memref<192xf32, #tpu.memory_space<smem>>
    %869 = vector.broadcast %868 : f32 to vector<16x128xf32>
    %870 = arith.mulf %869, %783 : vector<16x128xf32>
    %871 = arith.addf %759, %870 : vector<16x128xf32>
    %c160 = arith.constant 160 : index
    %872 = memref.load %arg4[%c160] : memref<192xf32, #tpu.memory_space<smem>>
    %873 = vector.broadcast %872 : f32 to vector<16x128xf32>
    %874 = arith.mulf %873, %150 : vector<16x128xf32>
    %875 = arith.addf %871, %874 : vector<16x128xf32>
    %c161 = arith.constant 161 : index
    %876 = memref.load %arg4[%c161] : memref<192xf32, #tpu.memory_space<smem>>
    %877 = vector.broadcast %876 : f32 to vector<16x128xf32>
    %878 = arith.mulf %877, %795 : vector<16x128xf32>
    %879 = arith.addf %875, %878 : vector<16x128xf32>
    %c183 = arith.constant 183 : index
    %880 = memref.load %arg4[%c183] : memref<192xf32, #tpu.memory_space<smem>>
    %881 = vector.broadcast %880 : f32 to vector<16x128xf32>
    %882 = arith.mulf %881, %783 : vector<16x128xf32>
    %883 = arith.addf %771, %882 : vector<16x128xf32>
    %c184 = arith.constant 184 : index
    %884 = memref.load %arg4[%c184] : memref<192xf32, #tpu.memory_space<smem>>
    %885 = vector.broadcast %884 : f32 to vector<16x128xf32>
    %886 = arith.mulf %885, %150 : vector<16x128xf32>
    %887 = arith.addf %883, %886 : vector<16x128xf32>
    %c185 = arith.constant 185 : index
    %888 = memref.load %arg4[%c185] : memref<192xf32, #tpu.memory_space<smem>>
    %889 = vector.broadcast %888 : f32 to vector<16x128xf32>
    %890 = arith.mulf %889, %795 : vector<16x128xf32>
    %891 = arith.addf %887, %890 : vector<16x128xf32>
    %c1_i32_123 = arith.constant 1 : i32
    %892 = tpu.dynamic_rotate %152 by %c1_i32_123 dim 0 : vector<16x128xf32>, i32 -> vector<16x128xf32>
    %c-1_i32_124 = arith.constant -1 : i32
    %893 = vector.broadcast %c-1_i32_124 : i32 to vector<16x128xi32>
    %894 = arith.addi %155, %893 : vector<16x128xi32>
    %c0_i32_125 = arith.constant 0 : i32
    %895 = vector.broadcast %c0_i32_125 : i32 to vector<16x128xi32>
    %896 = arith.cmpi sge, %894, %895 : vector<16x128xi32>
    %c-1_i32_126 = arith.constant -1 : i32
    %897 = vector.broadcast %c-1_i32_126 : i32 to vector<16x128xi32>
    %898 = arith.addi %155, %897 : vector<16x128xi32>
    %c16_i32_127 = arith.constant 16 : i32
    %899 = vector.broadcast %c16_i32_127 : i32 to vector<16x128xi32>
    %900 = arith.cmpi slt, %898, %899 : vector<16x128xi32>
    %901 = arith.andi %896, %900 : vector<16x128xi1>
    %cst_128 = arith.constant 0.000000e+00 : f32
    %902 = vector.broadcast %cst_128 : f32 to vector<16x128xf32>
    %903 = arith.select %901, %892, %902 : vector<16x128xi1>, vector<16x128xf32>
    %c15_i32_129 = arith.constant 15 : i32
    %904 = tpu.dynamic_rotate %152 by %c15_i32_129 dim 0 : vector<16x128xf32>, i32 -> vector<16x128xf32>
    %c1_i32_130 = arith.constant 1 : i32
    %905 = vector.broadcast %c1_i32_130 : i32 to vector<16x128xi32>
    %906 = arith.addi %155, %905 : vector<16x128xi32>
    %c0_i32_131 = arith.constant 0 : i32
    %907 = vector.broadcast %c0_i32_131 : i32 to vector<16x128xi32>
    %908 = arith.cmpi sge, %906, %907 : vector<16x128xi32>
    %c1_i32_132 = arith.constant 1 : i32
    %909 = vector.broadcast %c1_i32_132 : i32 to vector<16x128xi32>
    %910 = arith.addi %155, %909 : vector<16x128xi32>
    %c16_i32_133 = arith.constant 16 : i32
    %911 = vector.broadcast %c16_i32_133 : i32 to vector<16x128xi32>
    %912 = arith.cmpi slt, %910, %911 : vector<16x128xi32>
    %913 = arith.andi %908, %912 : vector<16x128xi1>
    %cst_134 = arith.constant 0.000000e+00 : f32
    %914 = vector.broadcast %cst_134 : f32 to vector<16x128xf32>
    %915 = arith.select %913, %904, %914 : vector<16x128xi1>, vector<16x128xf32>
    %c18_135 = arith.constant 18 : index
    %916 = memref.load %arg4[%c18_135] : memref<192xf32, #tpu.memory_space<smem>>
    %917 = vector.broadcast %916 : f32 to vector<16x128xf32>
    %918 = arith.mulf %917, %903 : vector<16x128xf32>
    %919 = arith.addf %807, %918 : vector<16x128xf32>
    %c19_136 = arith.constant 19 : index
    %920 = memref.load %arg4[%c19_136] : memref<192xf32, #tpu.memory_space<smem>>
    %921 = vector.broadcast %920 : f32 to vector<16x128xf32>
    %922 = arith.mulf %921, %152 : vector<16x128xf32>
    %923 = arith.addf %919, %922 : vector<16x128xf32>
    %c20_137 = arith.constant 20 : index
    %924 = memref.load %arg4[%c20_137] : memref<192xf32, #tpu.memory_space<smem>>
    %925 = vector.broadcast %924 : f32 to vector<16x128xf32>
    %926 = arith.mulf %925, %915 : vector<16x128xf32>
    %927 = arith.addf %923, %926 : vector<16x128xf32>
    %c42 = arith.constant 42 : index
    %928 = memref.load %arg4[%c42] : memref<192xf32, #tpu.memory_space<smem>>
    %929 = vector.broadcast %928 : f32 to vector<16x128xf32>
    %930 = arith.mulf %929, %903 : vector<16x128xf32>
    %931 = arith.addf %819, %930 : vector<16x128xf32>
    %c43 = arith.constant 43 : index
    %932 = memref.load %arg4[%c43] : memref<192xf32, #tpu.memory_space<smem>>
    %933 = vector.broadcast %932 : f32 to vector<16x128xf32>
    %934 = arith.mulf %933, %152 : vector<16x128xf32>
    %935 = arith.addf %931, %934 : vector<16x128xf32>
    %c44 = arith.constant 44 : index
    %936 = memref.load %arg4[%c44] : memref<192xf32, #tpu.memory_space<smem>>
    %937 = vector.broadcast %936 : f32 to vector<16x128xf32>
    %938 = arith.mulf %937, %915 : vector<16x128xf32>
    %939 = arith.addf %935, %938 : vector<16x128xf32>
    %c66 = arith.constant 66 : index
    %940 = memref.load %arg4[%c66] : memref<192xf32, #tpu.memory_space<smem>>
    %941 = vector.broadcast %940 : f32 to vector<16x128xf32>
    %942 = arith.mulf %941, %903 : vector<16x128xf32>
    %943 = arith.addf %831, %942 : vector<16x128xf32>
    %c67 = arith.constant 67 : index
    %944 = memref.load %arg4[%c67] : memref<192xf32, #tpu.memory_space<smem>>
    %945 = vector.broadcast %944 : f32 to vector<16x128xf32>
    %946 = arith.mulf %945, %152 : vector<16x128xf32>
    %947 = arith.addf %943, %946 : vector<16x128xf32>
    %c68 = arith.constant 68 : index
    %948 = memref.load %arg4[%c68] : memref<192xf32, #tpu.memory_space<smem>>
    %949 = vector.broadcast %948 : f32 to vector<16x128xf32>
    %950 = arith.mulf %949, %915 : vector<16x128xf32>
    %951 = arith.addf %947, %950 : vector<16x128xf32>
    %c90 = arith.constant 90 : index
    %952 = memref.load %arg4[%c90] : memref<192xf32, #tpu.memory_space<smem>>
    %953 = vector.broadcast %952 : f32 to vector<16x128xf32>
    %954 = arith.mulf %953, %903 : vector<16x128xf32>
    %955 = arith.addf %843, %954 : vector<16x128xf32>
    %c91 = arith.constant 91 : index
    %956 = memref.load %arg4[%c91] : memref<192xf32, #tpu.memory_space<smem>>
    %957 = vector.broadcast %956 : f32 to vector<16x128xf32>
    %958 = arith.mulf %957, %152 : vector<16x128xf32>
    %959 = arith.addf %955, %958 : vector<16x128xf32>
    %c92 = arith.constant 92 : index
    %960 = memref.load %arg4[%c92] : memref<192xf32, #tpu.memory_space<smem>>
    %961 = vector.broadcast %960 : f32 to vector<16x128xf32>
    %962 = arith.mulf %961, %915 : vector<16x128xf32>
    %963 = arith.addf %959, %962 : vector<16x128xf32>
    %c114 = arith.constant 114 : index
    %964 = memref.load %arg4[%c114] : memref<192xf32, #tpu.memory_space<smem>>
    %965 = vector.broadcast %964 : f32 to vector<16x128xf32>
    %966 = arith.mulf %965, %903 : vector<16x128xf32>
    %967 = arith.addf %855, %966 : vector<16x128xf32>
    %c115 = arith.constant 115 : index
    %968 = memref.load %arg4[%c115] : memref<192xf32, #tpu.memory_space<smem>>
    %969 = vector.broadcast %968 : f32 to vector<16x128xf32>
    %970 = arith.mulf %969, %152 : vector<16x128xf32>
    %971 = arith.addf %967, %970 : vector<16x128xf32>
    %c116 = arith.constant 116 : index
    %972 = memref.load %arg4[%c116] : memref<192xf32, #tpu.memory_space<smem>>
    %973 = vector.broadcast %972 : f32 to vector<16x128xf32>
    %974 = arith.mulf %973, %915 : vector<16x128xf32>
    %975 = arith.addf %971, %974 : vector<16x128xf32>
    %c138 = arith.constant 138 : index
    %976 = memref.load %arg4[%c138] : memref<192xf32, #tpu.memory_space<smem>>
    %977 = vector.broadcast %976 : f32 to vector<16x128xf32>
    %978 = arith.mulf %977, %903 : vector<16x128xf32>
    %979 = arith.addf %867, %978 : vector<16x128xf32>
    %c139 = arith.constant 139 : index
    %980 = memref.load %arg4[%c139] : memref<192xf32, #tpu.memory_space<smem>>
    %981 = vector.broadcast %980 : f32 to vector<16x128xf32>
    %982 = arith.mulf %981, %152 : vector<16x128xf32>
    %983 = arith.addf %979, %982 : vector<16x128xf32>
    %c140 = arith.constant 140 : index
    %984 = memref.load %arg4[%c140] : memref<192xf32, #tpu.memory_space<smem>>
    %985 = vector.broadcast %984 : f32 to vector<16x128xf32>
    %986 = arith.mulf %985, %915 : vector<16x128xf32>
    %987 = arith.addf %983, %986 : vector<16x128xf32>
    %c162 = arith.constant 162 : index
    %988 = memref.load %arg4[%c162] : memref<192xf32, #tpu.memory_space<smem>>
    %989 = vector.broadcast %988 : f32 to vector<16x128xf32>
    %990 = arith.mulf %989, %903 : vector<16x128xf32>
    %991 = arith.addf %879, %990 : vector<16x128xf32>
    %c163 = arith.constant 163 : index
    %992 = memref.load %arg4[%c163] : memref<192xf32, #tpu.memory_space<smem>>
    %993 = vector.broadcast %992 : f32 to vector<16x128xf32>
    %994 = arith.mulf %993, %152 : vector<16x128xf32>
    %995 = arith.addf %991, %994 : vector<16x128xf32>
    %c164 = arith.constant 164 : index
    %996 = memref.load %arg4[%c164] : memref<192xf32, #tpu.memory_space<smem>>
    %997 = vector.broadcast %996 : f32 to vector<16x128xf32>
    %998 = arith.mulf %997, %915 : vector<16x128xf32>
    %999 = arith.addf %995, %998 : vector<16x128xf32>
    %c186 = arith.constant 186 : index
    %1000 = memref.load %arg4[%c186] : memref<192xf32, #tpu.memory_space<smem>>
    %1001 = vector.broadcast %1000 : f32 to vector<16x128xf32>
    %1002 = arith.mulf %1001, %903 : vector<16x128xf32>
    %1003 = arith.addf %891, %1002 : vector<16x128xf32>
    %c187 = arith.constant 187 : index
    %1004 = memref.load %arg4[%c187] : memref<192xf32, #tpu.memory_space<smem>>
    %1005 = vector.broadcast %1004 : f32 to vector<16x128xf32>
    %1006 = arith.mulf %1005, %152 : vector<16x128xf32>
    %1007 = arith.addf %1003, %1006 : vector<16x128xf32>
    %c188 = arith.constant 188 : index
    %1008 = memref.load %arg4[%c188] : memref<192xf32, #tpu.memory_space<smem>>
    %1009 = vector.broadcast %1008 : f32 to vector<16x128xf32>
    %1010 = arith.mulf %1009, %915 : vector<16x128xf32>
    %1011 = arith.addf %1007, %1010 : vector<16x128xf32>
    %c1_i32_138 = arith.constant 1 : i32
    %1012 = tpu.dynamic_rotate %154 by %c1_i32_138 dim 0 : vector<16x128xf32>, i32 -> vector<16x128xf32>
    %c-1_i32_139 = arith.constant -1 : i32
    %1013 = vector.broadcast %c-1_i32_139 : i32 to vector<16x128xi32>
    %1014 = arith.addi %155, %1013 : vector<16x128xi32>
    %c0_i32_140 = arith.constant 0 : i32
    %1015 = vector.broadcast %c0_i32_140 : i32 to vector<16x128xi32>
    %1016 = arith.cmpi sge, %1014, %1015 : vector<16x128xi32>
    %c-1_i32_141 = arith.constant -1 : i32
    %1017 = vector.broadcast %c-1_i32_141 : i32 to vector<16x128xi32>
    %1018 = arith.addi %155, %1017 : vector<16x128xi32>
    %c16_i32_142 = arith.constant 16 : i32
    %1019 = vector.broadcast %c16_i32_142 : i32 to vector<16x128xi32>
    %1020 = arith.cmpi slt, %1018, %1019 : vector<16x128xi32>
    %1021 = arith.andi %1016, %1020 : vector<16x128xi1>
    %cst_143 = arith.constant 0.000000e+00 : f32
    %1022 = vector.broadcast %cst_143 : f32 to vector<16x128xf32>
    %1023 = arith.select %1021, %1012, %1022 : vector<16x128xi1>, vector<16x128xf32>
    %c15_i32_144 = arith.constant 15 : i32
    %1024 = tpu.dynamic_rotate %154 by %c15_i32_144 dim 0 : vector<16x128xf32>, i32 -> vector<16x128xf32>
    %c1_i32_145 = arith.constant 1 : i32
    %1025 = vector.broadcast %c1_i32_145 : i32 to vector<16x128xi32>
    %1026 = arith.addi %155, %1025 : vector<16x128xi32>
    %c0_i32_146 = arith.constant 0 : i32
    %1027 = vector.broadcast %c0_i32_146 : i32 to vector<16x128xi32>
    %1028 = arith.cmpi sge, %1026, %1027 : vector<16x128xi32>
    %c1_i32_147 = arith.constant 1 : i32
    %1029 = vector.broadcast %c1_i32_147 : i32 to vector<16x128xi32>
    %1030 = arith.addi %155, %1029 : vector<16x128xi32>
    %c16_i32_148 = arith.constant 16 : i32
    %1031 = vector.broadcast %c16_i32_148 : i32 to vector<16x128xi32>
    %1032 = arith.cmpi slt, %1030, %1031 : vector<16x128xi32>
    %1033 = arith.andi %1028, %1032 : vector<16x128xi1>
    %cst_149 = arith.constant 0.000000e+00 : f32
    %1034 = vector.broadcast %cst_149 : f32 to vector<16x128xf32>
    %1035 = arith.select %1033, %1024, %1034 : vector<16x128xi1>, vector<16x128xf32>
    %c21_150 = arith.constant 21 : index
    %1036 = memref.load %arg4[%c21_150] : memref<192xf32, #tpu.memory_space<smem>>
    %1037 = vector.broadcast %1036 : f32 to vector<16x128xf32>
    %1038 = arith.mulf %1037, %1023 : vector<16x128xf32>
    %1039 = arith.addf %927, %1038 : vector<16x128xf32>
    %c22_151 = arith.constant 22 : index
    %1040 = memref.load %arg4[%c22_151] : memref<192xf32, #tpu.memory_space<smem>>
    %1041 = vector.broadcast %1040 : f32 to vector<16x128xf32>
    %1042 = arith.mulf %1041, %154 : vector<16x128xf32>
    %1043 = arith.addf %1039, %1042 : vector<16x128xf32>
    %c23_152 = arith.constant 23 : index
    %1044 = memref.load %arg4[%c23_152] : memref<192xf32, #tpu.memory_space<smem>>
    %1045 = vector.broadcast %1044 : f32 to vector<16x128xf32>
    %1046 = arith.mulf %1045, %1035 : vector<16x128xf32>
    %1047 = arith.addf %1043, %1046 : vector<16x128xf32>
    %c45 = arith.constant 45 : index
    %1048 = memref.load %arg4[%c45] : memref<192xf32, #tpu.memory_space<smem>>
    %1049 = vector.broadcast %1048 : f32 to vector<16x128xf32>
    %1050 = arith.mulf %1049, %1023 : vector<16x128xf32>
    %1051 = arith.addf %939, %1050 : vector<16x128xf32>
    %c46 = arith.constant 46 : index
    %1052 = memref.load %arg4[%c46] : memref<192xf32, #tpu.memory_space<smem>>
    %1053 = vector.broadcast %1052 : f32 to vector<16x128xf32>
    %1054 = arith.mulf %1053, %154 : vector<16x128xf32>
    %1055 = arith.addf %1051, %1054 : vector<16x128xf32>
    %c47 = arith.constant 47 : index
    %1056 = memref.load %arg4[%c47] : memref<192xf32, #tpu.memory_space<smem>>
    %1057 = vector.broadcast %1056 : f32 to vector<16x128xf32>
    %1058 = arith.mulf %1057, %1035 : vector<16x128xf32>
    %1059 = arith.addf %1055, %1058 : vector<16x128xf32>
    %c69 = arith.constant 69 : index
    %1060 = memref.load %arg4[%c69] : memref<192xf32, #tpu.memory_space<smem>>
    %1061 = vector.broadcast %1060 : f32 to vector<16x128xf32>
    %1062 = arith.mulf %1061, %1023 : vector<16x128xf32>
    %1063 = arith.addf %951, %1062 : vector<16x128xf32>
    %c70 = arith.constant 70 : index
    %1064 = memref.load %arg4[%c70] : memref<192xf32, #tpu.memory_space<smem>>
    %1065 = vector.broadcast %1064 : f32 to vector<16x128xf32>
    %1066 = arith.mulf %1065, %154 : vector<16x128xf32>
    %1067 = arith.addf %1063, %1066 : vector<16x128xf32>
    %c71 = arith.constant 71 : index
    %1068 = memref.load %arg4[%c71] : memref<192xf32, #tpu.memory_space<smem>>
    %1069 = vector.broadcast %1068 : f32 to vector<16x128xf32>
    %1070 = arith.mulf %1069, %1035 : vector<16x128xf32>
    %1071 = arith.addf %1067, %1070 : vector<16x128xf32>
    %c93 = arith.constant 93 : index
    %1072 = memref.load %arg4[%c93] : memref<192xf32, #tpu.memory_space<smem>>
    %1073 = vector.broadcast %1072 : f32 to vector<16x128xf32>
    %1074 = arith.mulf %1073, %1023 : vector<16x128xf32>
    %1075 = arith.addf %963, %1074 : vector<16x128xf32>
    %c94 = arith.constant 94 : index
    %1076 = memref.load %arg4[%c94] : memref<192xf32, #tpu.memory_space<smem>>
    %1077 = vector.broadcast %1076 : f32 to vector<16x128xf32>
    %1078 = arith.mulf %1077, %154 : vector<16x128xf32>
    %1079 = arith.addf %1075, %1078 : vector<16x128xf32>
    %c95 = arith.constant 95 : index
    %1080 = memref.load %arg4[%c95] : memref<192xf32, #tpu.memory_space<smem>>
    %1081 = vector.broadcast %1080 : f32 to vector<16x128xf32>
    %1082 = arith.mulf %1081, %1035 : vector<16x128xf32>
    %1083 = arith.addf %1079, %1082 : vector<16x128xf32>
    %c117 = arith.constant 117 : index
    %1084 = memref.load %arg4[%c117] : memref<192xf32, #tpu.memory_space<smem>>
    %1085 = vector.broadcast %1084 : f32 to vector<16x128xf32>
    %1086 = arith.mulf %1085, %1023 : vector<16x128xf32>
    %1087 = arith.addf %975, %1086 : vector<16x128xf32>
    %c118 = arith.constant 118 : index
    %1088 = memref.load %arg4[%c118] : memref<192xf32, #tpu.memory_space<smem>>
    %1089 = vector.broadcast %1088 : f32 to vector<16x128xf32>
    %1090 = arith.mulf %1089, %154 : vector<16x128xf32>
    %1091 = arith.addf %1087, %1090 : vector<16x128xf32>
    %c119 = arith.constant 119 : index
    %1092 = memref.load %arg4[%c119] : memref<192xf32, #tpu.memory_space<smem>>
    %1093 = vector.broadcast %1092 : f32 to vector<16x128xf32>
    %1094 = arith.mulf %1093, %1035 : vector<16x128xf32>
    %1095 = arith.addf %1091, %1094 : vector<16x128xf32>
    %c141 = arith.constant 141 : index
    %1096 = memref.load %arg4[%c141] : memref<192xf32, #tpu.memory_space<smem>>
    %1097 = vector.broadcast %1096 : f32 to vector<16x128xf32>
    %1098 = arith.mulf %1097, %1023 : vector<16x128xf32>
    %1099 = arith.addf %987, %1098 : vector<16x128xf32>
    %c142 = arith.constant 142 : index
    %1100 = memref.load %arg4[%c142] : memref<192xf32, #tpu.memory_space<smem>>
    %1101 = vector.broadcast %1100 : f32 to vector<16x128xf32>
    %1102 = arith.mulf %1101, %154 : vector<16x128xf32>
    %1103 = arith.addf %1099, %1102 : vector<16x128xf32>
    %c143 = arith.constant 143 : index
    %1104 = memref.load %arg4[%c143] : memref<192xf32, #tpu.memory_space<smem>>
    %1105 = vector.broadcast %1104 : f32 to vector<16x128xf32>
    %1106 = arith.mulf %1105, %1035 : vector<16x128xf32>
    %1107 = arith.addf %1103, %1106 : vector<16x128xf32>
    %c165 = arith.constant 165 : index
    %1108 = memref.load %arg4[%c165] : memref<192xf32, #tpu.memory_space<smem>>
    %1109 = vector.broadcast %1108 : f32 to vector<16x128xf32>
    %1110 = arith.mulf %1109, %1023 : vector<16x128xf32>
    %1111 = arith.addf %999, %1110 : vector<16x128xf32>
    %c166 = arith.constant 166 : index
    %1112 = memref.load %arg4[%c166] : memref<192xf32, #tpu.memory_space<smem>>
    %1113 = vector.broadcast %1112 : f32 to vector<16x128xf32>
    %1114 = arith.mulf %1113, %154 : vector<16x128xf32>
    %1115 = arith.addf %1111, %1114 : vector<16x128xf32>
    %c167 = arith.constant 167 : index
    %1116 = memref.load %arg4[%c167] : memref<192xf32, #tpu.memory_space<smem>>
    %1117 = vector.broadcast %1116 : f32 to vector<16x128xf32>
    %1118 = arith.mulf %1117, %1035 : vector<16x128xf32>
    %1119 = arith.addf %1115, %1118 : vector<16x128xf32>
    %c189 = arith.constant 189 : index
    %1120 = memref.load %arg4[%c189] : memref<192xf32, #tpu.memory_space<smem>>
    %1121 = vector.broadcast %1120 : f32 to vector<16x128xf32>
    %1122 = arith.mulf %1121, %1023 : vector<16x128xf32>
    %1123 = arith.addf %1011, %1122 : vector<16x128xf32>
    %c190 = arith.constant 190 : index
    %1124 = memref.load %arg4[%c190] : memref<192xf32, #tpu.memory_space<smem>>
    %1125 = vector.broadcast %1124 : f32 to vector<16x128xf32>
    %1126 = arith.mulf %1125, %154 : vector<16x128xf32>
    %1127 = arith.addf %1123, %1126 : vector<16x128xf32>
    %c191 = arith.constant 191 : index
    %1128 = memref.load %arg4[%c191] : memref<192xf32, #tpu.memory_space<smem>>
    %1129 = vector.broadcast %1128 : f32 to vector<16x128xf32>
    %1130 = arith.mulf %1129, %1035 : vector<16x128xf32>
    %1131 = arith.addf %1127, %1130 : vector<16x128xf32>
    %cst_153 = arith.constant 0.000000e+00 : f32
    %1132 = vector.broadcast %cst_153 : f32 to vector<16x128xf32>
    %1133 = arith.maximumf %1047, %1132 : vector<16x128xf32>
    %cst_154 = arith.constant 0.000000e+00 : f32
    %1134 = vector.broadcast %cst_154 : f32 to vector<16x128xf32>
    %1135 = arith.maximumf %1059, %1134 : vector<16x128xf32>
    %cst_155 = arith.constant 0.000000e+00 : f32
    %1136 = vector.broadcast %cst_155 : f32 to vector<16x128xf32>
    %1137 = arith.maximumf %1071, %1136 : vector<16x128xf32>
    %cst_156 = arith.constant 0.000000e+00 : f32
    %1138 = vector.broadcast %cst_156 : f32 to vector<16x128xf32>
    %1139 = arith.maximumf %1083, %1138 : vector<16x128xf32>
    %cst_157 = arith.constant 0.000000e+00 : f32
    %1140 = vector.broadcast %cst_157 : f32 to vector<16x128xf32>
    %1141 = arith.maximumf %1095, %1140 : vector<16x128xf32>
    %cst_158 = arith.constant 0.000000e+00 : f32
    %1142 = vector.broadcast %cst_158 : f32 to vector<16x128xf32>
    %1143 = arith.maximumf %1107, %1142 : vector<16x128xf32>
    %cst_159 = arith.constant 0.000000e+00 : f32
    %1144 = vector.broadcast %cst_159 : f32 to vector<16x128xf32>
    %1145 = arith.maximumf %1119, %1144 : vector<16x128xf32>
    %cst_160 = arith.constant 0.000000e+00 : f32
    %1146 = vector.broadcast %cst_160 : f32 to vector<16x128xf32>
    %1147 = arith.maximumf %1131, %1146 : vector<16x128xf32>
    %cst_161 = arith.constant dense<0.000000e+00> : vector<128xf32>
    %1148 = vector.multi_reduction <add>, %1133, %cst_161 [0] : vector<16x128xf32> to vector<128xf32>
    %1149 = vector.shape_cast %1148 : vector<128xf32> to vector<1x128xf32>
    %cst_162 = arith.constant dense<0.000000e+00> : vector<128xf32>
    %1150 = vector.multi_reduction <add>, %1135, %cst_162 [0] : vector<16x128xf32> to vector<128xf32>
    %1151 = vector.shape_cast %1150 : vector<128xf32> to vector<1x128xf32>
    %cst_163 = arith.constant dense<0.000000e+00> : vector<128xf32>
    %1152 = vector.multi_reduction <add>, %1137, %cst_163 [0] : vector<16x128xf32> to vector<128xf32>
    %1153 = vector.shape_cast %1152 : vector<128xf32> to vector<1x128xf32>
    %cst_164 = arith.constant dense<0.000000e+00> : vector<128xf32>
    %1154 = vector.multi_reduction <add>, %1139, %cst_164 [0] : vector<16x128xf32> to vector<128xf32>
    %1155 = vector.shape_cast %1154 : vector<128xf32> to vector<1x128xf32>
    %cst_165 = arith.constant dense<0.000000e+00> : vector<128xf32>
    %1156 = vector.multi_reduction <add>, %1141, %cst_165 [0] : vector<16x128xf32> to vector<128xf32>
    %1157 = vector.shape_cast %1156 : vector<128xf32> to vector<1x128xf32>
    %cst_166 = arith.constant dense<0.000000e+00> : vector<128xf32>
    %1158 = vector.multi_reduction <add>, %1143, %cst_166 [0] : vector<16x128xf32> to vector<128xf32>
    %1159 = vector.shape_cast %1158 : vector<128xf32> to vector<1x128xf32>
    %cst_167 = arith.constant dense<0.000000e+00> : vector<128xf32>
    %1160 = vector.multi_reduction <add>, %1145, %cst_167 [0] : vector<16x128xf32> to vector<128xf32>
    %1161 = vector.shape_cast %1160 : vector<128xf32> to vector<1x128xf32>
    %cst_168 = arith.constant dense<0.000000e+00> : vector<128xf32>
    %1162 = vector.multi_reduction <add>, %1147, %cst_168 [0] : vector<16x128xf32> to vector<128xf32>
    %1163 = vector.shape_cast %1162 : vector<128xf32> to vector<1x128xf32>
    %1164 = tpu.concatenate %1149, %1151, %1153, %1155, %1157, %1159, %1161, %1163 in 0 : vector<1x128xf32>, vector<1x128xf32>, vector<1x128xf32>, vector<1x128xf32>, vector<1x128xf32>, vector<1x128xf32>, vector<1x128xf32>, vector<1x128xf32> -> vector<8x128xf32>
    %c0_169 = arith.constant 0 : index
    %c0_170 = arith.constant 0 : index
    %1165 = vector.load %arg6[%c0_169, %c0_170] : memref<8x8xf32, #tpu.memory_space<vmem>>, vector<8x8xf32>
    %cst_171 = arith.constant dense<0.000000e+00> : vector<8x128xf32>
    %1166 = tpu.matmul %1165, %1164, %cst_171 {dimension_numbers = #tpu.dot_dimension_numbers<[1], [0], [0], [1], [0, 0, 1, 1], [], []>} : vector<8x8xf32>, vector<8x128xf32>, vector<8x128xf32> -> vector<8x128xf32>
    %c0_172 = arith.constant 0 : index
    %c0_173 = arith.constant 0 : index
    %1167 = vector.load %arg7[%c0_172, %c0_173] : memref<8x1xf32, #tpu.memory_space<vmem>>, vector<8x1xf32>
    %1168 = vector.broadcast %1167 : vector<8x1xf32> to vector<8x128xf32>
    %1169 = arith.addf %1166, %1168 : vector<8x128xf32>
    %c0_174 = arith.constant 0 : index
    %c0_175 = arith.constant 0 : index
    %1170 = vector.load %arg8[%c0_174, %c0_175] : memref<8x128xf32, #tpu.memory_space<vmem>>, vector<8x128xf32>
    tpu.vector_store %arg8[%c0_174, %c0_175], %1169 {strides = array<i32>} : memref<8x128xf32, #tpu.memory_space<vmem>>, vector<8x128xf32>,
    return
  }
  func.func @transform_0(%arg0: i32) -> (i32, i32, i32) {
    %c0_i32 = arith.constant 0 : i32
    %c0_i32_0 = arith.constant 0 : i32
    %c0_i32_1 = arith.constant 0 : i32
    return %arg0, %c0_i32, %c0_i32_0 : i32, i32, i32
  }
  func.func @transform_1(%arg0: i32) -> i32 {
    %c0_i32 = arith.constant 0 : i32
    %c0_i32_0 = arith.constant 0 : i32
    return %c0_i32 : i32
  }
  func.func @transform_2(%arg0: i32) -> i32 {
    %c0_i32 = arith.constant 0 : i32
    %c0_i32_0 = arith.constant 0 : i32
    return %c0_i32 : i32
  }
  func.func @transform_3(%arg0: i32) -> i32 {
    %c0_i32 = arith.constant 0 : i32
    %c0_i32_0 = arith.constant 0 : i32
    return %c0_i32 : i32
  }
  func.func @transform_4(%arg0: i32) -> i32 {
    %c0_i32 = arith.constant 0 : i32
    %c0_i32_0 = arith.constant 0 : i32
    return %c0_i32 : i32
  }
  func.func @transform_5(%arg0: i32) -> (i32, i32) {
    %c0_i32 = arith.constant 0 : i32
    %c0_i32_0 = arith.constant 0 : i32
    %c0_i32_1 = arith.constant 0 : i32
    return %c0_i32, %c0_i32_0 : i32, i32
  }
  func.func @transform_6(%arg0: i32) -> (i32, i32) {
    %c0_i32 = arith.constant 0 : i32
    %c0_i32_0 = arith.constant 0 : i32
    %c0_i32_1 = arith.constant 0 : i32
    return %c0_i32, %c0_i32_0 : i32, i32
  }
  func.func @transform_7(%arg0: i32) -> (i32, i32) {
    %c0_i32 = arith.constant 0 : i32
    %c0_i32_0 = arith.constant 0 : i32
    return %c0_i32, %arg0 : i32, i32
  }
}

</mosaic_0001>

<llo_original>
// kernel: tpu_custom_call.1
$region0: #{tpu_custom_call.1}
  #allocation0 [shape = 'u32[]', space=smem, size = 0x4, offset = 0x4, fixed_abs, tag = 'smem constant byte address 0x4 - core index']
  #allocation1 [shape = 'u32[144,128]{1,0:T(1,128)}', space=vmem, size = 0x12000, scoped, tag = 'internal scratch']
  %s0 = inlined_call_operand.hbm [shape: f32[1,16,128], index: 0, kind: input, shape index: {}]
  %s1 = inlined_call_operand.vmem [shape: f32[24], index: 1, kind: input, shape index: {}]
  %s2 = inlined_call_operand.vmem [shape: f32[8], index: 2, kind: input, shape index: {}]
  %s3 = inlined_call_operand.vmem [shape: f32[192], index: 3, kind: input, shape index: {}]
  %s4 = inlined_call_operand.vmem [shape: f32[8], index: 4, kind: input, shape index: {}]
  %s5 = inlined_call_operand.vmem [shape: f32[8,8], index: 5, kind: input, shape index: {}]
  %s6 = inlined_call_operand.vmem [shape: f32[8,1], index: 6, kind: input, shape index: {}]
  %s7 = inlined_call_operand.hbm [shape: f32[8,128], index: 7, kind: output, shape index: {}]
  %s8 = sld [smem:[#allocation0]]
  $region58: #{tpu_custom_call.1} parent=0
    _
  %s10 = ssub.s32 1, %s8
  %s11 = scalar_select 0, %s10, %s8
  $region1: #{tpu_custom_call.1} parent=0
    #allocation2 [shape = 'u8[8192]{0}', space=vmem, size = 0x2000, scoped, tag = 'input window, operand 0, single buffered']
    #allocation3 [shape = 's32[1]{0}', space=sflag, size = 0x4, scoped, tag = 'scoped memory for tpu_custom_call.1']
    #allocation4 [shape = 's32[1]{0}', space=sflag, size = 0x4, scoped, tag = 'scoped memory for tpu_custom_call.1']
    #allocation5 [shape = 's32[1]{0}', space=sflag, size = 0x4, scoped, tag = 'scoped memory for tpu_custom_call.1']
    #allocation6 [shape = 'u8[512]{0}', space=smem, size = 0x200, scoped, tag = 'input window, operand 1, single buffered']
    #allocation7 [shape = 'u8[512]{0}', space=smem, size = 0x200, scoped, tag = 'input window, operand 2, single buffered']
    #allocation8 [shape = 's32[1]{0}', space=sflag, size = 0x4, scoped, tag = 'scoped memory for tpu_custom_call.1']
    #allocation9 [shape = 'u8[1024]{0}', space=smem, size = 0x400, scoped, tag = 'input window, operand 3, single buffered']
    #allocation10 [shape = 'u8[512]{0}', space=smem, size = 0x200, scoped, tag = 'input window, operand 4, single buffered']
    #allocation11 [shape = 's32[1]{0}', space=sflag, size = 0x4, scoped, tag = 'scoped memory for tpu_custom_call.1']
    #allocation12 [shape = 'u8[4096]{0}', space=vmem, size = 0x1000, scoped, tag = 'output window, operand 0, single buffered']
    %12 = vsyncpa [#allocation3], 0
    %13 = vsyncpa [#allocation5], 0
    %14 = vsyncpa [#allocation8], 0
    %15 = vsyncpa [#allocation11], 0
    %16 = vsyncpa [#allocation4], 0
    // Predicated region
    $region2: #{tpu_custom_call.1} parent=1 // pred_check
      _
    $region3: #{tpu_custom_call.1} parent=1 // pred_check_branch
      %18 = sbr.rel (0) target = $region5
    $region4: #{tpu_custom_call.1} parent=1 // pred_region
      %s20 = ssub.s32 256, 256
      %21 = vsyncadd [#allocation3], %s20
      %s22 = sshll.u32 [#allocation2], 4
      %s23 = int_to_ptr.vmem [resolvable:$true] %s22
      %28 = dma.hbm_to_vmem [thread:$0]  %s0, 256, %s23, [#allocation3], 128, 128, 8
    $region5: #{tpu_custom_call.1} parent=1 // pred_fallthru
      _
    // Predicated region
    $region6: #{tpu_custom_call.1} parent=1 // pred_check
      _
    $region7: #{tpu_custom_call.1} parent=1 // pred_check_branch
      %30 = sbr.rel (0) target = $region9
    $region8: #{tpu_custom_call.1} parent=1 // pred_region
      %s32 = ssub.s32 16, 16
      %33 = vsyncadd [#allocation5], %s32
      %s35 = sshll.u32 %s1, 4
      %s36 = int_to_ptr.vmem [resolvable:$true] %s35
      %38 = dma.vmem_to_smem %s36, 16, [#allocation6], [#allocation5]
    $region9: #{tpu_custom_call.1} parent=1 // pred_fallthru
      _
    // Predicated region
    $region10: #{tpu_custom_call.1} parent=1 // pred_check
      _
    $region11: #{tpu_custom_call.1} parent=1 // pred_check_branch
      %40 = sbr.rel (0) target = $region13
    $region12: #{tpu_custom_call.1} parent=1 // pred_region
      %s42 = ssub.s32 16, 16
      %43 = vsyncadd [#allocation8], %s42
      %s45 = sshll.u32 %s2, 4
      %s46 = int_to_ptr.vmem [resolvable:$true] %s45
      %48 = dma.vmem_to_smem %s46, 16, [#allocation7], [#allocation8]
    $region13: #{tpu_custom_call.1} parent=1 // pred_fallthru
      _
    // Predicated region
    $region14: #{tpu_custom_call.1} parent=1 // pred_check
      _
    $region15: #{tpu_custom_call.1} parent=1 // pred_check_branch
      %50 = sbr.rel (0) target = $region17
    $region16: #{tpu_custom_call.1} parent=1 // pred_region
      %s52 = ssub.s32 32, 32
      %53 = vsyncadd [#allocation8], %s52
      %s55 = sshll.u32 %s3, 4
      %s56 = int_to_ptr.vmem [resolvable:$true] %s55
      %58 = dma.vmem_to_smem %s56, 32, [#allocation9], [#allocation8]
    $region17: #{tpu_custom_call.1} parent=1 // pred_fallthru
      _
    // Predicated region
    $region18: #{tpu_custom_call.1} parent=1 // pred_check
      _
    $region19: #{tpu_custom_call.1} parent=1 // pred_check_branch
      %60 = sbr.rel (0) target = $region21
    $region20: #{tpu_custom_call.1} parent=1 // pred_region
      %s62 = ssub.s32 16, 16
      %63 = vsyncadd [#allocation11], %s62
      %s65 = sshll.u32 %s4, 4
      %s66 = int_to_ptr.vmem [resolvable:$true] %s65
      %68 = dma.vmem_to_smem %s66, 16, [#allocation10], [#allocation11]
    $region21: #{tpu_custom_call.1} parent=1 // pred_fallthru
      _
    // Predicated region
    $region22: #{tpu_custom_call.1} parent=1 // pred_check
      _
    $region23: #{tpu_custom_call.1} parent=1 // pred_check_branch
      %70 = sbr.rel (0) target = $region25
    $region24: #{tpu_custom_call.1} parent=1 // pred_region
      _
    $region25: #{tpu_custom_call.1} parent=1 // pred_fallthru
      _
    // Predicated region
    $region26: #{tpu_custom_call.1} parent=1 // pred_check
      _
    $region27: #{tpu_custom_call.1} parent=1 // pred_check_branch
      %72 = sbr.rel (0) target = $region29
    $region28: #{tpu_custom_call.1} parent=1 // pred_region
      _
    $region29: #{tpu_custom_call.1} parent=1 // pred_fallthru
      _
    // Predicated region
    $region30: #{tpu_custom_call.1} parent=1 // pred_check
      _
    $region31: #{tpu_custom_call.1} parent=1 // pred_check_branch
      %74 = sbr.rel (0) target = $region33
    $region32: #{tpu_custom_call.1} parent=1 // pred_region
      %75 = dma.done [#allocation3], 256
    $region33: #{tpu_custom_call.1} parent=1 // pred_fallthru
      _
    // Predicated region
    $region34: #{tpu_custom_call.1} parent=1 // pred_check
      _
    $region35: #{tpu_custom_call.1} parent=1 // pred_check_branch
      %77 = sbr.rel (0) target = $region37
    $region36: #{tpu_custom_call.1} parent=1 // pred_region
      %78 = dma.done [#allocation5], 16
    $region37: #{tpu_custom_call.1} parent=1 // pred_fallthru
      _
    // Predicated region
    $region38: #{tpu_custom_call.1} parent=1 // pred_check
      _
    $region39: #{tpu_custom_call.1} parent=1 // pred_check_branch
      %80 = sbr.rel (0) target = $region41
    $region40: #{tpu_custom_call.1} parent=1 // pred_region
      %81 = dma.done [#allocation8], 16
    $region41: #{tpu_custom_call.1} parent=1 // pred_fallthru
      _
    // Predicated region
    $region42: #{tpu_custom_call.1} parent=1 // pred_check
      _
    $region43: #{tpu_custom_call.1} parent=1 // pred_check_branch
      %83 = sbr.rel (0) target = $region45
    $region44: #{tpu_custom_call.1} parent=1 // pred_region
      %84 = dma.done [#allocation8], 32
    $region45: #{tpu_custom_call.1} parent=1 // pred_fallthru
      _
    // Predicated region
    $region46: #{tpu_custom_call.1} parent=1 // pred_check
      _
    $region47: #{tpu_custom_call.1} parent=1 // pred_check_branch
      %86 = sbr.rel (0) target = $region49
    $region48: #{tpu_custom_call.1} parent=1 // pred_region
      %87 = dma.done [#allocation11], 16
    $region49: #{tpu_custom_call.1} parent=1 // pred_fallthru
      _
    %88 = sfence
    %v89 = vld [vmem:[#allocation2] sm:$0xff]
    %v90 = vld [vmem:[#allocation2 + $0x8] sm:$0xff]
    %v91 = vlaneseq
    %v92 = vshrl.u32 %v91, 7
    %v93 = vadd.s32 %v92, 8
    %s94 = sld [smem:[#allocation7]]
    %v95 = vstv %s94
    %s96 = sld [smem:[#allocation7 + $0x1]]
    %v97 = vstv %s96
    %s98 = sld [smem:[#allocation7 + $0x2]]
    %v99 = vstv %s98
    %s100 = sld [smem:[#allocation7 + $0x3]]
    %v101 = vstv %s100
    %s102 = sld [smem:[#allocation7 + $0x4]]
    %v103 = vstv %s102
    %s104 = sld [smem:[#allocation7 + $0x5]]
    %v105 = vstv %s104
    %s106 = sld [smem:[#allocation7 + $0x6]]
    %v107 = vstv %s106
    %s108 = sld [smem:[#allocation7 + $0x7]]
    %v109 = vstv %s108
    %v110 = vrot.slane %v89, 7
    %v111 = vrot.slane %v90, 7
    %vm112 = vcmp.lt.s32.totalorder %v92, 1
    %v113 = vsel %vm112, %v110, %v111
    %v114 = vsel %vm112, %v111, %v110
    %v115 = vadd.s32 %v92, 4294967295
    %v116 = vadd.s32 %v93, 4294967295
    %vm117 = vcmp.ge.s32.totalorder %v115, 0
    %vm118 = vcmp.ge.s32.totalorder %v116, 0
    %vm119 = vcmp.lt.s32.totalorder %v115, 16
    %vm120 = vcmp.lt.s32.totalorder %v116, 16
    %vm121 = vmand %vm117, %vm119
    %vm122 = vmand %vm118, %vm120
    %v123 = vsel %vm121, %v114, 0.0
    %v124 = vsel %vm122, %v113, 0.0
    %v125 = vrot.slane %v89, 1
    %v126 = vrot.slane %v90, 1
    %vm127 = vcmp.lt.s32.totalorder %v92, 7
    %v128 = vsel %vm127, %v125, %v126
    %v129 = vsel %vm127, %v126, %v125
    %v130 = vadd.s32 %v92, 1
    %v131 = vadd.s32 %v93, 1
    %vm132 = vcmp.ge.s32.totalorder %v130, 0
    %vm133 = vcmp.ge.s32.totalorder %v131, 0
    %vm134 = vcmp.lt.s32.totalorder %v130, 16
    %vm135 = vcmp.lt.s32.totalorder %v131, 16
    %vm136 = vmand %vm132, %vm134
    %vm137 = vmand %vm133, %vm135
    %v138 = vsel %vm136, %v128, 0.0
    %v139 = vsel %vm137, %v129, 0.0
    %s140 = sld [smem:[#allocation6]]
    %v141 = vstv %s140
    %v142 = vmul.f32 %v141, %v123
    %v143 = vmul.f32 %v141, %v124
    %v144 = vadd.f32 %v95, %v142
    %v145 = vadd.f32 %v95, %v143
    %s146 = sld [smem:[#allocation6 + $0x1]]
    %v147 = vstv %s146
    %v148 = vmul.f32 %v147, %v89
    %v149 = vmul.f32 %v147, %v90
    %v150 = vadd.f32 %v144, %v148
    %v151 = vadd.f32 %v145, %v149
    %s152 = sld [smem:[#allocation6 + $0x2]]
    %v153 = vstv %s152
    %v154 = vmul.f32 %v153, %v138
    %v155 = vmul.f32 %v153, %v139
    %v156 = vadd.f32 %v150, %v154
    %v157 = vadd.f32 %v151, %v155
    %s158 = sld [smem:[#allocation6 + $0x3]]
    %v159 = vstv %s158
    %v160 = vmul.f32 %v159, %v123
    %v161 = vmul.f32 %v159, %v124
    %v162 = vadd.f32 %v97, %v160
    %v163 = vadd.f32 %v97, %v161
    %s164 = sld [smem:[#allocation6 + $0x4]]
    %v165 = vstv %s164
    %v166 = vmul.f32 %v165, %v89
    %v167 = vmul.f32 %v165, %v90
    %v168 = vadd.f32 %v162, %v166
    %v169 = vadd.f32 %v163, %v167
    %s170 = sld [smem:[#allocation6 + $0x5]]
    %v171 = vstv %s170
    %v172 = vmul.f32 %v171, %v138
    %v173 = vmul.f32 %v171, %v139
    %v174 = vadd.f32 %v168, %v172
    %v175 = vadd.f32 %v169, %v173
    %s176 = sld [smem:[#allocation6 + $0x6]]
    %v177 = vstv %s176
    %v178 = vmul.f32 %v177, %v123
    %v179 = vmul.f32 %v177, %v124
    %v180 = vadd.f32 %v99, %v178
    %v181 = vadd.f32 %v99, %v179
    %s182 = sld [smem:[#allocation6 + $0x7]]
    %v183 = vstv %s182
    %v184 = vmul.f32 %v183, %v89
    %v185 = vmul.f32 %v183, %v90
    %v186 = vadd.f32 %v180, %v184
    %v187 = vadd.f32 %v181, %v185
    %s188 = sld [smem:[#allocation6 + $0x8]]
    %v189 = vstv %s188
    %v190 = vmul.f32 %v189, %v138
    %v191 = vmul.f32 %v189, %v139
    %v192 = vadd.f32 %v186, %v190
    %v193 = vadd.f32 %v187, %v191
    %s194 = sld [smem:[#allocation6 + $0x9]]
    %v195 = vstv %s194
    %v196 = vmul.f32 %v195, %v123
    %v197 = vmul.f32 %v195, %v124
    %v198 = vadd.f32 %v101, %v196
    %v199 = vadd.f32 %v101, %v197
    %s200 = sld [smem:[#allocation6 + $0xa]]
    %v201 = vstv %s200
    %v202 = vmul.f32 %v201, %v89
    %v203 = vmul.f32 %v201, %v90
    %v204 = vadd.f32 %v198, %v202
    %v205 = vadd.f32 %v199, %v203
    %s206 = sld [smem:[#allocation6 + $0xb]]
    %v207 = vstv %s206
    %v208 = vmul.f32 %v207, %v138
    %v209 = vmul.f32 %v207, %v139
    %v210 = vadd.f32 %v204, %v208
    %v211 = vadd.f32 %v205, %v209
    %s212 = sld [smem:[#allocation6 + $0xc]]
    %v213 = vstv %s212
    %v214 = vmul.f32 %v213, %v123
    %v215 = vmul.f32 %v213, %v124
    %v216 = vadd.f32 %v103, %v214
    %v217 = vadd.f32 %v103, %v215
    %s218 = sld [smem:[#allocation6 + $0xd]]
    %v219 = vstv %s218
    %v220 = vmul.f32 %v219, %v89
    %v221 = vmul.f32 %v219, %v90
    %v222 = vadd.f32 %v216, %v220
    %v223 = vadd.f32 %v217, %v221
    %s224 = sld [smem:[#allocation6 + $0xe]]
    %v225 = vstv %s224
    %v226 = vmul.f32 %v225, %v138
    %v227 = vmul.f32 %v225, %v139
    %v228 = vadd.f32 %v222, %v226
    %v229 = vadd.f32 %v223, %v227
    %s230 = sld [smem:[#allocation6 + $0xf]]
    %v231 = vstv %s230
    %v232 = vmul.f32 %v231, %v123
    %v233 = vmul.f32 %v231, %v124
    %v234 = vadd.f32 %v105, %v232
    %v235 = vadd.f32 %v105, %v233
    %s236 = sld [smem:[#allocation6 + $0x10]]
    %v237 = vstv %s236
    %v238 = vmul.f32 %v237, %v89
    %v239 = vmul.f32 %v237, %v90
    %v240 = vadd.f32 %v234, %v238
    %v241 = vadd.f32 %v235, %v239
    %s242 = sld [smem:[#allocation6 + $0x11]]
    %v243 = vstv %s242
    %v244 = vmul.f32 %v243, %v138
    %v245 = vmul.f32 %v243, %v139
    %v246 = vadd.f32 %v240, %v244
    %v247 = vadd.f32 %v241, %v245
    %s248 = sld [smem:[#allocation6 + $0x12]]
    %v249 = vstv %s248
    %v250 = vmul.f32 %v249, %v123
    %v251 = vmul.f32 %v249, %v124
    %v252 = vadd.f32 %v107, %v250
    %v253 = vadd.f32 %v107, %v251
    %s254 = sld [smem:[#allocation6 + $0x13]]
    %v255 = vstv %s254
    %v256 = vmul.f32 %v255, %v89
    %v257 = vmul.f32 %v255, %v90
    %v258 = vadd.f32 %v252, %v256
    %v259 = vadd.f32 %v253, %v257
    %s260 = sld [smem:[#allocation6 + $0x14]]
    %v261 = vstv %s260
    %v262 = vmul.f32 %v261, %v138
    %v263 = vmul.f32 %v261, %v139
    %v264 = vadd.f32 %v258, %v262
    %v265 = vadd.f32 %v259, %v263
    %s266 = sld [smem:[#allocation6 + $0x15]]
    %v267 = vstv %s266
    %v268 = vmul.f32 %v267, %v123
    %v269 = vmul.f32 %v267, %v124
    %v270 = vadd.f32 %v109, %v268
    %v271 = vadd.f32 %v109, %v269
    %s272 = sld [smem:[#allocation6 + $0x16]]
    %v273 = vstv %s272
    %v274 = vmul.f32 %v273, %v89
    %v275 = vmul.f32 %v273, %v90
    %v276 = vadd.f32 %v270, %v274
    %v277 = vadd.f32 %v271, %v275
    %s278 = sld [smem:[#allocation6 + $0x17]]
    %v279 = vstv %s278
    %v280 = vmul.f32 %v279, %v138
    %v281 = vmul.f32 %v279, %v139
    %v282 = vadd.f32 %v276, %v280
    %v283 = vadd.f32 %v277, %v281
    %v284 = vmax.f32 %v156, 0.0
    %v285 = vmax.f32 %v157, 0.0
    %v286 = vmax.f32 %v174, 0.0
    %v287 = vmax.f32 %v175, 0.0
    %v288 = vmax.f32 %v192, 0.0
    %v289 = vmax.f32 %v193, 0.0
    %v290 = vmax.f32 %v210, 0.0
    %v291 = vmax.f32 %v211, 0.0
    %v292 = vmax.f32 %v228, 0.0
    %v293 = vmax.f32 %v229, 0.0
    %v294 = vmax.f32 %v246, 0.0
    %v295 = vmax.f32 %v247, 0.0
    %v296 = vmax.f32 %v264, 0.0
    %v297 = vmax.f32 %v265, 0.0
    %v298 = vmax.f32 %v282, 0.0
    %v299 = vmax.f32 %v283, 0.0
    %s300 = sld [smem:[#allocation10]]
    %v301 = vstv %s300
    %s302 = sld [smem:[#allocation10 + $0x1]]
    %v303 = vstv %s302
    %s304 = sld [smem:[#allocation10 + $0x2]]
    %v305 = vstv %s304
    %s306 = sld [smem:[#allocation10 + $0x3]]
    %v307 = vstv %s306
    %s308 = sld [smem:[#allocation10 + $0x4]]
    %v309 = vstv %s308
    %s310 = sld [smem:[#allocation10 + $0x5]]
    %v311 = vstv %s310
    %s312 = sld [smem:[#allocation10 + $0x6]]
    %v313 = vstv %s312
    %s314 = sld [smem:[#allocation10 + $0x7]]
    %v315 = vstv %s314
    %v316 = vrot.slane %v284, 7
    %v317 = vrot.slane %v285, 7
    %v318 = vsel %vm112, %v316, %v317
    %v319 = vsel %vm112, %v317, %v316
    %v320 = vsel %vm121, %v319, 0.0
    %v321 = vsel %vm122, %v318, 0.0
    %v322 = vrot.slane %v284, 1
    %v323 = vrot.slane %v285, 1
    %v324 = vsel %vm127, %v322, %v323
    %v325 = vsel %vm127, %v323, %v322
    %v326 = vsel %vm136, %v324, 0.0
    %v327 = vsel %vm137, %v325, 0.0
    %s328 = sld [smem:[#allocation9]]
    %v329 = vstv %s328
    %v330 = vmul.f32 %v329, %v320
    %v331 = vmul.f32 %v329, %v321
    %v332 = vadd.f32 %v301, %v330
    %v333 = vadd.f32 %v301, %v331
    %s334 = sld [smem:[#allocation9 + $0x1]]
    %v335 = vstv %s334
    %v336 = vmul.f32 %v335, %v284
    %v337 = vmul.f32 %v335, %v285
    %v338 = vadd.f32 %v332, %v336
    %v339 = vadd.f32 %v333, %v337
    %s340 = sld [smem:[#allocation9 + $0x2]]
    %v341 = vstv %s340
    %v342 = vmul.f32 %v341, %v326
    %v343 = vmul.f32 %v341, %v327
    %v344 = vadd.f32 %v338, %v342
    %v345 = vadd.f32 %v339, %v343
    %s346 = sld [smem:[#allocation9 + $0x18]]
    %v347 = vstv %s346
    %v348 = vmul.f32 %v347, %v320
    %v349 = vmul.f32 %v347, %v321
    %v350 = vadd.f32 %v303, %v348
    %v351 = vadd.f32 %v303, %v349
    %s352 = sld [smem:[#allocation9 + $0x19]]
    %v353 = vstv %s352
    %v354 = vmul.f32 %v353, %v284
    %v355 = vmul.f32 %v353, %v285
    %v356 = vadd.f32 %v350, %v354
    %v357 = vadd.f32 %v351, %v355
    %s358 = sld [smem:[#allocation9 + $0x1a]]
    %v359 = vstv %s358
    %v360 = vmul.f32 %v359, %v326
    %v361 = vmul.f32 %v359, %v327
    %v362 = vadd.f32 %v356, %v360
    %v363 = vadd.f32 %v357, %v361
    %s364 = sld [smem:[#allocation9 + $0x30]]
    %v365 = vstv %s364
    %v366 = vmul.f32 %v365, %v320
    %v367 = vmul.f32 %v365, %v321
    %v368 = vadd.f32 %v305, %v366
    %v369 = vadd.f32 %v305, %v367
    %s370 = sld [smem:[#allocation9 + $0x31]]
    %v371 = vstv %s370
    %v372 = vmul.f32 %v371, %v284
    %v373 = vmul.f32 %v371, %v285
    %v374 = vadd.f32 %v368, %v372
    %v375 = vadd.f32 %v369, %v373
    %s376 = sld [smem:[#allocation9 + $0x32]]
    %v377 = vstv %s376
    %v378 = vmul.f32 %v377, %v326
    %v379 = vmul.f32 %v377, %v327
    %v380 = vadd.f32 %v374, %v378
    %v381 = vadd.f32 %v375, %v379
    %s382 = sld [smem:[#allocation9 + $0x48]]
    %v383 = vstv %s382
    %v384 = vmul.f32 %v383, %v320
    %v385 = vmul.f32 %v383, %v321
    %v386 = vadd.f32 %v307, %v384
    %v387 = vadd.f32 %v307, %v385
    %s388 = sld [smem:[#allocation9 + $0x49]]
    %v389 = vstv %s388
    %v390 = vmul.f32 %v389, %v284
    %v391 = vmul.f32 %v389, %v285
    %v392 = vadd.f32 %v386, %v390
    %v393 = vadd.f32 %v387, %v391
    %s394 = sld [smem:[#allocation9 + $0x4a]]
    %v395 = vstv %s394
    %v396 = vmul.f32 %v395, %v326
    %v397 = vmul.f32 %v395, %v327
    %v398 = vadd.f32 %v392, %v396
    %v399 = vadd.f32 %v393, %v397
    %s400 = sld [smem:[#allocation9 + $0x60]]
    %v401 = vstv %s400
    %v402 = vmul.f32 %v401, %v320
    %v403 = vmul.f32 %v401, %v321
    %v404 = vadd.f32 %v309, %v402
    %v405 = vadd.f32 %v309, %v403
    %s406 = sld [smem:[#allocation9 + $0x61]]
    %v407 = vstv %s406
    %v408 = vmul.f32 %v407, %v284
    %v409 = vmul.f32 %v407, %v285
    %v410 = vadd.f32 %v404, %v408
    %v411 = vadd.f32 %v405, %v409
    %s412 = sld [smem:[#allocation9 + $0x62]]
    %v413 = vstv %s412
    %v414 = vmul.f32 %v413, %v326
    %v415 = vmul.f32 %v413, %v327
    %v416 = vadd.f32 %v410, %v414
    %v417 = vadd.f32 %v411, %v415
    %s418 = sld [smem:[#allocation9 + $0x78]]
    %v419 = vstv %s418
    %v420 = vmul.f32 %v419, %v320
    %v421 = vmul.f32 %v419, %v321
    %v422 = vadd.f32 %v311, %v420
    %v423 = vadd.f32 %v311, %v421
    %s424 = sld [smem:[#allocation9 + $0x79]]
    %v425 = vstv %s424
    %v426 = vmul.f32 %v425, %v284
    %v427 = vmul.f32 %v425, %v285
    %v428 = vadd.f32 %v422, %v426
    %v429 = vadd.f32 %v423, %v427
    %s430 = sld [smem:[#allocation9 + $0x7a]]
    %v431 = vstv %s430
    %v432 = vmul.f32 %v431, %v326
    %v433 = vmul.f32 %v431, %v327
    %v434 = vadd.f32 %v428, %v432
    %v435 = vadd.f32 %v429, %v433
    %s436 = sld [smem:[#allocation9 + $0x90]]
    %v437 = vstv %s436
    %v438 = vmul.f32 %v437, %v320
    %v439 = vmul.f32 %v437, %v321
    %v440 = vadd.f32 %v313, %v438
    %v441 = vadd.f32 %v313, %v439
    %s442 = sld [smem:[#allocation9 + $0x91]]
    %v443 = vstv %s442
    %v444 = vmul.f32 %v443, %v284
    %v445 = vmul.f32 %v443, %v285
    %v446 = vadd.f32 %v440, %v444
    %v447 = vadd.f32 %v441, %v445
    %s448 = sld [smem:[#allocation9 + $0x92]]
    %v449 = vstv %s448
    %v450 = vmul.f32 %v449, %v326
    %v451 = vmul.f32 %v449, %v327
    %v452 = vadd.f32 %v446, %v450
    %v453 = vadd.f32 %v447, %v451
    %s454 = sld [smem:[#allocation9 + $0xa8]]
    %v455 = vstv %s454
    %v456 = vmul.f32 %v455, %v320
    %v457 = vmul.f32 %v455, %v321
    %v458 = vadd.f32 %v315, %v456
    %v459 = vadd.f32 %v315, %v457
    %s460 = sld [smem:[#allocation9 + $0xa9]]
    %v461 = vstv %s460
    %v462 = vmul.f32 %v461, %v284
    %v463 = vmul.f32 %v461, %v285
    %v464 = vadd.f32 %v458, %v462
    %v465 = vadd.f32 %v459, %v463
    %s466 = sld [smem:[#allocation9 + $0xaa]]
    %v467 = vstv %s466
    %v468 = vmul.f32 %v467, %v326
    %v469 = vmul.f32 %v467, %v327
    %v470 = vadd.f32 %v464, %v468
    %v471 = vadd.f32 %v465, %v469
    %v472 = vrot.slane %v286, 7
    %v473 = vrot.slane %v287, 7
    %v474 = vsel %vm112, %v472, %v473
    %v475 = vsel %vm112, %v473, %v472
    %v476 = vsel %vm121, %v475, 0.0
    %v477 = vsel %vm122, %v474, 0.0
    %v478 = vrot.slane %v286, 1
    %v479 = vrot.slane %v287, 1
    %v480 = vsel %vm127, %v478, %v479
    %v481 = vsel %vm127, %v479, %v478
    %v482 = vsel %vm136, %v480, 0.0
    %v483 = vsel %vm137, %v481, 0.0
    %s484 = sld [smem:[#allocation9 + $0x3]]
    %v485 = vstv %s484
    %v486 = vmul.f32 %v485, %v476
    %v487 = vmul.f32 %v485, %v477
    %v488 = vadd.f32 %v344, %v486
    %v489 = vadd.f32 %v345, %v487
    %s490 = sld [smem:[#allocation9 + $0x4]]
    %v491 = vstv %s490
    %v492 = vmul.f32 %v491, %v286
    %v493 = vmul.f32 %v491, %v287
    %v494 = vadd.f32 %v488, %v492
    %v495 = vadd.f32 %v489, %v493
    %s496 = sld [smem:[#allocation9 + $0x5]]
    %v497 = vstv %s496
    %v498 = vmul.f32 %v497, %v482
    %v499 = vmul.f32 %v497, %v483
    %v500 = vadd.f32 %v494, %v498
    %v501 = vadd.f32 %v495, %v499
    %s502 = sld [smem:[#allocation9 + $0x1b]]
    %v503 = vstv %s502
    %v504 = vmul.f32 %v503, %v476
    %v505 = vmul.f32 %v503, %v477
    %v506 = vadd.f32 %v362, %v504
    %v507 = vadd.f32 %v363, %v505
    %s508 = sld [smem:[#allocation9 + $0x1c]]
    %v509 = vstv %s508
    %v510 = vmul.f32 %v509, %v286
    %v511 = vmul.f32 %v509, %v287
    %v512 = vadd.f32 %v506, %v510
    %v513 = vadd.f32 %v507, %v511
    %s514 = sld [smem:[#allocation9 + $0x1d]]
    %v515 = vstv %s514
    %v516 = vmul.f32 %v515, %v482
    %v517 = vmul.f32 %v515, %v483
    %v518 = vadd.f32 %v512, %v516
    %v519 = vadd.f32 %v513, %v517
    %s520 = sld [smem:[#allocation9 + $0x33]]
    %v521 = vstv %s520
    %v522 = vmul.f32 %v521, %v476
    %v523 = vmul.f32 %v521, %v477
    %v524 = vadd.f32 %v380, %v522
    %v525 = vadd.f32 %v381, %v523
    %s526 = sld [smem:[#allocation9 + $0x34]]
    %v527 = vstv %s526
    %v528 = vmul.f32 %v527, %v286
    %v529 = vmul.f32 %v527, %v287
    %v530 = vadd.f32 %v524, %v528
    %v531 = vadd.f32 %v525, %v529
    %s532 = sld [smem:[#allocation9 + $0x35]]
    %v533 = vstv %s532
    %v534 = vmul.f32 %v533, %v482
    %v535 = vmul.f32 %v533, %v483
    %v536 = vadd.f32 %v530, %v534
    %v537 = vadd.f32 %v531, %v535
    %s538 = sld [smem:[#allocation9 + $0x4b]]
    %v539 = vstv %s538
    %v540 = vmul.f32 %v539, %v476
    %v541 = vmul.f32 %v539, %v477
    %v542 = vadd.f32 %v398, %v540
    %v543 = vadd.f32 %v399, %v541
    %s544 = sld [smem:[#allocation9 + $0x4c]]
    %v545 = vstv %s544
    %v546 = vmul.f32 %v545, %v286
    %v547 = vmul.f32 %v545, %v287
    %v548 = vadd.f32 %v542, %v546
    %v549 = vadd.f32 %v543, %v547
    %s550 = sld [smem:[#allocation9 + $0x4d]]
    %v551 = vstv %s550
    %v552 = vmul.f32 %v551, %v482
    %v553 = vmul.f32 %v551, %v483
    %v554 = vadd.f32 %v548, %v552
    %v555 = vadd.f32 %v549, %v553
    %s556 = sld [smem:[#allocation9 + $0x63]]
    %v557 = vstv %s556
    %v558 = vmul.f32 %v557, %v476
    %v559 = vmul.f32 %v557, %v477
    %v560 = vadd.f32 %v416, %v558
    %v561 = vadd.f32 %v417, %v559
    %s562 = sld [smem:[#allocation9 + $0x64]]
    %v563 = vstv %s562
    %v564 = vmul.f32 %v563, %v286
    %v565 = vmul.f32 %v563, %v287
    %v566 = vadd.f32 %v560, %v564
    %v567 = vadd.f32 %v561, %v565
    %s568 = sld [smem:[#allocation9 + $0x65]]
    %v569 = vstv %s568
    %v570 = vmul.f32 %v569, %v482
    %v571 = vmul.f32 %v569, %v483
    %v572 = vadd.f32 %v566, %v570
    %v573 = vadd.f32 %v567, %v571
    %s574 = sld [smem:[#allocation9 + $0x7b]]
    %v575 = vstv %s574
    %v576 = vmul.f32 %v575, %v476
    %v577 = vmul.f32 %v575, %v477
    %v578 = vadd.f32 %v434, %v576
    %v579 = vadd.f32 %v435, %v577
    %s580 = sld [smem:[#allocation9 + $0x7c]]
    %v581 = vstv %s580
    %v582 = vmul.f32 %v581, %v286
    %v583 = vmul.f32 %v581, %v287
    %v584 = vadd.f32 %v578, %v582
    %v585 = vadd.f32 %v579, %v583
    %s586 = sld [smem:[#allocation9 + $0x7d]]
    %v587 = vstv %s586
    %v588 = vmul.f32 %v587, %v482
    %v589 = vmul.f32 %v587, %v483
    %v590 = vadd.f32 %v584, %v588
    %v591 = vadd.f32 %v585, %v589
    %s592 = sld [smem:[#allocation9 + $0x93]]
    %v593 = vstv %s592
    %v594 = vmul.f32 %v593, %v476
    %v595 = vmul.f32 %v593, %v477
    %v596 = vadd.f32 %v452, %v594
    %v597 = vadd.f32 %v453, %v595
    %s598 = sld [smem:[#allocation9 + $0x94]]
    %v599 = vstv %s598
    %v600 = vmul.f32 %v599, %v286
    %v601 = vmul.f32 %v599, %v287
    %v602 = vadd.f32 %v596, %v600
    %v603 = vadd.f32 %v597, %v601
    %s604 = sld [smem:[#allocation9 + $0x95]]
    %v605 = vstv %s604
    %v606 = vmul.f32 %v605, %v482
    %v607 = vmul.f32 %v605, %v483
    %v608 = vadd.f32 %v602, %v606
    %v609 = vadd.f32 %v603, %v607
    %s610 = sld [smem:[#allocation9 + $0xab]]
    %v611 = vstv %s610
    %v612 = vmul.f32 %v611, %v476
    %v613 = vmul.f32 %v611, %v477
    %v614 = vadd.f32 %v470, %v612
    %v615 = vadd.f32 %v471, %v613
    %s616 = sld [smem:[#allocation9 + $0xac]]
    %v617 = vstv %s616
    %v618 = vmul.f32 %v617, %v286
    %v619 = vmul.f32 %v617, %v287
    %v620 = vadd.f32 %v614, %v618
    %v621 = vadd.f32 %v615, %v619
    %s622 = sld [smem:[#allocation9 + $0xad]]
    %v623 = vstv %s622
    %v624 = vmul.f32 %v623, %v482
    %v625 = vmul.f32 %v623, %v483
    %v626 = vadd.f32 %v620, %v624
    %v627 = vadd.f32 %v621, %v625
    %v628 = vrot.slane %v288, 7
    %v629 = vrot.slane %v289, 7
    %v630 = vsel %vm112, %v628, %v629
    %v631 = vsel %vm112, %v629, %v628
    %v632 = vsel %vm121, %v631, 0.0
    %v633 = vsel %vm122, %v630, 0.0
    %v634 = vrot.slane %v288, 1
    %v635 = vrot.slane %v289, 1
    %v636 = vsel %vm127, %v634, %v635
    %v637 = vsel %vm127, %v635, %v634
    %v638 = vsel %vm136, %v636, 0.0
    %v639 = vsel %vm137, %v637, 0.0
    %s640 = sld [smem:[#allocation9 + $0x6]]
    %v641 = vstv %s640
    %v642 = vmul.f32 %v641, %v632
    %v643 = vmul.f32 %v641, %v633
    %v644 = vadd.f32 %v500, %v642
    %v645 = vadd.f32 %v501, %v643
    %s646 = sld [smem:[#allocation9 + $0x7]]
    %v647 = vstv %s646
    %v648 = vmul.f32 %v647, %v288
    %v649 = vmul.f32 %v647, %v289
    %v650 = vadd.f32 %v644, %v648
    %v651 = vadd.f32 %v645, %v649
    %s652 = sld [smem:[#allocation9 + $0x8]]
    %v653 = vstv %s652
    %v654 = vmul.f32 %v653, %v638
    %v655 = vmul.f32 %v653, %v639
    %v656 = vadd.f32 %v650, %v654
    %v657 = vadd.f32 %v651, %v655
    %s658 = sld [smem:[#allocation9 + $0x1e]]
    %v659 = vstv %s658
    %v660 = vmul.f32 %v659, %v632
    %v661 = vmul.f32 %v659, %v633
    %v662 = vadd.f32 %v518, %v660
    %v663 = vadd.f32 %v519, %v661
    %s664 = sld [smem:[#allocation9 + $0x1f]]
    %v665 = vstv %s664
    %v666 = vmul.f32 %v665, %v288
    %v667 = vmul.f32 %v665, %v289
    %v668 = vadd.f32 %v662, %v666
    %v669 = vadd.f32 %v663, %v667
    %s670 = sld [smem:[#allocation9 + $0x20]]
    %v671 = vstv %s670
    %v672 = vmul.f32 %v671, %v638
    %v673 = vmul.f32 %v671, %v639
    %v674 = vadd.f32 %v668, %v672
    %v675 = vadd.f32 %v669, %v673
    %s676 = sld [smem:[#allocation9 + $0x36]]
    %v677 = vstv %s676
    %v678 = vmul.f32 %v677, %v632
    %v679 = vmul.f32 %v677, %v633
    %v680 = vadd.f32 %v536, %v678
    %v681 = vadd.f32 %v537, %v679
    %s682 = sld [smem:[#allocation9 + $0x37]]
    %v683 = vstv %s682
    %v684 = vmul.f32 %v683, %v288
    %v685 = vmul.f32 %v683, %v289
    %v686 = vadd.f32 %v680, %v684
    %v687 = vadd.f32 %v681, %v685
    %s688 = sld [smem:[#allocation9 + $0x38]]
    %v689 = vstv %s688
    %v690 = vmul.f32 %v689, %v638
    %v691 = vmul.f32 %v689, %v639
    %v692 = vadd.f32 %v686, %v690
    %v693 = vadd.f32 %v687, %v691
    %s694 = sld [smem:[#allocation9 + $0x4e]]
    %v695 = vstv %s694
    %v696 = vmul.f32 %v695, %v632
    %v697 = vmul.f32 %v695, %v633
    %v698 = vadd.f32 %v554, %v696
    %v699 = vadd.f32 %v555, %v697
    %s700 = sld [smem:[#allocation9 + $0x4f]]
    %v701 = vstv %s700
    %v702 = vmul.f32 %v701, %v288
    %v703 = vmul.f32 %v701, %v289
    %v704 = vadd.f32 %v698, %v702
    %v705 = vadd.f32 %v699, %v703
    %s706 = sld [smem:[#allocation9 + $0x50]]
    %v707 = vstv %s706
    %v708 = vmul.f32 %v707, %v638
    %v709 = vmul.f32 %v707, %v639
    %v710 = vadd.f32 %v704, %v708
    %v711 = vadd.f32 %v705, %v709
    %s712 = sld [smem:[#allocation9 + $0x66]]
    %v713 = vstv %s712
    %v714 = vmul.f32 %v713, %v632
    %v715 = vmul.f32 %v713, %v633
    %v716 = vadd.f32 %v572, %v714
    %v717 = vadd.f32 %v573, %v715
    %s718 = sld [smem:[#allocation9 + $0x67]]
    %v719 = vstv %s718
    %v720 = vmul.f32 %v719, %v288
    %v721 = vmul.f32 %v719, %v289
    %v722 = vadd.f32 %v716, %v720
    %v723 = vadd.f32 %v717, %v721
    %s724 = sld [smem:[#allocation9 + $0x68]]
    %v725 = vstv %s724
    %v726 = vmul.f32 %v725, %v638
    %v727 = vmul.f32 %v725, %v639
    %v728 = vadd.f32 %v722, %v726
    %v729 = vadd.f32 %v723, %v727
    %s730 = sld [smem:[#allocation9 + $0x7e]]
    %v731 = vstv %s730
    %v732 = vmul.f32 %v731, %v632
    %v733 = vmul.f32 %v731, %v633
    %v734 = vadd.f32 %v590, %v732
    %v735 = vadd.f32 %v591, %v733
    %s736 = sld [smem:[#allocation9 + $0x7f]]
    %v737 = vstv %s736
    %v738 = vmul.f32 %v737, %v288
    %v739 = vmul.f32 %v737, %v289
    %v740 = vadd.f32 %v734, %v738
    %v741 = vadd.f32 %v735, %v739
    %s742 = sld [smem:[#allocation9 + $0x80]]
    %v743 = vstv %s742
    %v744 = vmul.f32 %v743, %v638
    %v745 = vmul.f32 %v743, %v639
    %v746 = vadd.f32 %v740, %v744
    %v747 = vadd.f32 %v741, %v745
    %s748 = sld [smem:[#allocation9 + $0x96]]
    %v749 = vstv %s748
    %v750 = vmul.f32 %v749, %v632
    %v751 = vmul.f32 %v749, %v633
    %v752 = vadd.f32 %v608, %v750
    %v753 = vadd.f32 %v609, %v751
    %s754 = sld [smem:[#allocation9 + $0x97]]
    %v755 = vstv %s754
    %v756 = vmul.f32 %v755, %v288
    %v757 = vmul.f32 %v755, %v289
    %v758 = vadd.f32 %v752, %v756
    %v759 = vadd.f32 %v753, %v757
    %s760 = sld [smem:[#allocation9 + $0x98]]
    %v761 = vstv %s760
    %v762 = vmul.f32 %v761, %v638
    %v763 = vmul.f32 %v761, %v639
    %v764 = vadd.f32 %v758, %v762
    %v765 = vadd.f32 %v759, %v763
    %s766 = sld [smem:[#allocation9 + $0xae]]
    %v767 = vstv %s766
    %v768 = vmul.f32 %v767, %v632
    %v769 = vmul.f32 %v767, %v633
    %v770 = vadd.f32 %v626, %v768
    %v771 = vadd.f32 %v627, %v769
    %s772 = sld [smem:[#allocation9 + $0xaf]]
    %v773 = vstv %s772
    %v774 = vmul.f32 %v773, %v288
    %v775 = vmul.f32 %v773, %v289
    %v776 = vadd.f32 %v770, %v774
    %v777 = vadd.f32 %v771, %v775
    %s778 = sld [smem:[#allocation9 + $0xb0]]
    %v779 = vstv %s778
    %v780 = vmul.f32 %v779, %v638
    %v781 = vmul.f32 %v779, %v639
    %v782 = vadd.f32 %v776, %v780
    %v783 = vadd.f32 %v777, %v781
    %v784 = vrot.slane %v290, 7
    %v785 = vrot.slane %v291, 7
    %v786 = vsel %vm112, %v784, %v785
    %v787 = vsel %vm112, %v785, %v784
    %v788 = vsel %vm121, %v787, 0.0
    %v789 = vsel %vm122, %v786, 0.0
    %v790 = vrot.slane %v290, 1
    %v791 = vrot.slane %v291, 1
    %v792 = vsel %vm127, %v790, %v791
    %v793 = vsel %vm127, %v791, %v790
    %v794 = vsel %vm136, %v792, 0.0
    %v795 = vsel %vm137, %v793, 0.0
    %s796 = sld [smem:[#allocation9 + $0x9]]
    %v797 = vstv %s796
    %v798 = vmul.f32 %v797, %v788
    %v799 = vmul.f32 %v797, %v789
    %v800 = vadd.f32 %v656, %v798
    %v801 = vadd.f32 %v657, %v799
    %s802 = sld [smem:[#allocation9 + $0xa]]
    %v803 = vstv %s802
    %v804 = vmul.f32 %v803, %v290
    %v805 = vmul.f32 %v803, %v291
    %v806 = vadd.f32 %v800, %v804
    %v807 = vadd.f32 %v801, %v805
    %s808 = sld [smem:[#allocation9 + $0xb]]
    %v809 = vstv %s808
    %v810 = vmul.f32 %v809, %v794
    %v811 = vmul.f32 %v809, %v795
    %v812 = vadd.f32 %v806, %v810
    %v813 = vadd.f32 %v807, %v811
    %s814 = sld [smem:[#allocation9 + $0x21]]
    %v815 = vstv %s814
    %v816 = vmul.f32 %v815, %v788
    %v817 = vmul.f32 %v815, %v789
    %v818 = vadd.f32 %v674, %v816
    %v819 = vadd.f32 %v675, %v817
    %s820 = sld [smem:[#allocation9 + $0x22]]
    %v821 = vstv %s820
    %v822 = vmul.f32 %v821, %v290
    %v823 = vmul.f32 %v821, %v291
    %v824 = vadd.f32 %v818, %v822
    %v825 = vadd.f32 %v819, %v823
    %s826 = sld [smem:[#allocation9 + $0x23]]
    %v827 = vstv %s826
    %v828 = vmul.f32 %v827, %v794
    %v829 = vmul.f32 %v827, %v795
    %v830 = vadd.f32 %v824, %v828
    %v831 = vadd.f32 %v825, %v829
    %s832 = sld [smem:[#allocation9 + $0x39]]
    %v833 = vstv %s832
    %v834 = vmul.f32 %v833, %v788
    %v835 = vmul.f32 %v833, %v789
    %v836 = vadd.f32 %v692, %v834
    %v837 = vadd.f32 %v693, %v835
    %s838 = sld [smem:[#allocation9 + $0x3a]]
    %v839 = vstv %s838
    %v840 = vmul.f32 %v839, %v290
    %v841 = vmul.f32 %v839, %v291
    %v842 = vadd.f32 %v836, %v840
    %v843 = vadd.f32 %v837, %v841
    %s844 = sld [smem:[#allocation9 + $0x3b]]
    %v845 = vstv %s844
    %v846 = vmul.f32 %v845, %v794
    %v847 = vmul.f32 %v845, %v795
    %v848 = vadd.f32 %v842, %v846
    %v849 = vadd.f32 %v843, %v847
    %s850 = sld [smem:[#allocation9 + $0x51]]
    %v851 = vstv %s850
    %v852 = vmul.f32 %v851, %v788
    %v853 = vmul.f32 %v851, %v789
    %v854 = vadd.f32 %v710, %v852
    %v855 = vadd.f32 %v711, %v853
    %s856 = sld [smem:[#allocation9 + $0x52]]
    %v857 = vstv %s856
    %v858 = vmul.f32 %v857, %v290
    %v859 = vmul.f32 %v857, %v291
    %v860 = vadd.f32 %v854, %v858
    %v861 = vadd.f32 %v855, %v859
    %s862 = sld [smem:[#allocation9 + $0x53]]
    %v863 = vstv %s862
    %v864 = vmul.f32 %v863, %v794
    %v865 = vmul.f32 %v863, %v795
    %v866 = vadd.f32 %v860, %v864
    %v867 = vadd.f32 %v861, %v865
    %s868 = sld [smem:[#allocation9 + $0x69]]
    %v869 = vstv %s868
    %v870 = vmul.f32 %v869, %v788
    %v871 = vmul.f32 %v869, %v789
    %v872 = vadd.f32 %v728, %v870
    %v873 = vadd.f32 %v729, %v871
    %s874 = sld [smem:[#allocation9 + $0x6a]]
    %v875 = vstv %s874
    %v876 = vmul.f32 %v875, %v290
    %v877 = vmul.f32 %v875, %v291
    %v878 = vadd.f32 %v872, %v876
    %v879 = vadd.f32 %v873, %v877
    %s880 = sld [smem:[#allocation9 + $0x6b]]
    %v881 = vstv %s880
    %v882 = vmul.f32 %v881, %v794
    %v883 = vmul.f32 %v881, %v795
    %v884 = vadd.f32 %v878, %v882
    %v885 = vadd.f32 %v879, %v883
    %s886 = sld [smem:[#allocation9 + $0x81]]
    %v887 = vstv %s886
    %v888 = vmul.f32 %v887, %v788
    %v889 = vmul.f32 %v887, %v789
    %v890 = vadd.f32 %v746, %v888
    %v891 = vadd.f32 %v747, %v889
    %s892 = sld [smem:[#allocation9 + $0x82]]
    %v893 = vstv %s892
    %v894 = vmul.f32 %v893, %v290
    %v895 = vmul.f32 %v893, %v291
    %v896 = vadd.f32 %v890, %v894
    %v897 = vadd.f32 %v891, %v895
    %s898 = sld [smem:[#allocation9 + $0x83]]
    %v899 = vstv %s898
    %v900 = vmul.f32 %v899, %v794
    %v901 = vmul.f32 %v899, %v795
    %v902 = vadd.f32 %v896, %v900
    %v903 = vadd.f32 %v897, %v901
    %s904 = sld [smem:[#allocation9 + $0x99]]
    %v905 = vstv %s904
    %v906 = vmul.f32 %v905, %v788
    %v907 = vmul.f32 %v905, %v789
    %v908 = vadd.f32 %v764, %v906
    %v909 = vadd.f32 %v765, %v907
    %s910 = sld [smem:[#allocation9 + $0x9a]]
    %v911 = vstv %s910
    %v912 = vmul.f32 %v911, %v290
    %v913 = vmul.f32 %v911, %v291
    %v914 = vadd.f32 %v908, %v912
    %v915 = vadd.f32 %v909, %v913
    %s916 = sld [smem:[#allocation9 + $0x9b]]
    %v917 = vstv %s916
    %v918 = vmul.f32 %v917, %v794
    %v919 = vmul.f32 %v917, %v795
    %v920 = vadd.f32 %v914, %v918
    %v921 = vadd.f32 %v915, %v919
    %s922 = sld [smem:[#allocation9 + $0xb1]]
    %v923 = vstv %s922
    %v924 = vmul.f32 %v923, %v788
    %v925 = vmul.f32 %v923, %v789
    %v926 = vadd.f32 %v782, %v924
    %v927 = vadd.f32 %v783, %v925
    %s928 = sld [smem:[#allocation9 + $0xb2]]
    %v929 = vstv %s928
    %v930 = vmul.f32 %v929, %v290
    %v931 = vmul.f32 %v929, %v291
    %v932 = vadd.f32 %v926, %v930
    %v933 = vadd.f32 %v927, %v931
    %s934 = sld [smem:[#allocation9 + $0xb3]]
    %v935 = vstv %s934
    %v936 = vmul.f32 %v935, %v794
    %v937 = vmul.f32 %v935, %v795
    %v938 = vadd.f32 %v932, %v936
    %v939 = vadd.f32 %v933, %v937
    %v940 = vrot.slane %v292, 7
    %v941 = vrot.slane %v293, 7
    %v942 = vsel %vm112, %v940, %v941
    %v943 = vsel %vm112, %v941, %v940
    %v944 = vsel %vm121, %v943, 0.0
    %v945 = vsel %vm122, %v942, 0.0
    %v946 = vrot.slane %v292, 1
    %v947 = vrot.slane %v293, 1
    %v948 = vsel %vm127, %v946, %v947
    %v949 = vsel %vm127, %v947, %v946
    %v950 = vsel %vm136, %v948, 0.0
    %v951 = vsel %vm137, %v949, 0.0
    %s952 = sld [smem:[#allocation9 + $0xc]]
    %v953 = vstv %s952
    %v954 = vmul.f32 %v953, %v944
    %v955 = vmul.f32 %v953, %v945
    %v956 = vadd.f32 %v812, %v954
    %v957 = vadd.f32 %v813, %v955
    %s958 = sld [smem:[#allocation9 + $0xd]]
    %v959 = vstv %s958
    %v960 = vmul.f32 %v959, %v292
    %v961 = vmul.f32 %v959, %v293
    %v962 = vadd.f32 %v956, %v960
    %v963 = vadd.f32 %v957, %v961
    %s964 = sld [smem:[#allocation9 + $0xe]]
    %v965 = vstv %s964
    %v966 = vmul.f32 %v965, %v950
    %v967 = vmul.f32 %v965, %v951
    %v968 = vadd.f32 %v962, %v966
    %v969 = vadd.f32 %v963, %v967
    %s970 = sld [smem:[#allocation9 + $0x24]]
    %v971 = vstv %s970
    %v972 = vmul.f32 %v971, %v944
    %v973 = vmul.f32 %v971, %v945
    %v974 = vadd.f32 %v830, %v972
    %v975 = vadd.f32 %v831, %v973
    %s976 = sld [smem:[#allocation9 + $0x25]]
    %v977 = vstv %s976
    %v978 = vmul.f32 %v977, %v292
    %v979 = vmul.f32 %v977, %v293
    %v980 = vadd.f32 %v974, %v978
    %v981 = vadd.f32 %v975, %v979
    %s982 = sld [smem:[#allocation9 + $0x26]]
    %v983 = vstv %s982
    %v984 = vmul.f32 %v983, %v950
    %v985 = vmul.f32 %v983, %v951
    %v986 = vadd.f32 %v980, %v984
    %v987 = vadd.f32 %v981, %v985
    %s988 = sld [smem:[#allocation9 + $0x3c]]
    %v989 = vstv %s988
    %v990 = vmul.f32 %v989, %v944
    %v991 = vmul.f32 %v989, %v945
    %v992 = vadd.f32 %v848, %v990
    %v993 = vadd.f32 %v849, %v991
    %s994 = sld [smem:[#allocation9 + $0x3d]]
    %v995 = vstv %s994
    %v996 = vmul.f32 %v995, %v292
    %v997 = vmul.f32 %v995, %v293
    %v998 = vadd.f32 %v992, %v996
    %v999 = vadd.f32 %v993, %v997
    %s1000 = sld [smem:[#allocation9 + $0x3e]]
    %v1001 = vstv %s1000
    %v1002 = vmul.f32 %v1001, %v950
    %v1003 = vmul.f32 %v1001, %v951
    %v1004 = vadd.f32 %v998, %v1002
    %v1005 = vadd.f32 %v999, %v1003
    %s1006 = sld [smem:[#allocation9 + $0x54]]
    %v1007 = vstv %s1006
    %v1008 = vmul.f32 %v1007, %v944
    %v1009 = vmul.f32 %v1007, %v945
    %v1010 = vadd.f32 %v866, %v1008
    %v1011 = vadd.f32 %v867, %v1009
    %s1012 = sld [smem:[#allocation9 + $0x55]]
    %v1013 = vstv %s1012
    %v1014 = vmul.f32 %v1013, %v292
    %v1015 = vmul.f32 %v1013, %v293
    %v1016 = vadd.f32 %v1010, %v1014
    %v1017 = vadd.f32 %v1011, %v1015
    %s1018 = sld [smem:[#allocation9 + $0x56]]
    %v1019 = vstv %s1018
    %v1020 = vmul.f32 %v1019, %v950
    %v1021 = vmul.f32 %v1019, %v951
    %v1022 = vadd.f32 %v1016, %v1020
    %v1023 = vadd.f32 %v1017, %v1021
    %s1024 = sld [smem:[#allocation9 + $0x6c]]
    %v1025 = vstv %s1024
    %v1026 = vmul.f32 %v1025, %v944
    %v1027 = vmul.f32 %v1025, %v945
    %v1028 = vadd.f32 %v884, %v1026
    %v1029 = vadd.f32 %v885, %v1027
    %s1030 = sld [smem:[#allocation9 + $0x6d]]
    %v1031 = vstv %s1030
    %v1032 = vmul.f32 %v1031, %v292
    %v1033 = vmul.f32 %v1031, %v293
    %v1034 = vadd.f32 %v1028, %v1032
    %v1035 = vadd.f32 %v1029, %v1033
    %s1036 = sld [smem:[#allocation9 + $0x6e]]
    %v1037 = vstv %s1036
    %v1038 = vmul.f32 %v1037, %v950
    %v1039 = vmul.f32 %v1037, %v951
    %v1040 = vadd.f32 %v1034, %v1038
    %v1041 = vadd.f32 %v1035, %v1039
    %s1042 = sld [smem:[#allocation9 + $0x84]]
    %v1043 = vstv %s1042
    %v1044 = vmul.f32 %v1043, %v944
    %v1045 = vmul.f32 %v1043, %v945
    %v1046 = vadd.f32 %v902, %v1044
    %v1047 = vadd.f32 %v903, %v1045
    %s1048 = sld [smem:[#allocation9 + $0x85]]
    %v1049 = vstv %s1048
    %v1050 = vmul.f32 %v1049, %v292
    %v1051 = vmul.f32 %v1049, %v293
    %v1052 = vadd.f32 %v1046, %v1050
    %v1053 = vadd.f32 %v1047, %v1051
    %s1054 = sld [smem:[#allocation9 + $0x86]]
    %v1055 = vstv %s1054
    %v1056 = vmul.f32 %v1055, %v950
    %v1057 = vmul.f32 %v1055, %v951
    %v1058 = vadd.f32 %v1052, %v1056
    %v1059 = vadd.f32 %v1053, %v1057
    %s1060 = sld [smem:[#allocation9 + $0x9c]]
    %v1061 = vstv %s1060
    %v1062 = vmul.f32 %v1061, %v944
    %v1063 = vmul.f32 %v1061, %v945
    %v1064 = vadd.f32 %v920, %v1062
    %v1065 = vadd.f32 %v921, %v1063
    %s1066 = sld [smem:[#allocation9 + $0x9d]]
    %v1067 = vstv %s1066
    %v1068 = vmul.f32 %v1067, %v292
    %v1069 = vmul.f32 %v1067, %v293
    %v1070 = vadd.f32 %v1064, %v1068
    %v1071 = vadd.f32 %v1065, %v1069
    %s1072 = sld [smem:[#allocation9 + $0x9e]]
    %v1073 = vstv %s1072
    %v1074 = vmul.f32 %v1073, %v950
    %v1075 = vmul.f32 %v1073, %v951
    %v1076 = vadd.f32 %v1070, %v1074
    %v1077 = vadd.f32 %v1071, %v1075
    %s1078 = sld [smem:[#allocation9 + $0xb4]]
    %v1079 = vstv %s1078
    %v1080 = vmul.f32 %v1079, %v944
    %v1081 = vmul.f32 %v1079, %v945
    %v1082 = vadd.f32 %v938, %v1080
    %v1083 = vadd.f32 %v939, %v1081
    %s1084 = sld [smem:[#allocation9 + $0xb5]]
    %v1085 = vstv %s1084
    %v1086 = vmul.f32 %v1085, %v292
    %v1087 = vmul.f32 %v1085, %v293
    %v1088 = vadd.f32 %v1082, %v1086
    %v1089 = vadd.f32 %v1083, %v1087
    %s1090 = sld [smem:[#allocation9 + $0xb6]]
    %v1091 = vstv %s1090
    %v1092 = vmul.f32 %v1091, %v950
    %v1093 = vmul.f32 %v1091, %v951
    %v1094 = vadd.f32 %v1088, %v1092
    %v1095 = vadd.f32 %v1089, %v1093
    %v1096 = vrot.slane %v294, 7
    %v1097 = vrot.slane %v295, 7
    %v1098 = vsel %vm112, %v1096, %v1097
    %v1099 = vsel %vm112, %v1097, %v1096
    %v1100 = vsel %vm121, %v1099, 0.0
    %v1101 = vsel %vm122, %v1098, 0.0
    %v1102 = vrot.slane %v294, 1
    %v1103 = vrot.slane %v295, 1
    %v1104 = vsel %vm127, %v1102, %v1103
    %v1105 = vsel %vm127, %v1103, %v1102
    %v1106 = vsel %vm136, %v1104, 0.0
    %v1107 = vsel %vm137, %v1105, 0.0
    %s1108 = sld [smem:[#allocation9 + $0xf]]
    %v1109 = vstv %s1108
    %v1110 = vmul.f32 %v1109, %v1100
    %v1111 = vmul.f32 %v1109, %v1101
    %v1112 = vadd.f32 %v968, %v1110
    %v1113 = vadd.f32 %v969, %v1111
    %s1114 = sld [smem:[#allocation9 + $0x10]]
    %v1115 = vstv %s1114
    %v1116 = vmul.f32 %v1115, %v294
    %v1117 = vmul.f32 %v1115, %v295
    %v1118 = vadd.f32 %v1112, %v1116
    %v1119 = vadd.f32 %v1113, %v1117
    %s1120 = sld [smem:[#allocation9 + $0x11]]
    %v1121 = vstv %s1120
    %v1122 = vmul.f32 %v1121, %v1106
    %v1123 = vmul.f32 %v1121, %v1107
    %v1124 = vadd.f32 %v1118, %v1122
    %v1125 = vadd.f32 %v1119, %v1123
    %s1126 = sld [smem:[#allocation9 + $0x27]]
    %v1127 = vstv %s1126
    %v1128 = vmul.f32 %v1127, %v1100
    %v1129 = vmul.f32 %v1127, %v1101
    %v1130 = vadd.f32 %v986, %v1128
    %v1131 = vadd.f32 %v987, %v1129
    %s1132 = sld [smem:[#allocation9 + $0x28]]
    %v1133 = vstv %s1132
    %v1134 = vmul.f32 %v1133, %v294
    %v1135 = vmul.f32 %v1133, %v295
    %v1136 = vadd.f32 %v1130, %v1134
    %v1137 = vadd.f32 %v1131, %v1135
    %s1138 = sld [smem:[#allocation9 + $0x29]]
    %v1139 = vstv %s1138
    %v1140 = vmul.f32 %v1139, %v1106
    %v1141 = vmul.f32 %v1139, %v1107
    %v1142 = vadd.f32 %v1136, %v1140
    %v1143 = vadd.f32 %v1137, %v1141
    %s1144 = sld [smem:[#allocation9 + $0x3f]]
    %v1145 = vstv %s1144
    %v1146 = vmul.f32 %v1145, %v1100
    %v1147 = vmul.f32 %v1145, %v1101
    %v1148 = vadd.f32 %v1004, %v1146
    %v1149 = vadd.f32 %v1005, %v1147
    %s1150 = sld [smem:[#allocation9 + $0x40]]
    %v1151 = vstv %s1150
    %v1152 = vmul.f32 %v1151, %v294
    %v1153 = vmul.f32 %v1151, %v295
    %v1154 = vadd.f32 %v1148, %v1152
    %v1155 = vadd.f32 %v1149, %v1153
    %s1156 = sld [smem:[#allocation9 + $0x41]]
    %v1157 = vstv %s1156
    %v1158 = vmul.f32 %v1157, %v1106
    %v1159 = vmul.f32 %v1157, %v1107
    %v1160 = vadd.f32 %v1154, %v1158
    %v1161 = vadd.f32 %v1155, %v1159
    %s1162 = sld [smem:[#allocation9 + $0x57]]
    %v1163 = vstv %s1162
    %v1164 = vmul.f32 %v1163, %v1100
    %v1165 = vmul.f32 %v1163, %v1101
    %v1166 = vadd.f32 %v1022, %v1164
    %v1167 = vadd.f32 %v1023, %v1165
    %s1168 = sld [smem:[#allocation9 + $0x58]]
    %v1169 = vstv %s1168
    %v1170 = vmul.f32 %v1169, %v294
    %v1171 = vmul.f32 %v1169, %v295
    %v1172 = vadd.f32 %v1166, %v1170
    %v1173 = vadd.f32 %v1167, %v1171
    %s1174 = sld [smem:[#allocation9 + $0x59]]
    %v1175 = vstv %s1174
    %v1176 = vmul.f32 %v1175, %v1106
    %v1177 = vmul.f32 %v1175, %v1107
    %v1178 = vadd.f32 %v1172, %v1176
    %v1179 = vadd.f32 %v1173, %v1177
    %s1180 = sld [smem:[#allocation9 + $0x6f]]
    %v1181 = vstv %s1180
    %v1182 = vmul.f32 %v1181, %v1100
    %v1183 = vmul.f32 %v1181, %v1101
    %v1184 = vadd.f32 %v1040, %v1182
    %v1185 = vadd.f32 %v1041, %v1183
    %s1186 = sld [smem:[#allocation9 + $0x70]]
    %v1187 = vstv %s1186
    %v1188 = vmul.f32 %v1187, %v294
    %v1189 = vmul.f32 %v1187, %v295
    %v1190 = vadd.f32 %v1184, %v1188
    %v1191 = vadd.f32 %v1185, %v1189
    %s1192 = sld [smem:[#allocation9 + $0x71]]
    %v1193 = vstv %s1192
    %v1194 = vmul.f32 %v1193, %v1106
    %v1195 = vmul.f32 %v1193, %v1107
    %v1196 = vadd.f32 %v1190, %v1194
    %v1197 = vadd.f32 %v1191, %v1195
    %s1198 = sld [smem:[#allocation9 + $0x87]]
    %v1199 = vstv %s1198
    %v1200 = vmul.f32 %v1199, %v1100
    %v1201 = vmul.f32 %v1199, %v1101
    %v1202 = vadd.f32 %v1058, %v1200
    %v1203 = vadd.f32 %v1059, %v1201
    %s1204 = sld [smem:[#allocation9 + $0x88]]
    %v1205 = vstv %s1204
    %v1206 = vmul.f32 %v1205, %v294
    %v1207 = vmul.f32 %v1205, %v295
    %v1208 = vadd.f32 %v1202, %v1206
    %v1209 = vadd.f32 %v1203, %v1207
    %s1210 = sld [smem:[#allocation9 + $0x89]]
    %v1211 = vstv %s1210
    %v1212 = vmul.f32 %v1211, %v1106
    %v1213 = vmul.f32 %v1211, %v1107
    %v1214 = vadd.f32 %v1208, %v1212
    %v1215 = vadd.f32 %v1209, %v1213
    %s1216 = sld [smem:[#allocation9 + $0x9f]]
    %v1217 = vstv %s1216
    %v1218 = vmul.f32 %v1217, %v1100
    %v1219 = vmul.f32 %v1217, %v1101
    %v1220 = vadd.f32 %v1076, %v1218
    %v1221 = vadd.f32 %v1077, %v1219
    %s1222 = sld [smem:[#allocation9 + $0xa0]]
    %v1223 = vstv %s1222
    %v1224 = vmul.f32 %v1223, %v294
    %v1225 = vmul.f32 %v1223, %v295
    %v1226 = vadd.f32 %v1220, %v1224
    %v1227 = vadd.f32 %v1221, %v1225
    %s1228 = sld [smem:[#allocation9 + $0xa1]]
    %v1229 = vstv %s1228
    %v1230 = vmul.f32 %v1229, %v1106
    %v1231 = vmul.f32 %v1229, %v1107
    %v1232 = vadd.f32 %v1226, %v1230
    %v1233 = vadd.f32 %v1227, %v1231
    %s1234 = sld [smem:[#allocation9 + $0xb7]]
    %v1235 = vstv %s1234
    %v1236 = vmul.f32 %v1235, %v1100
    %v1237 = vmul.f32 %v1235, %v1101
    %v1238 = vadd.f32 %v1094, %v1236
    %v1239 = vadd.f32 %v1095, %v1237
    %s1240 = sld [smem:[#allocation9 + $0xb8]]
    %v1241 = vstv %s1240
    %v1242 = vmul.f32 %v1241, %v294
    %v1243 = vmul.f32 %v1241, %v295
    %v1244 = vadd.f32 %v1238, %v1242
    %v1245 = vadd.f32 %v1239, %v1243
    %s1246 = sld [smem:[#allocation9 + $0xb9]]
    %v1247 = vstv %s1246
    %v1248 = vmul.f32 %v1247, %v1106
    %v1249 = vmul.f32 %v1247, %v1107
    %v1250 = vadd.f32 %v1244, %v1248
    %v1251 = vadd.f32 %v1245, %v1249
    %v1252 = vrot.slane %v296, 7
    %v1253 = vrot.slane %v297, 7
    %v1254 = vsel %vm112, %v1252, %v1253
    %v1255 = vsel %vm112, %v1253, %v1252
    %v1256 = vsel %vm121, %v1255, 0.0
    %v1257 = vsel %vm122, %v1254, 0.0
    %v1258 = vrot.slane %v296, 1
    %v1259 = vrot.slane %v297, 1
    %v1260 = vsel %vm127, %v1258, %v1259
    %v1261 = vsel %vm127, %v1259, %v1258
    %v1262 = vsel %vm136, %v1260, 0.0
    %v1263 = vsel %vm137, %v1261, 0.0
    %s1264 = sld [smem:[#allocation9 + $0x12]]
    %v1265 = vstv %s1264
    %v1266 = vmul.f32 %v1265, %v1256
    %v1267 = vmul.f32 %v1265, %v1257
    %v1268 = vadd.f32 %v1124, %v1266
    %v1269 = vadd.f32 %v1125, %v1267
    %s1270 = sld [smem:[#allocation9 + $0x13]]
    %v1271 = vstv %s1270
    %v1272 = vmul.f32 %v1271, %v296
    %v1273 = vmul.f32 %v1271, %v297
    %v1274 = vadd.f32 %v1268, %v1272
    %v1275 = vadd.f32 %v1269, %v1273
    %s1276 = sld [smem:[#allocation9 + $0x14]]
    %v1277 = vstv %s1276
    %v1278 = vmul.f32 %v1277, %v1262
    %v1279 = vmul.f32 %v1277, %v1263
    %v1280 = vadd.f32 %v1274, %v1278
    %v1281 = vadd.f32 %v1275, %v1279
    %s1282 = sld [smem:[#allocation9 + $0x2a]]
    %v1283 = vstv %s1282
    %v1284 = vmul.f32 %v1283, %v1256
    %v1285 = vmul.f32 %v1283, %v1257
    %v1286 = vadd.f32 %v1142, %v1284
    %v1287 = vadd.f32 %v1143, %v1285
    %s1288 = sld [smem:[#allocation9 + $0x2b]]
    %v1289 = vstv %s1288
    %v1290 = vmul.f32 %v1289, %v296
    %v1291 = vmul.f32 %v1289, %v297
    %v1292 = vadd.f32 %v1286, %v1290
    %v1293 = vadd.f32 %v1287, %v1291
    %s1294 = sld [smem:[#allocation9 + $0x2c]]
    %v1295 = vstv %s1294
    %v1296 = vmul.f32 %v1295, %v1262
    %v1297 = vmul.f32 %v1295, %v1263
    %v1298 = vadd.f32 %v1292, %v1296
    %v1299 = vadd.f32 %v1293, %v1297
    %s1300 = sld [smem:[#allocation9 + $0x42]]
    %v1301 = vstv %s1300
    %v1302 = vmul.f32 %v1301, %v1256
    %v1303 = vmul.f32 %v1301, %v1257
    %v1304 = vadd.f32 %v1160, %v1302
    %v1305 = vadd.f32 %v1161, %v1303
    %s1306 = sld [smem:[#allocation9 + $0x43]]
    %v1307 = vstv %s1306
    %v1308 = vmul.f32 %v1307, %v296
    %v1309 = vmul.f32 %v1307, %v297
    %v1310 = vadd.f32 %v1304, %v1308
    %v1311 = vadd.f32 %v1305, %v1309
    %s1312 = sld [smem:[#allocation9 + $0x44]]
    %v1313 = vstv %s1312
    %v1314 = vmul.f32 %v1313, %v1262
    %v1315 = vmul.f32 %v1313, %v1263
    %v1316 = vadd.f32 %v1310, %v1314
    %v1317 = vadd.f32 %v1311, %v1315
    %s1318 = sld [smem:[#allocation9 + $0x5a]]
    %v1319 = vstv %s1318
    %v1320 = vmul.f32 %v1319, %v1256
    %v1321 = vmul.f32 %v1319, %v1257
    %v1322 = vadd.f32 %v1178, %v1320
    %v1323 = vadd.f32 %v1179, %v1321
    %s1324 = sld [smem:[#allocation9 + $0x5b]]
    %v1325 = vstv %s1324
    %v1326 = vmul.f32 %v1325, %v296
    %v1327 = vmul.f32 %v1325, %v297
    %v1328 = vadd.f32 %v1322, %v1326
    %v1329 = vadd.f32 %v1323, %v1327
    %s1330 = sld [smem:[#allocation9 + $0x5c]]
    %v1331 = vstv %s1330
    %v1332 = vmul.f32 %v1331, %v1262
    %v1333 = vmul.f32 %v1331, %v1263
    %v1334 = vadd.f32 %v1328, %v1332
    %v1335 = vadd.f32 %v1329, %v1333
    %s1336 = sld [smem:[#allocation9 + $0x72]]
    %v1337 = vstv %s1336
    %v1338 = vmul.f32 %v1337, %v1256
    %v1339 = vmul.f32 %v1337, %v1257
    %v1340 = vadd.f32 %v1196, %v1338
    %v1341 = vadd.f32 %v1197, %v1339
    %s1342 = sld [smem:[#allocation9 + $0x73]]
    %v1343 = vstv %s1342
    %v1344 = vmul.f32 %v1343, %v296
    %v1345 = vmul.f32 %v1343, %v297
    %v1346 = vadd.f32 %v1340, %v1344
    %v1347 = vadd.f32 %v1341, %v1345
    %s1348 = sld [smem:[#allocation9 + $0x74]]
    %v1349 = vstv %s1348
    %v1350 = vmul.f32 %v1349, %v1262
    %v1351 = vmul.f32 %v1349, %v1263
    %v1352 = vadd.f32 %v1346, %v1350
    %v1353 = vadd.f32 %v1347, %v1351
    %s1354 = sld [smem:[#allocation9 + $0x8a]]
    %v1355 = vstv %s1354
    %v1356 = vmul.f32 %v1355, %v1256
    %v1357 = vmul.f32 %v1355, %v1257
    %v1358 = vadd.f32 %v1214, %v1356
    %v1359 = vadd.f32 %v1215, %v1357
    %s1360 = sld [smem:[#allocation9 + $0x8b]]
    %v1361 = vstv %s1360
    %v1362 = vmul.f32 %v1361, %v296
    %v1363 = vmul.f32 %v1361, %v297
    %v1364 = vadd.f32 %v1358, %v1362
    %v1365 = vadd.f32 %v1359, %v1363
    %s1366 = sld [smem:[#allocation9 + $0x8c]]
    %v1367 = vstv %s1366
    %v1368 = vmul.f32 %v1367, %v1262
    %v1369 = vmul.f32 %v1367, %v1263
    %v1370 = vadd.f32 %v1364, %v1368
    %v1371 = vadd.f32 %v1365, %v1369
    %s1372 = sld [smem:[#allocation9 + $0xa2]]
    %v1373 = vstv %s1372
    %v1374 = vmul.f32 %v1373, %v1256
    %v1375 = vmul.f32 %v1373, %v1257
    %v1376 = vadd.f32 %v1232, %v1374
    %v1377 = vadd.f32 %v1233, %v1375
    %s1378 = sld [smem:[#allocation9 + $0xa3]]
    %v1379 = vstv %s1378
    %v1380 = vmul.f32 %v1379, %v296
    %v1381 = vmul.f32 %v1379, %v297
    %v1382 = vadd.f32 %v1376, %v1380
    %v1383 = vadd.f32 %v1377, %v1381
    %s1384 = sld [smem:[#allocation9 + $0xa4]]
    %v1385 = vstv %s1384
    %v1386 = vmul.f32 %v1385, %v1262
    %v1387 = vmul.f32 %v1385, %v1263
    %v1388 = vadd.f32 %v1382, %v1386
    %v1389 = vadd.f32 %v1383, %v1387
    %s1390 = sld [smem:[#allocation9 + $0xba]]
    %v1391 = vstv %s1390
    %v1392 = vmul.f32 %v1391, %v1256
    %v1393 = vmul.f32 %v1391, %v1257
    %v1394 = vadd.f32 %v1250, %v1392
    %v1395 = vadd.f32 %v1251, %v1393
    %s1396 = sld [smem:[#allocation9 + $0xbb]]
    %v1397 = vstv %s1396
    %v1398 = vmul.f32 %v1397, %v296
    %v1399 = vmul.f32 %v1397, %v297
    %v1400 = vadd.f32 %v1394, %v1398
    %v1401 = vadd.f32 %v1395, %v1399
    %s1402 = sld [smem:[#allocation9 + $0xbc]]
    %v1403 = vstv %s1402
    %v1404 = vmul.f32 %v1403, %v1262
    %v1405 = vmul.f32 %v1403, %v1263
    %v1406 = vadd.f32 %v1400, %v1404
    %v1407 = vadd.f32 %v1401, %v1405
    %v1408 = vrot.slane %v298, 7
    %v1409 = vrot.slane %v299, 7
    %v1410 = vsel %vm112, %v1408, %v1409
    %v1411 = vsel %vm112, %v1409, %v1408
    %v1412 = vsel %vm121, %v1411, 0.0
    %v1413 = vsel %vm122, %v1410, 0.0
    %v1414 = vrot.slane %v298, 1
    %v1415 = vrot.slane %v299, 1
    %v1416 = vsel %vm127, %v1414, %v1415
    %v1417 = vsel %vm127, %v1415, %v1414
    %v1418 = vsel %vm136, %v1416, 0.0
    %v1419 = vsel %vm137, %v1417, 0.0
    %s1420 = sld [smem:[#allocation9 + $0x15]]
    %v1421 = vstv %s1420
    %v1422 = vmul.f32 %v1421, %v1412
    %v1423 = vmul.f32 %v1421, %v1413
    %v1424 = vadd.f32 %v1280, %v1422
    %v1425 = vadd.f32 %v1281, %v1423
    %s1426 = sld [smem:[#allocation9 + $0x16]]
    %v1427 = vstv %s1426
    %v1428 = vmul.f32 %v1427, %v298
    %v1429 = vmul.f32 %v1427, %v299
    %v1430 = vadd.f32 %v1424, %v1428
    %v1431 = vadd.f32 %v1425, %v1429
    %s1432 = sld [smem:[#allocation9 + $0x17]]
    %v1433 = vstv %s1432
    %v1434 = vmul.f32 %v1433, %v1418
    %v1435 = vmul.f32 %v1433, %v1419
    %v1436 = vadd.f32 %v1430, %v1434
    %v1437 = vadd.f32 %v1431, %v1435
    %s1438 = sld [smem:[#allocation9 + $0x2d]]
    %v1439 = vstv %s1438
    %v1440 = vmul.f32 %v1439, %v1412
    %v1441 = vmul.f32 %v1439, %v1413
    %v1442 = vadd.f32 %v1298, %v1440
    %v1443 = vadd.f32 %v1299, %v1441
    %s1444 = sld [smem:[#allocation9 + $0x2e]]
    %v1445 = vstv %s1444
    %v1446 = vmul.f32 %v1445, %v298
    %v1447 = vmul.f32 %v1445, %v299
    %v1448 = vadd.f32 %v1442, %v1446
    %v1449 = vadd.f32 %v1443, %v1447
    %s1450 = sld [smem:[#allocation9 + $0x2f]]
    %v1451 = vstv %s1450
    %v1452 = vmul.f32 %v1451, %v1418
    %v1453 = vmul.f32 %v1451, %v1419
    %v1454 = vadd.f32 %v1448, %v1452
    %v1455 = vadd.f32 %v1449, %v1453
    %s1456 = sld [smem:[#allocation9 + $0x45]]
    %v1457 = vstv %s1456
    %v1458 = vmul.f32 %v1457, %v1412
    %v1459 = vmul.f32 %v1457, %v1413
    %v1460 = vadd.f32 %v1316, %v1458
    %v1461 = vadd.f32 %v1317, %v1459
    %s1462 = sld [smem:[#allocation9 + $0x46]]
    %v1463 = vstv %s1462
    %v1464 = vmul.f32 %v1463, %v298
    %v1465 = vmul.f32 %v1463, %v299
    %v1466 = vadd.f32 %v1460, %v1464
    %v1467 = vadd.f32 %v1461, %v1465
    %s1468 = sld [smem:[#allocation9 + $0x47]]
    %v1469 = vstv %s1468
    %v1470 = vmul.f32 %v1469, %v1418
    %v1471 = vmul.f32 %v1469, %v1419
    %v1472 = vadd.f32 %v1466, %v1470
    %v1473 = vadd.f32 %v1467, %v1471
    %s1474 = sld [smem:[#allocation9 + $0x5d]]
    %v1475 = vstv %s1474
    %v1476 = vmul.f32 %v1475, %v1412
    %v1477 = vmul.f32 %v1475, %v1413
    %v1478 = vadd.f32 %v1334, %v1476
    %v1479 = vadd.f32 %v1335, %v1477
    %s1480 = sld [smem:[#allocation9 + $0x5e]]
    %v1481 = vstv %s1480
    %v1482 = vmul.f32 %v1481, %v298
    %v1483 = vmul.f32 %v1481, %v299
    %v1484 = vadd.f32 %v1478, %v1482
    %v1485 = vadd.f32 %v1479, %v1483
    %s1486 = sld [smem:[#allocation9 + $0x5f]]
    %v1487 = vstv %s1486
    %v1488 = vmul.f32 %v1487, %v1418
    %v1489 = vmul.f32 %v1487, %v1419
    %v1490 = vadd.f32 %v1484, %v1488
    %v1491 = vadd.f32 %v1485, %v1489
    %s1492 = sld [smem:[#allocation9 + $0x75]]
    %v1493 = vstv %s1492
    %v1494 = vmul.f32 %v1493, %v1412
    %v1495 = vmul.f32 %v1493, %v1413
    %v1496 = vadd.f32 %v1352, %v1494
    %v1497 = vadd.f32 %v1353, %v1495
    %s1498 = sld [smem:[#allocation9 + $0x76]]
    %v1499 = vstv %s1498
    %v1500 = vmul.f32 %v1499, %v298
    %v1501 = vmul.f32 %v1499, %v299
    %v1502 = vadd.f32 %v1496, %v1500
    %v1503 = vadd.f32 %v1497, %v1501
    %s1504 = sld [smem:[#allocation9 + $0x77]]
    %v1505 = vstv %s1504
    %v1506 = vmul.f32 %v1505, %v1418
    %v1507 = vmul.f32 %v1505, %v1419
    %v1508 = vadd.f32 %v1502, %v1506
    %v1509 = vadd.f32 %v1503, %v1507
    %s1510 = sld [smem:[#allocation9 + $0x8d]]
    %v1511 = vstv %s1510
    %v1512 = vmul.f32 %v1511, %v1412
    %v1513 = vmul.f32 %v1511, %v1413
    %v1514 = vadd.f32 %v1370, %v1512
    %v1515 = vadd.f32 %v1371, %v1513
    %s1516 = sld [smem:[#allocation9 + $0x8e]]
    %v1517 = vstv %s1516
    %v1518 = vmul.f32 %v1517, %v298
    %v1519 = vmul.f32 %v1517, %v299
    %v1520 = vadd.f32 %v1514, %v1518
    %v1521 = vadd.f32 %v1515, %v1519
    %s1522 = sld [smem:[#allocation9 + $0x8f]]
    %v1523 = vstv %s1522
    %v1524 = vmul.f32 %v1523, %v1418
    %v1525 = vmul.f32 %v1523, %v1419
    %v1526 = vadd.f32 %v1520, %v1524
    %v1527 = vadd.f32 %v1521, %v1525
    %s1528 = sld [smem:[#allocation9 + $0xa5]]
    %v1529 = vstv %s1528
    %v1530 = vmul.f32 %v1529, %v1412
    %v1531 = vmul.f32 %v1529, %v1413
    %v1532 = vadd.f32 %v1388, %v1530
    %v1533 = vadd.f32 %v1389, %v1531
    %s1534 = sld [smem:[#allocation9 + $0xa6]]
    %v1535 = vstv %s1534
    %v1536 = vmul.f32 %v1535, %v298
    %v1537 = vmul.f32 %v1535, %v299
    %v1538 = vadd.f32 %v1532, %v1536
    %v1539 = vadd.f32 %v1533, %v1537
    %s1540 = sld [smem:[#allocation9 + $0xa7]]
    %v1541 = vstv %s1540
    %v1542 = vmul.f32 %v1541, %v1418
    %v1543 = vmul.f32 %v1541, %v1419
    %v1544 = vadd.f32 %v1538, %v1542
    %v1545 = vadd.f32 %v1539, %v1543
    %s1546 = sld [smem:[#allocation9 + $0xbd]]
    %v1547 = vstv %s1546
    %v1548 = vmul.f32 %v1547, %v1412
    %v1549 = vmul.f32 %v1547, %v1413
    %v1550 = vadd.f32 %v1406, %v1548
    %v1551 = vadd.f32 %v1407, %v1549
    %s1552 = sld [smem:[#allocation9 + $0xbe]]
    %v1553 = vstv %s1552
    %v1554 = vmul.f32 %v1553, %v298
    %v1555 = vmul.f32 %v1553, %v299
    %v1556 = vadd.f32 %v1550, %v1554
    %v1557 = vadd.f32 %v1551, %v1555
    %s1558 = sld [smem:[#allocation9 + $0xbf]]
    %v1559 = vstv %s1558
    %v1560 = vmul.f32 %v1559, %v1418
    %v1561 = vmul.f32 %v1559, %v1419
    %v1562 = vadd.f32 %v1556, %v1560
    %v1563 = vadd.f32 %v1557, %v1561
    %v1564 = vmax.f32 %v1436, 0.0
    %v1565 = vmax.f32 %v1437, 0.0
    %v1566 = vmax.f32 %v1454, 0.0
    %v1567 = vmax.f32 %v1455, 0.0
    %v1568 = vmax.f32 %v1472, 0.0
    %v1569 = vmax.f32 %v1473, 0.0
    %v1570 = vmax.f32 %v1490, 0.0
    %v1571 = vmax.f32 %v1491, 0.0
    %v1572 = vmax.f32 %v1508, 0.0
    %v1573 = vmax.f32 %v1509, 0.0
    %v1574 = vmax.f32 %v1526, 0.0
    %v1575 = vmax.f32 %v1527, 0.0
    %v1576 = vmax.f32 %v1544, 0.0
    %v1577 = vmax.f32 %v1545, 0.0
    %v1578 = vmax.f32 %v1562, 0.0
    %v1579 = vmax.f32 %v1563, 0.0
    %v1580 = vadd.f32 %v1564, %v1565
    %v1581 = vrot.slane %v1580, 4
    %v1582 = vadd.f32 %v1580, %v1581
    %v1583 = vrot.slane %v1582, 2
    %v1584 = vadd.f32 %v1582, %v1583
    %v1585 = vrot.slane %v1584, 1
    %v1586 = vadd.f32 %v1584, %v1585
    %v1587 = vadd.f32 %v1566, %v1567
    %v1588 = vrot.slane %v1587, 4
    %v1589 = vadd.f32 %v1587, %v1588
    %v1590 = vrot.slane %v1589, 2
    %v1591 = vadd.f32 %v1589, %v1590
    %v1592 = vrot.slane %v1591, 1
    %v1593 = vadd.f32 %v1591, %v1592
    %v1594 = vadd.f32 %v1568, %v1569
    %v1595 = vrot.slane %v1594, 4
    %v1596 = vadd.f32 %v1594, %v1595
    %v1597 = vrot.slane %v1596, 2
    %v1598 = vadd.f32 %v1596, %v1597
    %v1599 = vrot.slane %v1598, 1
    %v1600 = vadd.f32 %v1598, %v1599
    %v1601 = vadd.f32 %v1570, %v1571
    %v1602 = vrot.slane %v1601, 4
    %v1603 = vadd.f32 %v1601, %v1602
    %v1604 = vrot.slane %v1603, 2
    %v1605 = vadd.f32 %v1603, %v1604
    %v1606 = vrot.slane %v1605, 1
    %v1607 = vadd.f32 %v1605, %v1606
    %v1608 = vadd.f32 %v1572, %v1573
    %v1609 = vrot.slane %v1608, 4
    %v1610 = vadd.f32 %v1608, %v1609
    %v1611 = vrot.slane %v1610, 2
    %v1612 = vadd.f32 %v1610, %v1611
    %v1613 = vrot.slane %v1612, 1
    %v1614 = vadd.f32 %v1612, %v1613
    %v1615 = vadd.f32 %v1574, %v1575
    %v1616 = vrot.slane %v1615, 4
    %v1617 = vadd.f32 %v1615, %v1616
    %v1618 = vrot.slane %v1617, 2
    %v1619 = vadd.f32 %v1617, %v1618
    %v1620 = vrot.slane %v1619, 1
    %v1621 = vadd.f32 %v1619, %v1620
    %v1622 = vadd.f32 %v1576, %v1577
    %v1623 = vrot.slane %v1622, 4
    %v1624 = vadd.f32 %v1622, %v1623
    %v1625 = vrot.slane %v1624, 2
    %v1626 = vadd.f32 %v1624, %v1625
    %v1627 = vrot.slane %v1626, 1
    %v1628 = vadd.f32 %v1626, %v1627
    %v1629 = vadd.f32 %v1578, %v1579
    %v1630 = vrot.slane %v1629, 4
    %v1631 = vadd.f32 %v1629, %v1630
    %v1632 = vrot.slane %v1631, 2
    %v1633 = vadd.f32 %v1631, %v1632
    %v1634 = vrot.slane %v1633, 1
    %v1635 = vadd.f32 %v1633, %v1634
    %vm1636 = vcmask 1040384
    %v1637 = vsel %vm1636, %v1586, %v1593
    %vm1638 = vcmask 1041408
    %v1639 = vsel %vm1638, %v1637, %v1600
    %vm1640 = vcmask 1042432
    %v1641 = vsel %vm1640, %v1639, %v1607
    %vm1642 = vcmask 1043456
    %v1643 = vsel %vm1642, %v1641, %v1614
    %vm1644 = vcmask 1044480
    %v1645 = vsel %vm1644, %v1643, %v1621
    %vm1646 = vcmask 1045504
    %v1647 = vsel %vm1646, %v1645, %v1628
    %vm1648 = vcmask 1046528
    %v1649 = vsel %vm1648, %v1647, %v1635
    %v1650 = vld [vmem:[%s5] sm:$0xff]
    %v1651 = vld [vmem:[%s6] sm:$0xff]
    %1653 = vset.pattern.permute.xlu0 0
    %1654 = vperm.xlu0 %1653, %v1651
    %v1655 = vpop.permute.xlu0 %1654
    %vm1657 = vcmask 64512
    %v1659 = vsel %vm1657, %v1650, 0
    %1661 = vmatprep.subr.mxu0 0.0
    %1662 = vmatpush1.msra.mxu0 %v1649
    %1663 = vmatprep.subr.mxu0 0.0
    %1664 = vmatpush1.msra.mxu0 0.0
    %1665 = vmatprep.subr.mxu0 0.0
    %1666 = vmatpush1.msra.mxu0 0.0
    %1667 = vmatprep.subr.mxu0 0.0
    %1668 = vmatpush1.msra.mxu0 0.0
    %1669 = vmatprep.subr.mxu0 0.0
    %1670 = vmatpush1.msra.mxu0 0.0
    %1671 = vmatprep.subr.mxu0 0.0
    %1672 = vmatpush1.msra.mxu0 0.0
    %1673 = vmatprep.subr.mxu0 0.0
    %1674 = vmatpush1.msra.mxu0 0.0
    %1675 = vmatprep.subr.mxu0 0.0
    %1676 = vmatpush1.msra.mxu0 0.0
    %1677 = vmatprep.subr.mxu0 0.0
    %1678 = vmatpush1.msra.mxu0 0.0
    %1679 = vmatprep.subr.mxu0 0.0
    %1680 = vmatpush1.msra.mxu0 0.0
    %1681 = vmatprep.subr.mxu0 0.0
    %1682 = vmatpush1.msra.mxu0 0.0
    %1683 = vmatprep.subr.mxu0 0.0
    %1684 = vmatpush1.msra.mxu0 0.0
    %1685 = vmatprep.subr.mxu0 0.0
    %1686 = vmatpush1.msra.mxu0 0.0
    %1687 = vmatprep.subr.mxu0 0.0
    %1688 = vmatpush1.msra.mxu0 0.0
    %1689 = vmatprep.subr.mxu0 0.0
    %1690 = vmatpush1.msra.mxu0 0.0
    %1691 = vmatprep.subr.mxu0 0.0
    %1692 = vmatpush1.msra.mxu0 0.0
    %1693 = vmatprep.subr.mxu0 0.0
    %1694 = vmatpush1.msra.mxu0 0.0
    %1695 = vmatprep.subr.mxu0 0.0
    %1696 = vmatpush1.msra.mxu0 0.0
    %1697 = vmatprep.subr.mxu0 0.0
    %1698 = vmatpush1.msra.mxu0 0.0
    %1699 = vmatprep.subr.mxu0 0.0
    %1700 = vmatpush1.msra.mxu0 0.0
    %1701 = vmatprep.subr.mxu0 0.0
    %1702 = vmatpush1.msra.mxu0 0.0
    %1703 = vmatprep.subr.mxu0 0.0
    %1704 = vmatpush1.msra.mxu0 0.0
    %1705 = vmatprep.subr.mxu0 0.0
    %1706 = vmatpush1.msra.mxu0 0.0
    %1707 = vmatprep.subr.mxu0 0.0
    %1708 = vmatpush1.msra.mxu0 0.0
    %1709 = vmatprep.subr.mxu0 0.0
    %1710 = vmatpush1.msra.mxu0 0.0
    %1711 = vmatprep.subr.mxu0 0.0
    %1712 = vmatpush1.msra.mxu0 0.0
    %1713 = vmatprep.subr.mxu0 0.0
    %1714 = vmatpush1.msra.mxu0 0.0
    %1715 = vmatprep.subr.mxu0 0.0
    %1716 = vmatpush1.msra.mxu0 0.0
    %1717 = vmatprep.subr.mxu0 0.0
    %1718 = vmatpush1.msra.mxu0 0.0
    %1719 = vmatprep.subr.mxu0 0.0
    %1720 = vmatpush1.msra.mxu0 0.0
    %1721 = vmatprep.subr.mxu0 0.0
    %1722 = vmatpush1.msra.mxu0 0.0
    %1723 = vmatprep.subr.mxu0 0.0
    %1724 = vmatpush1.msra.mxu0 0.0
    %1725 = vmatprep.mubr.f32.mxu0 0.0
    %1726 = vmatmul.mubr.f32.gmra.mrb[0].mxu0 %v1659
    %v1727 = vpop.f32.mrb[0].mxu0
    %v1728 = vadd.f32 %v1655, %v1727
    %v1729 = vpop.f32.mrb[0].mxu0
    %1730 = vdwg.mxu0
    %1731 = vst [vmem:[#allocation12] sm:$0xff] %v1728
    // Predicated region
    $region50: #{tpu_custom_call.1} parent=1 // pred_check
      _
    $region51: #{tpu_custom_call.1} parent=1 // pred_check_branch
      %1733 = sbr.rel (0) target = $region53
    $region52: #{tpu_custom_call.1} parent=1 // pred_region
      %s1735 = ssub.s32 128, 128
      %1736 = vsyncadd [#allocation4], %s1735
      %s1738 = sshll.u32 [#allocation12], 4
      %s1739 = int_to_ptr.vmem [resolvable:$true] %s1738
      %1741 = dma.vmem_to_hbm [thread:$0]  %s1739, 128, %s7, [#allocation4]
    $region53: #{tpu_custom_call.1} parent=1 // pred_fallthru
      _
    // Predicated region
    $region54: #{tpu_custom_call.1} parent=1 // pred_check
      _
    $region55: #{tpu_custom_call.1} parent=1 // pred_check_branch
      %1743 = sbr.rel (0) target = $region57
    $region56: #{tpu_custom_call.1} parent=1 // pred_region
      %1744 = dma.done [#allocation4], 128
    $region57: #{tpu_custom_call.1} parent=1 // pred_fallthru
      _
    %1745 = vsyncpa [#allocation3], 1
    %1746 = vsyncpa [#allocation4], 1
    %1747 = vsyncpa [#allocation5], 1
    %1748 = vsyncpa [#allocation8], 1
    %1749 = vsyncpa [#allocation11], 1

</llo_original>
